<compile_context>
chip_gen: v7x
topology: tpu7x:2x2x1
jax: 0.10.0
libtpu: 0.0.40
codegen_flags: <defaults>
</compile_context>

<pallas_src>
import functools

import jax
import jax.numpy as jnp
from jax.experimental import pallas as pl
from jax.experimental.pallas import tpu as pltpu


# ----------------------------------------------------------------------------
# Fused kernel: [conv3x3(stride, pad=1) + BN + ReLU] -> [conv3x3(1, pad=1) + BN]
# One grid step per batch element; all work in NCHW with lane-dense H*W.
# ----------------------------------------------------------------------------
def _basic_transform_kernel(x_ref, wa_ref, wb_ref, sa_ref, ba_ref, sb_ref,
                            bb_ref, o_ref, xpad, midpad,
                            *, H, W, Ho, Wo, cin, cout, stride):
    f32 = jnp.float32

    # ---------------- stage A: conv3x3 (stride, pad=1) + BN + ReLU ----------
    # In-kernel zero padding: zero the scratch, write the interior.
    xpad[...] = jnp.zeros_like(xpad)
    xpad[:, 1:H + 1, 1:W + 1] = x_ref[0].astype(f32)
    xv = xpad[...]                                         # (cin, H+2, W+2)

    sh = (Ho - 1) * stride + 1
    sw = (Wo - 1) * stride + 1
    taps = []
    for dy in range(3):                                    # static unroll (9 taps)
        for dx in range(3):
            v = xv[:, dy:dy + sh:stride, dx:dx + sw:stride]  # (cin, Ho, Wo)
            taps.append(v.reshape(cin, Ho * Wo))
    patch = jnp.concatenate(taps, axis=0)                  # (9*cin, Ho*Wo)

    # Single im2col matmul; result is lane-dense (cout, Ho*Wo).
    ya = jnp.dot(wa_ref[...], patch, preferred_element_type=f32)
    ya = jnp.maximum(ya * sa_ref[...] + ba_ref[...], 0.0)  # folded BN + ReLU

    # ---------------- stage B: conv3x3 (stride 1, pad=1) + BN ---------------
    midpad[...] = jnp.zeros_like(midpad)
    midpad[:, 1:Ho + 1, 1:Wo + 1] = ya.reshape(cout, Ho, Wo)
    mv = midpad[...]                                       # (cout, Ho+2, Wo+2)

    taps_b = []
    for dy in range(3):
        for dx in range(3):
            taps_b.append(mv[:, dy:dy + Ho, dx:dx + Wo].reshape(cout, Ho * Wo))
    patch_b = jnp.concatenate(taps_b, axis=0)              # (9*cout, Ho*Wo)

    yb = jnp.dot(wb_ref[...], patch_b, preferred_element_type=f32)
    yb = yb * sb_ref[...] + bb_ref[...]                    # folded BN (no ReLU)

    o_ref[0] = yb.astype(o_ref.dtype)                      # unmasked lane-dense store


# ----------------------------------------------------------------------------
# Wrapper
# ----------------------------------------------------------------------------
def _fold_bn(gamma, beta, mean, var, eps=1e-5):
    scale = gamma / jnp.sqrt(var + eps)
    bias = beta - mean * scale
    return scale, bias


def basic_transform(x_nchw, params, stride):
    """Forward pass of BasicTransform. Input/output in NCHW like PyTorch."""
    N, cin, H, W = x_nchw.shape
    cout = params["a_w"].shape[-1]
    Ho = (H - 1) // stride + 1
    Wo = (W - 1) // stride + 1

    # HWIO -> (cout, 9*cin); row order (dy, dx, cin) matches the patch rows.
    wa = jnp.transpose(params["a_w"], (3, 0, 1, 2)).reshape(cout, 9 * cin)
    wb = jnp.transpose(params["b_w"], (3, 0, 1, 2)).reshape(cout, 9 * cout)
    sa, ba = _fold_bn(*params["a_bn"])
    sb, bb = _fold_bn(*params["b_bn"])

    kern = functools.partial(_basic_transform_kernel, H=H, W=W, Ho=Ho, Wo=Wo,
                             cin=cin, cout=cout, stride=stride)

    out = pl.pallas_call(
        kern,
        out_shape=jax.ShapeDtypeStruct((N, cout, Ho * Wo), x_nchw.dtype),
        grid_spec=pltpu.PrefetchScalarGridSpec(
            num_scalar_prefetch=0,
            grid=(N,),
            in_specs=[
                pl.BlockSpec((1, cin, H, W), lambda n: (n, 0, 0, 0)),
                pl.BlockSpec((cout, 9 * cin), lambda n: (0, 0)),
                pl.BlockSpec((cout, 9 * cout), lambda n: (0, 0)),
                pl.BlockSpec((cout, 1), lambda n: (0, 0)),
                pl.BlockSpec((cout, 1), lambda n: (0, 0)),
                pl.BlockSpec((cout, 1), lambda n: (0, 0)),
                pl.BlockSpec((cout, 1), lambda n: (0, 0)),
            ],
            out_specs=pl.BlockSpec((1, cout, Ho * Wo), lambda n: (n, 0, 0)),
            scratch_shapes=[
                pltpu.VMEM((cin, H + 2, W + 2), jnp.float32),    # padded input
                pltpu.VMEM((cout, Ho + 2, Wo + 2), jnp.float32), # padded mid act
            ],
        ),
        compiler_params=pltpu.CompilerParams(
            dimension_semantics=("parallel",)),
    )(x_nchw,
      wa.astype(jnp.float32), wb.astype(jnp.float32),
      sa.reshape(cout, 1).astype(jnp.float32),
      ba.reshape(cout, 1).astype(jnp.float32),
      sb.reshape(cout, 1).astype(jnp.float32),
      bb.reshape(cout, 1).astype(jnp.float32))

    # Free reshape: (N, cout, Ho*Wo) -> (N, cout, Ho, Wo) is a metadata change.
    return out.reshape(N, cout, Ho, Wo)


# ----------------------------------------------------------------------------
# Pure-JAX reference (NCHW, for correctness check)
# ----------------------------------------------------------------------------
def _ref_stage(x, w_hwio, bn, stride, relu):
    gamma, beta, mean, var = bn
    y = jax.lax.conv_general_dilated(
        x, w_hwio, (stride, stride), ((1, 1), (1, 1)),
        dimension_numbers=("NCHW", "HWIO", "NCHW"))
    scale = gamma / jnp.sqrt(var + 1e-5)
    bias = beta - mean * scale
    y = y * scale[None, :, None, None] + bias[None, :, None, None]
    return jnp.maximum(y, 0.0) if relu else y


def basic_transform_ref(x_nchw, params, stride):
    x = _ref_stage(x_nchw, params["a_w"], params["a_bn"], stride, True)
    x = _ref_stage(x, params["b_w"], params["b_bn"], 1, False)
    return x


# ----------------------------------------------------------------------------
if __name__ == "__main__":
    key = jax.random.PRNGKey(0)
    ks = jax.random.split(key, 11)

    # Small shapes consistent with the module: BasicTransform(w_in=4, w_out=8, stride=1)
    N, w_in, w_out, H, W, stride = 2, 4, 8, 16, 16, 1

    x = jax.random.normal(ks[0], (N, w_in, H, W), jnp.float32)

    params = {
        # conv weights in HWIO (synthetic deterministic init)
        "a_w": 0.1 * jax.random.normal(ks[1], (3, 3, w_in, w_out), jnp.float32),
        "b_w": 0.1 * jax.random.normal(ks[2], (3, 3, w_out, w_out), jnp.float32),
        # BN params: (gamma, beta, running_mean, running_var)
        "a_bn": (1.0 + 0.1 * jax.random.normal(ks[3], (w_out,), jnp.float32),
                 0.1 * jax.random.normal(ks[4], (w_out,), jnp.float32),
                 0.1 * jax.random.normal(ks[5], (w_out,), jnp.float32),
                 1.0 + 0.1 * jnp.abs(jax.random.normal(ks[6], (w_out,), jnp.float32))),
        "b_bn": (1.0 + 0.1 * jax.random.normal(ks[7], (w_out,), jnp.float32),
                 0.1 * jax.random.normal(ks[8], (w_out,), jnp.float32),
                 0.1 * jax.random.normal(ks[9], (w_out,), jnp.float32),
                 1.0 + 0.1 * jnp.abs(jax.random.normal(ks[10], (w_out,), jnp.float32))),
    }

    out = jax.block_until_ready(basic_transform(x, params, stride))
    ref = jax.block_until_ready(basic_transform_ref(x, params, stride))

    assert out.shape == (N, w_out, H // stride, W // stride), out.shape
    assert jnp.allclose(out, ref, atol=1e-4, rtol=1e-4), \
        float(jnp.max(jnp.abs(out - ref)))

    print("KERNEL_OK")
</pallas_src>

<mosaic_0001>
module attributes {stable_mosaic.version = 11 : i64} {
  func.func @_basic_transform_kernel(%arg0: i32, %arg1: memref<1x4x16x16xf32, #tpu.memory_space<vmem>>, %arg2: memref<8x36xf32, #tpu.memory_space<vmem>>, %arg3: memref<8x72xf32, #tpu.memory_space<vmem>>, %arg4: memref<8x1xf32, #tpu.memory_space<vmem>>, %arg5: memref<8x1xf32, #tpu.memory_space<vmem>>, %arg6: memref<8x1xf32, #tpu.memory_space<vmem>>, %arg7: memref<8x1xf32, #tpu.memory_space<vmem>>, %arg8: memref<1x8x256xf32, #tpu.memory_space<vmem>>, %arg9: memref<4x18x18xf32, #tpu.memory_space<vmem>>, %arg10: memref<8x18x18xf32, #tpu.memory_space<vmem>>) attributes {dimension_semantics = [#tpu.dimension_semantics<parallel>], iteration_bounds = array<i64: 2>, scalar_prefetch = 0 : i64, scratch_operands = 2 : i64, tpu.core_type = #tpu.core_type<tc>, window_params = [{transform_indices = @transform_0, window_bounds = array<i64: 1, 4, 16, 16>}, {pipeline_mode = #tpu.pipeline_mode<synchronous>, transform_indices = @transform_1, window_bounds = array<i64: 8, 36>}, {pipeline_mode = #tpu.pipeline_mode<synchronous>, transform_indices = @transform_2, window_bounds = array<i64: 8, 72>}, {pipeline_mode = #tpu.pipeline_mode<synchronous>, transform_indices = @transform_3, window_bounds = array<i64: 8, 1>}, {pipeline_mode = #tpu.pipeline_mode<synchronous>, transform_indices = @transform_4, window_bounds = array<i64: 8, 1>}, {pipeline_mode = #tpu.pipeline_mode<synchronous>, transform_indices = @transform_5, window_bounds = array<i64: 8, 1>}, {pipeline_mode = #tpu.pipeline_mode<synchronous>, transform_indices = @transform_6, window_bounds = array<i64: 8, 1>}, {transform_indices = @transform_7, window_bounds = array<i64: 1, 8, 256>}]} {
    %cst = arith.constant 0.000000e+00 : f32
    %0 = vector.broadcast %cst : f32 to vector<4x18x18xf32>
    %c0 = arith.constant 0 : index
    %c0_0 = arith.constant 0 : index
    %c0_1 = arith.constant 0 : index
    %1 = vector.load %arg9[%c0, %c0_0, %c0_1] : memref<4x18x18xf32, #tpu.memory_space<vmem>>, vector<4x18x18xf32>
    tpu.vector_store %arg9[%c0, %c0_0, %c0_1], %0 {strides = array<i32>} : memref<4x18x18xf32, #tpu.memory_space<vmem>>, vector<4x18x18xf32>,
    %c0_2 = arith.constant 0 : index
    %c0_3 = arith.constant 0 : index
    %c0_4 = arith.constant 0 : index
    %c0_5 = arith.constant 0 : index
    %2 = vector.load %arg1[%c0_2, %c0_3, %c0_4, %c0_5] : memref<1x4x16x16xf32, #tpu.memory_space<vmem>>, vector<1x4x16x16xf32>
    %3 = vector.shape_cast %2 : vector<1x4x16x16xf32> to vector<4x16x16xf32>
    %c0_6 = arith.constant 0 : index
    %c1 = arith.constant 1 : index
    %c1_7 = arith.constant 1 : index
    %4 = vector.load %arg9[%c0_6, %c1, %c1_7] : memref<4x18x18xf32, #tpu.memory_space<vmem>>, vector<4x16x16xf32>
    tpu.vector_store %arg9[%c0_6, %c1, %c1_7], %3 {strides = array<i32>} : memref<4x18x18xf32, #tpu.memory_space<vmem>>, vector<4x16x16xf32>,
    %c0_8 = arith.constant 0 : index
    %c0_9 = arith.constant 0 : index
    %c0_10 = arith.constant 0 : index
    %5 = vector.load %arg9[%c0_8, %c0_9, %c0_10] : memref<4x18x18xf32, #tpu.memory_space<vmem>>, vector<4x18x18xf32>
    %6 = vector.extract_strided_slice %5 {offsets = [0, 0, 0], sizes = [4, 16, 16], strides = [1, 1, 1]} : vector<4x18x18xf32> to vector<4x16x16xf32>
    %7 = vector.shape_cast %6 : vector<4x16x16xf32> to vector<4x256xf32>
    %8 = vector.extract_strided_slice %5 {offsets = [0, 0, 1], sizes = [4, 16, 16], strides = [1, 1, 1]} : vector<4x18x18xf32> to vector<4x16x16xf32>
    %9 = vector.shape_cast %8 : vector<4x16x16xf32> to vector<4x256xf32>
    %10 = vector.extract_strided_slice %5 {offsets = [0, 0, 2], sizes = [4, 16, 16], strides = [1, 1, 1]} : vector<4x18x18xf32> to vector<4x16x16xf32>
    %11 = vector.shape_cast %10 : vector<4x16x16xf32> to vector<4x256xf32>
    %12 = vector.extract_strided_slice %5 {offsets = [0, 1, 0], sizes = [4, 16, 16], strides = [1, 1, 1]} : vector<4x18x18xf32> to vector<4x16x16xf32>
    %13 = vector.shape_cast %12 : vector<4x16x16xf32> to vector<4x256xf32>
    %14 = vector.extract_strided_slice %5 {offsets = [0, 1, 1], sizes = [4, 16, 16], strides = [1, 1, 1]} : vector<4x18x18xf32> to vector<4x16x16xf32>
    %15 = vector.shape_cast %14 : vector<4x16x16xf32> to vector<4x256xf32>
    %16 = vector.extract_strided_slice %5 {offsets = [0, 1, 2], sizes = [4, 16, 16], strides = [1, 1, 1]} : vector<4x18x18xf32> to vector<4x16x16xf32>
    %17 = vector.shape_cast %16 : vector<4x16x16xf32> to vector<4x256xf32>
    %18 = vector.extract_strided_slice %5 {offsets = [0, 2, 0], sizes = [4, 16, 16], strides = [1, 1, 1]} : vector<4x18x18xf32> to vector<4x16x16xf32>
    %19 = vector.shape_cast %18 : vector<4x16x16xf32> to vector<4x256xf32>
    %20 = vector.extract_strided_slice %5 {offsets = [0, 2, 1], sizes = [4, 16, 16], strides = [1, 1, 1]} : vector<4x18x18xf32> to vector<4x16x16xf32>
    %21 = vector.shape_cast %20 : vector<4x16x16xf32> to vector<4x256xf32>
    %22 = vector.extract_strided_slice %5 {offsets = [0, 2, 2], sizes = [4, 16, 16], strides = [1, 1, 1]} : vector<4x18x18xf32> to vector<4x16x16xf32>
    %23 = vector.shape_cast %22 : vector<4x16x16xf32> to vector<4x256xf32>
    %24 = tpu.concatenate %7, %9, %11, %13, %15, %17, %19, %21, %23 in 0 : vector<4x256xf32>, vector<4x256xf32>, vector<4x256xf32>, vector<4x256xf32>, vector<4x256xf32>, vector<4x256xf32>, vector<4x256xf32>, vector<4x256xf32>, vector<4x256xf32> -> vector<36x256xf32>
    %c0_11 = arith.constant 0 : index
    %c0_12 = arith.constant 0 : index
    %25 = vector.load %arg2[%c0_11, %c0_12] : memref<8x36xf32, #tpu.memory_space<vmem>>, vector<8x36xf32>
    %cst_13 = arith.constant dense<0.000000e+00> : vector<8x256xf32>
    %26 = tpu.matmul %25, %24, %cst_13 {dimension_numbers = #tpu.dot_dimension_numbers<[1], [0], [0], [1], [0, 0, 1, 1], [], []>} : vector<8x36xf32>, vector<36x256xf32>, vector<8x256xf32> -> vector<8x256xf32>
    %c0_14 = arith.constant 0 : index
    %c0_15 = arith.constant 0 : index
    %27 = vector.load %arg4[%c0_14, %c0_15] : memref<8x1xf32, #tpu.memory_space<vmem>>, vector<8x1xf32>
    %28 = vector.broadcast %27 : vector<8x1xf32> to vector<8x256xf32>
    %29 = arith.mulf %26, %28 : vector<8x256xf32>
    %c0_16 = arith.constant 0 : index
    %c0_17 = arith.constant 0 : index
    %30 = vector.load %arg5[%c0_16, %c0_17] : memref<8x1xf32, #tpu.memory_space<vmem>>, vector<8x1xf32>
    %31 = vector.broadcast %30 : vector<8x1xf32> to vector<8x256xf32>
    %32 = arith.addf %29, %31 : vector<8x256xf32>
    %cst_18 = arith.constant 0.000000e+00 : f32
    %33 = vector.broadcast %cst_18 : f32 to vector<8x256xf32>
    %34 = arith.maximumf %32, %33 : vector<8x256xf32>
    %cst_19 = arith.constant 0.000000e+00 : f32
    %35 = vector.broadcast %cst_19 : f32 to vector<8x18x18xf32>
    %c0_20 = arith.constant 0 : index
    %c0_21 = arith.constant 0 : index
    %c0_22 = arith.constant 0 : index
    %36 = vector.load %arg10[%c0_20, %c0_21, %c0_22] : memref<8x18x18xf32, #tpu.memory_space<vmem>>, vector<8x18x18xf32>
    tpu.vector_store %arg10[%c0_20, %c0_21, %c0_22], %35 {strides = array<i32>} : memref<8x18x18xf32, #tpu.memory_space<vmem>>, vector<8x18x18xf32>,
    %37 = vector.shape_cast %34 : vector<8x256xf32> to vector<8x16x16xf32>
    %c0_23 = arith.constant 0 : index
    %c1_24 = arith.constant 1 : index
    %c1_25 = arith.constant 1 : index
    %38 = vector.load %arg10[%c0_23, %c1_24, %c1_25] : memref<8x18x18xf32, #tpu.memory_space<vmem>>, vector<8x16x16xf32>
    tpu.vector_store %arg10[%c0_23, %c1_24, %c1_25], %37 {strides = array<i32>} : memref<8x18x18xf32, #tpu.memory_space<vmem>>, vector<8x16x16xf32>,
    %c0_26 = arith.constant 0 : index
    %c0_27 = arith.constant 0 : index
    %c0_28 = arith.constant 0 : index
    %39 = vector.load %arg10[%c0_26, %c0_27, %c0_28] : memref<8x18x18xf32, #tpu.memory_space<vmem>>, vector<8x18x18xf32>
    %40 = vector.extract_strided_slice %39 {offsets = [0, 0, 0], sizes = [8, 16, 16], strides = [1, 1, 1]} : vector<8x18x18xf32> to vector<8x16x16xf32>
    %41 = vector.shape_cast %40 : vector<8x16x16xf32> to vector<8x256xf32>
    %42 = vector.extract_strided_slice %39 {offsets = [0, 0, 1], sizes = [8, 16, 16], strides = [1, 1, 1]} : vector<8x18x18xf32> to vector<8x16x16xf32>
    %43 = vector.shape_cast %42 : vector<8x16x16xf32> to vector<8x256xf32>
    %44 = vector.extract_strided_slice %39 {offsets = [0, 0, 2], sizes = [8, 16, 16], strides = [1, 1, 1]} : vector<8x18x18xf32> to vector<8x16x16xf32>
    %45 = vector.shape_cast %44 : vector<8x16x16xf32> to vector<8x256xf32>
    %46 = vector.extract_strided_slice %39 {offsets = [0, 1, 0], sizes = [8, 16, 16], strides = [1, 1, 1]} : vector<8x18x18xf32> to vector<8x16x16xf32>
    %47 = vector.shape_cast %46 : vector<8x16x16xf32> to vector<8x256xf32>
    %48 = vector.extract_strided_slice %39 {offsets = [0, 1, 1], sizes = [8, 16, 16], strides = [1, 1, 1]} : vector<8x18x18xf32> to vector<8x16x16xf32>
    %49 = vector.shape_cast %48 : vector<8x16x16xf32> to vector<8x256xf32>
    %50 = vector.extract_strided_slice %39 {offsets = [0, 1, 2], sizes = [8, 16, 16], strides = [1, 1, 1]} : vector<8x18x18xf32> to vector<8x16x16xf32>
    %51 = vector.shape_cast %50 : vector<8x16x16xf32> to vector<8x256xf32>
    %52 = vector.extract_strided_slice %39 {offsets = [0, 2, 0], sizes = [8, 16, 16], strides = [1, 1, 1]} : vector<8x18x18xf32> to vector<8x16x16xf32>
    %53 = vector.shape_cast %52 : vector<8x16x16xf32> to vector<8x256xf32>
    %54 = vector.extract_strided_slice %39 {offsets = [0, 2, 1], sizes = [8, 16, 16], strides = [1, 1, 1]} : vector<8x18x18xf32> to vector<8x16x16xf32>
    %55 = vector.shape_cast %54 : vector<8x16x16xf32> to vector<8x256xf32>
    %56 = vector.extract_strided_slice %39 {offsets = [0, 2, 2], sizes = [8, 16, 16], strides = [1, 1, 1]} : vector<8x18x18xf32> to vector<8x16x16xf32>
    %57 = vector.shape_cast %56 : vector<8x16x16xf32> to vector<8x256xf32>
    %58 = tpu.concatenate %41, %43, %45, %47, %49, %51, %53, %55, %57 in 0 : vector<8x256xf32>, vector<8x256xf32>, vector<8x256xf32>, vector<8x256xf32>, vector<8x256xf32>, vector<8x256xf32>, vector<8x256xf32>, vector<8x256xf32>, vector<8x256xf32> -> vector<72x256xf32>
    %c0_29 = arith.constant 0 : index
    %c0_30 = arith.constant 0 : index
    %59 = vector.load %arg3[%c0_29, %c0_30] : memref<8x72xf32, #tpu.memory_space<vmem>>, vector<8x72xf32>
    %cst_31 = arith.constant dense<0.000000e+00> : vector<8x256xf32>
    %60 = tpu.matmul %59, %58, %cst_31 {dimension_numbers = #tpu.dot_dimension_numbers<[1], [0], [0], [1], [0, 0, 1, 1], [], []>} : vector<8x72xf32>, vector<72x256xf32>, vector<8x256xf32> -> vector<8x256xf32>
    %c0_32 = arith.constant 0 : index
    %c0_33 = arith.constant 0 : index
    %61 = vector.load %arg6[%c0_32, %c0_33] : memref<8x1xf32, #tpu.memory_space<vmem>>, vector<8x1xf32>
    %62 = vector.broadcast %61 : vector<8x1xf32> to vector<8x256xf32>
    %63 = arith.mulf %60, %62 : vector<8x256xf32>
    %c0_34 = arith.constant 0 : index
    %c0_35 = arith.constant 0 : index
    %64 = vector.load %arg7[%c0_34, %c0_35] : memref<8x1xf32, #tpu.memory_space<vmem>>, vector<8x1xf32>
    %65 = vector.broadcast %64 : vector<8x1xf32> to vector<8x256xf32>
    %66 = arith.addf %63, %65 : vector<8x256xf32>
    %c0_36 = arith.constant 0 : index
    %c0_37 = arith.constant 0 : index
    %c0_38 = arith.constant 0 : index
    %67 = vector.load %arg8[%c0_36, %c0_37, %c0_38] : memref<1x8x256xf32, #tpu.memory_space<vmem>>, vector<1x8x256xf32>
    %68 = vector.shape_cast %67 : vector<1x8x256xf32> to vector<8x256xf32>
    %69 = vector.shape_cast %66 : vector<8x256xf32> to vector<1x8x256xf32>
    tpu.vector_store %arg8[%c0_36, %c0_37, %c0_38], %69 {strides = array<i32>} : memref<1x8x256xf32, #tpu.memory_space<vmem>>, vector<1x8x256xf32>,
    return
  }
  func.func @transform_0(%arg0: i32) -> (i32, i32, i32, i32) {
    %c0_i32 = arith.constant 0 : i32
    %c0_i32_0 = arith.constant 0 : i32
    %c0_i32_1 = arith.constant 0 : i32
    %c0_i32_2 = arith.constant 0 : i32
    return %arg0, %c0_i32, %c0_i32_0, %c0_i32_1 : i32, i32, i32, i32
  }
  func.func @transform_1(%arg0: i32) -> (i32, i32) {
    %c0_i32 = arith.constant 0 : i32
    %c0_i32_0 = arith.constant 0 : i32
    %c0_i32_1 = arith.constant 0 : i32
    return %c0_i32, %c0_i32_0 : i32, i32
  }
  func.func @transform_2(%arg0: i32) -> (i32, i32) {
    %c0_i32 = arith.constant 0 : i32
    %c0_i32_0 = arith.constant 0 : i32
    %c0_i32_1 = arith.constant 0 : i32
    return %c0_i32, %c0_i32_0 : i32, i32
  }
  func.func @transform_3(%arg0: i32) -> (i32, i32) {
    %c0_i32 = arith.constant 0 : i32
    %c0_i32_0 = arith.constant 0 : i32
    %c0_i32_1 = arith.constant 0 : i32
    return %c0_i32, %c0_i32_0 : i32, i32
  }
  func.func @transform_4(%arg0: i32) -> (i32, i32) {
    %c0_i32 = arith.constant 0 : i32
    %c0_i32_0 = arith.constant 0 : i32
    %c0_i32_1 = arith.constant 0 : i32
    return %c0_i32, %c0_i32_0 : i32, i32
  }
  func.func @transform_5(%arg0: i32) -> (i32, i32) {
    %c0_i32 = arith.constant 0 : i32
    %c0_i32_0 = arith.constant 0 : i32
    %c0_i32_1 = arith.constant 0 : i32
    return %c0_i32, %c0_i32_0 : i32, i32
  }
  func.func @transform_6(%arg0: i32) -> (i32, i32) {
    %c0_i32 = arith.constant 0 : i32
    %c0_i32_0 = arith.constant 0 : i32
    %c0_i32_1 = arith.constant 0 : i32
    return %c0_i32, %c0_i32_0 : i32, i32
  }
  func.func @transform_7(%arg0: i32) -> (i32, i32, i32) {
    %c0_i32 = arith.constant 0 : i32
    %c0_i32_0 = arith.constant 0 : i32
    %c0_i32_1 = arith.constant 0 : i32
    return %arg0, %c0_i32, %c0_i32_0 : i32, i32, i32
  }
}

</mosaic_0001>

<llo_original>
// kernel: tpu_custom_call.1
$region0: #{tpu_custom_call.1}
  #allocation0 [shape = 'u32[]', space=smem, size = 0x4, offset = 0x4, fixed_abs, tag = 'smem constant byte address 0x4 - core index']
  #allocation1 [shape = 'u32[144,128]{1,0:T(1,128)}', space=vmem, size = 0x12000, scoped, tag = 'internal scratch']
  #allocation2 [shape = 'f32[4,18,18]{2,1,0:T(8,128)}', space=vmem, size = 0xc000, scoped, tag = 'scratch operand']
  #allocation3 [shape = 'f32[8,18,18]{2,1,0:T(8,128)}', space=vmem, size = 0x18000, scoped, tag = 'scratch operand']
  %s0 = inlined_call_operand.hbm [shape: f32[2,4,16,16], index: 0, kind: input, shape index: {}]
  %s1 = inlined_call_operand.vmem [shape: f32[8,36], index: 1, kind: input, shape index: {}]
  %s2 = inlined_call_operand.vmem [shape: f32[8,72], index: 2, kind: input, shape index: {}]
  %s3 = inlined_call_operand.vmem [shape: f32[8,1], index: 3, kind: input, shape index: {}]
  %s4 = inlined_call_operand.vmem [shape: f32[8,1], index: 4, kind: input, shape index: {}]
  %s5 = inlined_call_operand.vmem [shape: f32[8,1], index: 5, kind: input, shape index: {}]
  %s6 = inlined_call_operand.vmem [shape: f32[8,1], index: 6, kind: input, shape index: {}]
  %s7 = inlined_call_operand.hbm [shape: f32[2,8,256], index: 7, kind: output, shape index: {}]
  %s8 = sld [smem:[#allocation0]]
  $region65: #{tpu_custom_call.1} parent=0
    _
  %s10 = ssub.s32 1, %s8
  %s11 = scalar_select 0, %s10, %s8
  $region1: #{tpu_custom_call.1} parent=0
    #allocation4 [shape = 'u8[65536]{0}', space=vmem, size = 0x10000, scoped, tag = 'input window, operand 0']
    #allocation5 [shape = 's32[2]{0}', space=sflag, size = 0x8, scoped, tag = 'scoped memory for tpu_custom_call.1']
    #allocation6 [shape = 's32[2]{0}', space=sflag, size = 0x8, scoped, tag = 'scoped memory for tpu_custom_call.1']
    #allocation7 [shape = 'u8[16384]{0}', space=vmem, size = 0x4000, scoped, tag = 'output window, operand 0']
    %12 = vsyncpa [#allocation5], 0
    %s13 = scalar_lea.sflag [#allocation5], 1
    %14 = vsyncpa %s13, 0
    %15 = vsyncpa [#allocation6], 0
    %s16 = scalar_lea.sflag [#allocation6], 1
    %17 = vsyncpa %s16, 0
    loop: start=0, step=1, limit=4
    $region2: #{tpu_custom_call.1} parent=1 // loop_pre_header
      _
    $region3: #{tpu_custom_call.1} parent=1 // loop_header
      %s19 = sphi 0, %s23
      %p20 = scmp.ge.s32.totalorder %s19, 4
      %s29 = sphi 0, %s31
      %s32 = sphi 0, %s29
      %s33 = sphi 0, %s32
      %s49 = sphi 0, %s33
      %s53 = sphi 0, %s53
      %s55 = sphi 0, %s53
      %s56 = sphi 0, %s55
      %s70 = sphi 0, %s56
      %s74 = sphi 0, %s74
      %s76 = sphi 0, %s74
      %s77 = sphi 0, %s76
      %s91 = sphi 0, %s77
      %s95 = sphi 0, %s95
      %s97 = sphi 0, %s95
      %s98 = sphi 0, %s97
      %s112 = sphi 0, %s98
      %s116 = sphi 0, %s116
      %s118 = sphi 0, %s116
      %s119 = sphi 0, %s118
      %s133 = sphi 0, %s119
      %s137 = sphi 0, %s137
      %s139 = sphi 0, %s137
      %s140 = sphi 0, %s139
      %s154 = sphi 0, %s140
      %s158 = sphi 0, %s158
      %s160 = sphi 0, %s158
      %s161 = sphi 0, %s160
      %s175 = sphi 0, %s161
      %s181 = sphi 0, %s183
      %s184 = sphi 0, %s181
      %s185 = sphi 0, %s184
      %s201 = sphi 0, %s185
    $region4: #{tpu_custom_call.1} parent=1 // loop_header_branch
      %22 = sbr.rel (%p20) target = $region8
    $region5: #{tpu_custom_call.1} parent=1 // loop_body
      %s24 = ssub.s32 %s19, 1
      %s25 = ssub.s32 %s19, 2
      %s26 = sadd.s32 %s19, 1
      %s27 = ssub.s32 %s19, %s26
      %p28 = scmp.eq.s32.totalorder %s27, 0
      %s30 = sadd.s32 %s29, 1
      %s31 = scalar_select %p28, %s29, %s30
      %p34 = pneg %p28
      %p35 = scmp.eq.s32.totalorder %s19, 1
      %p36 = por %p34, %p35
      %p37 = scmp.ne.s32.totalorder %s29, %s32
      %p38 = scmp.eq.s32.totalorder %s19, 0
      %p39 = por %p37, %p38
      %p40 = scmp.ne.s32.totalorder %s29, %s32
      %p41 = scmp.eq.s32.totalorder %s24, 1
      %p42 = por %p40, %p41
      %p43 = scmp.ne.s32.totalorder %s32, %s33
      %p44 = scmp.eq.s32.totalorder %s24, 0
      %p45 = por %p43, %p44
      %p46 = scmp.ne.s32.totalorder %s32, %s33
      %p47 = scmp.eq.s32.totalorder %s25, 1
      %p48 = por %p46, %p47
      %p50 = scmp.ne.s32.totalorder %s33, %s49
      %p51 = scmp.eq.s32.totalorder %s25, 0
      %p52 = por %p50, %p51
      %s54 = sadd.s32 %s53, 1
      %p57 = scmp.eq.s32.totalorder %s19, 1
      %p58 = scmp.ne.s32.totalorder %s53, %s55
      %p59 = scmp.eq.s32.totalorder %s19, 0
      %p60 = por %p58, %p59
      %p61 = scmp.ne.s32.totalorder %s53, %s55
      %p62 = scmp.eq.s32.totalorder %s24, 1
      %p63 = por %p61, %p62
      %p64 = scmp.ne.s32.totalorder %s55, %s56
      %p65 = scmp.eq.s32.totalorder %s24, 0
      %p66 = por %p64, %p65
      %p67 = scmp.ne.s32.totalorder %s55, %s56
      %p68 = scmp.eq.s32.totalorder %s25, 1
      %p69 = por %p67, %p68
      %p71 = scmp.ne.s32.totalorder %s56, %s70
      %p72 = scmp.eq.s32.totalorder %s25, 0
      %p73 = por %p71, %p72
      %s75 = sadd.s32 %s74, 1
      %p78 = scmp.eq.s32.totalorder %s19, 1
      %p79 = scmp.ne.s32.totalorder %s74, %s76
      %p80 = scmp.eq.s32.totalorder %s19, 0
      %p81 = por %p79, %p80
      %p82 = scmp.ne.s32.totalorder %s74, %s76
      %p83 = scmp.eq.s32.totalorder %s24, 1
      %p84 = por %p82, %p83
      %p85 = scmp.ne.s32.totalorder %s76, %s77
      %p86 = scmp.eq.s32.totalorder %s24, 0
      %p87 = por %p85, %p86
      %p88 = scmp.ne.s32.totalorder %s76, %s77
      %p89 = scmp.eq.s32.totalorder %s25, 1
      %p90 = por %p88, %p89
      %p92 = scmp.ne.s32.totalorder %s77, %s91
      %p93 = scmp.eq.s32.totalorder %s25, 0
      %p94 = por %p92, %p93
      %s96 = sadd.s32 %s95, 1
      %p99 = scmp.eq.s32.totalorder %s19, 1
      %p100 = scmp.ne.s32.totalorder %s95, %s97
      %p101 = scmp.eq.s32.totalorder %s19, 0
      %p102 = por %p100, %p101
      %p103 = scmp.ne.s32.totalorder %s95, %s97
      %p104 = scmp.eq.s32.totalorder %s24, 1
      %p105 = por %p103, %p104
      %p106 = scmp.ne.s32.totalorder %s97, %s98
      %p107 = scmp.eq.s32.totalorder %s24, 0
      %p108 = por %p106, %p107
      %p109 = scmp.ne.s32.totalorder %s97, %s98
      %p110 = scmp.eq.s32.totalorder %s25, 1
      %p111 = por %p109, %p110
      %p113 = scmp.ne.s32.totalorder %s98, %s112
      %p114 = scmp.eq.s32.totalorder %s25, 0
      %p115 = por %p113, %p114
      %s117 = sadd.s32 %s116, 1
      %p120 = scmp.eq.s32.totalorder %s19, 1
      %p121 = scmp.ne.s32.totalorder %s116, %s118
      %p122 = scmp.eq.s32.totalorder %s19, 0
      %p123 = por %p121, %p122
      %p124 = scmp.ne.s32.totalorder %s116, %s118
      %p125 = scmp.eq.s32.totalorder %s24, 1
      %p126 = por %p124, %p125
      %p127 = scmp.ne.s32.totalorder %s118, %s119
      %p128 = scmp.eq.s32.totalorder %s24, 0
      %p129 = por %p127, %p128
      %p130 = scmp.ne.s32.totalorder %s118, %s119
      %p131 = scmp.eq.s32.totalorder %s25, 1
      %p132 = por %p130, %p131
      %p134 = scmp.ne.s32.totalorder %s119, %s133
      %p135 = scmp.eq.s32.totalorder %s25, 0
      %p136 = por %p134, %p135
      %s138 = sadd.s32 %s137, 1
      %p141 = scmp.eq.s32.totalorder %s19, 1
      %p142 = scmp.ne.s32.totalorder %s137, %s139
      %p143 = scmp.eq.s32.totalorder %s19, 0
      %p144 = por %p142, %p143
      %p145 = scmp.ne.s32.totalorder %s137, %s139
      %p146 = scmp.eq.s32.totalorder %s24, 1
      %p147 = por %p145, %p146
      %p148 = scmp.ne.s32.totalorder %s139, %s140
      %p149 = scmp.eq.s32.totalorder %s24, 0
      %p150 = por %p148, %p149
      %p151 = scmp.ne.s32.totalorder %s139, %s140
      %p152 = scmp.eq.s32.totalorder %s25, 1
      %p153 = por %p151, %p152
      %p155 = scmp.ne.s32.totalorder %s140, %s154
      %p156 = scmp.eq.s32.totalorder %s25, 0
      %p157 = por %p155, %p156
      %s159 = sadd.s32 %s158, 1
      %p162 = scmp.eq.s32.totalorder %s19, 1
      %p163 = scmp.ne.s32.totalorder %s158, %s160
      %p164 = scmp.eq.s32.totalorder %s19, 0
      %p165 = por %p163, %p164
      %p166 = scmp.ne.s32.totalorder %s158, %s160
      %p167 = scmp.eq.s32.totalorder %s24, 1
      %p168 = por %p166, %p167
      %p169 = scmp.ne.s32.totalorder %s160, %s161
      %p170 = scmp.eq.s32.totalorder %s24, 0
      %p171 = por %p169, %p170
      %p172 = scmp.ne.s32.totalorder %s160, %s161
      %p173 = scmp.eq.s32.totalorder %s25, 1
      %p174 = por %p172, %p173
      %p176 = scmp.ne.s32.totalorder %s161, %s175
      %p177 = scmp.eq.s32.totalorder %s25, 0
      %p178 = por %p176, %p177
      %s179 = ssub.s32 %s19, %s26
      %p180 = scmp.eq.s32.totalorder %s179, 0
      %s182 = sadd.s32 %s181, 1
      %s183 = scalar_select %p180, %s181, %s182
      %p186 = pneg %p180
      %p187 = scmp.eq.s32.totalorder %s19, 1
      %p188 = por %p186, %p187
      %p189 = scmp.ne.s32.totalorder %s181, %s184
      %p190 = scmp.eq.s32.totalorder %s19, 0
      %p191 = por %p189, %p190
      %p192 = scmp.ne.s32.totalorder %s181, %s184
      %p193 = scmp.eq.s32.totalorder %s24, 1
      %p194 = por %p192, %p193
      %p195 = scmp.ne.s32.totalorder %s184, %s185
      %p196 = scmp.eq.s32.totalorder %s24, 0
      %p197 = por %p195, %p196
      %p198 = scmp.ne.s32.totalorder %s184, %s185
      %p199 = scmp.eq.s32.totalorder %s25, 1
      %p200 = por %p198, %p199
      %p202 = scmp.ne.s32.totalorder %s185, %s201
      %p203 = scmp.eq.s32.totalorder %s25, 0
      %p204 = por %p202, %p203
      %p205 = scmp.le.s32.totalorder 1, %s19
      %p206 = scmp.lt.s32.totalorder %s19, 3
      %p207 = pnand %p205, %p206
      %p208 = pneg %p207
      // Predicated region
      $region9: #{tpu_custom_call.1} parent=5 // pred_check
        _
      $region10: #{tpu_custom_call.1} parent=5 // pred_check_branch
        %210 = sbr.rel (%p207) target = $region12
      $region11: #{tpu_custom_call.1} parent=5 // pred_region
        %s211 = ssub.s32 %s19, 1
        // Predicated region
        $region13: #{tpu_custom_call.1} parent=11 // pred_check
          %p212 = pneg %p66
        $region14: #{tpu_custom_call.1} parent=11 // pred_check_branch
          %214 = sbr.rel (%p212) target = $region16
        $region15: #{tpu_custom_call.1} parent=11 // pred_region
          _
        $region16: #{tpu_custom_call.1} parent=11 // pred_fallthru
          _
        // Predicated region
        $region17: #{tpu_custom_call.1} parent=11 // pred_check
          %p215 = pneg %p87
        $region18: #{tpu_custom_call.1} parent=11 // pred_check_branch
          %217 = sbr.rel (%p215) target = $region20
        $region19: #{tpu_custom_call.1} parent=11 // pred_region
          _
        $region20: #{tpu_custom_call.1} parent=11 // pred_fallthru
          _
        // Predicated region
        $region21: #{tpu_custom_call.1} parent=11 // pred_check
          %p218 = pneg %p108
        $region22: #{tpu_custom_call.1} parent=11 // pred_check_branch
          %220 = sbr.rel (%p218) target = $region24
        $region23: #{tpu_custom_call.1} parent=11 // pred_region
          _
        $region24: #{tpu_custom_call.1} parent=11 // pred_fallthru
          _
        // Predicated region
        $region25: #{tpu_custom_call.1} parent=11 // pred_check
          %p221 = pneg %p129
        $region26: #{tpu_custom_call.1} parent=11 // pred_check_branch
          %223 = sbr.rel (%p221) target = $region28
        $region27: #{tpu_custom_call.1} parent=11 // pred_region
          _
        $region28: #{tpu_custom_call.1} parent=11 // pred_fallthru
          _
        // Predicated region
        $region29: #{tpu_custom_call.1} parent=11 // pred_check
          %p224 = pneg %p150
        $region30: #{tpu_custom_call.1} parent=11 // pred_check_branch
          %226 = sbr.rel (%p224) target = $region32
        $region31: #{tpu_custom_call.1} parent=11 // pred_region
          _
        $region32: #{tpu_custom_call.1} parent=11 // pred_fallthru
          _
        // Predicated region
        $region33: #{tpu_custom_call.1} parent=11 // pred_check
          %p227 = pneg %p171
        $region34: #{tpu_custom_call.1} parent=11 // pred_check_branch
          %229 = sbr.rel (%p227) target = $region36
        $region35: #{tpu_custom_call.1} parent=11 // pred_region
          _
        $region36: #{tpu_custom_call.1} parent=11 // pred_fallthru
          _
      $region12: #{tpu_custom_call.1} parent=5 // pred_fallthru
        _
      %p230 = scmp.lt.s32.totalorder %s19, 2
      // Predicated region
      $region37: #{tpu_custom_call.1} parent=5 // pred_check
        %p231 = pneg %p230
      $region38: #{tpu_custom_call.1} parent=5 // pred_check_branch
        %233 = sbr.rel (%p231) target = $region40
      $region39: #{tpu_custom_call.1} parent=5 // pred_region
        // Predicated region
        $region41: #{tpu_custom_call.1} parent=39 // pred_check
          %p234 = pneg %p39
        $region42: #{tpu_custom_call.1} parent=39 // pred_check_branch
          %236 = sbr.rel (%p234) target = $region44
        $region43: #{tpu_custom_call.1} parent=39 // pred_region
          %s237 = sand.u32 %s29, 1
          %s238 = scalar_lea.sflag [#allocation5], %s237
          %s239 = sand.u32 %s29, 1
          %s240 = smul.addr %s239, 64
          %s241 = scalar_lea.vmem [#allocation4], %s240
          %s243 = ssub.s32 1024, 1024
          %244 = vsyncadd %s238, %s243
          %s245 = smul.addr %s19, 8
          %s246 = smul.addr %s245, 128
          %s247 = scalar_lea.hbm %s0, %s246
          %s248 = sshll.u32 %s241, 4
          %s249 = int_to_ptr.vmem [resolvable:$true] %s248
          %254 = dma.hbm_to_vmem [thread:$0]  %s247, 1024, %s249, %s238, 128, 128, 8
        $region44: #{tpu_custom_call.1} parent=39 // pred_fallthru
          _
      $region40: #{tpu_custom_call.1} parent=5 // pred_fallthru
        _
      %p255 = scmp.le.s32.totalorder 1, %s19
      %p256 = scmp.lt.s32.totalorder %s19, 3
      %p257 = pnand %p255, %p256
      %p258 = pneg %p257
      // Predicated region
      $region45: #{tpu_custom_call.1} parent=5 // pred_check
        _
      $region46: #{tpu_custom_call.1} parent=5 // pred_check_branch
        %260 = sbr.rel (%p257) target = $region48
      $region47: #{tpu_custom_call.1} parent=5 // pred_region
        %s261 = ssub.s32 %s19, 1
        %s262 = sand.u32 %s32, 1
        %s263 = scalar_lea.sflag [#allocation5], %s262
        %s264 = sand.u32 %s32, 1
        %s265 = smul.addr %s264, 64
        %s266 = scalar_lea.vmem [#allocation4], %s265
        // Predicated region
        $region49: #{tpu_custom_call.1} parent=47 // pred_check
          %p267 = pneg %p45
        $region50: #{tpu_custom_call.1} parent=47 // pred_check_branch
          %269 = sbr.rel (%p267) target = $region52
        $region51: #{tpu_custom_call.1} parent=47 // pred_region
          %270 = dma.done %s263, 1024
        $region52: #{tpu_custom_call.1} parent=47 // pred_fallthru
          _
        %s271 = sand.u32 %s32, 1
        %s272 = scalar_lea.sflag [#allocation5], %s271
        %s273 = sand.u32 %s32, 1
        %s274 = smul.addr %s273, 64
        %s275 = scalar_lea.vmem [#allocation4], %s274
        %p276 = pneg %p45
        %p277 = pneg %p42
        %p278 = pneg %p66
        %p279 = pneg %p63
        %p280 = pneg %p87
        %p281 = pneg %p84
        %p282 = pneg %p108
        %p283 = pneg %p105
        %p284 = pneg %p129
        %p285 = pneg %p126
        %p286 = pneg %p150
        %p287 = pneg %p147
        %p288 = pneg %p171
        %p289 = pneg %p168
        %p290 = pneg %p197
        %p291 = pneg %p194
        %s292 = sand.u32 %s184, 1
        %s293 = scalar_lea.sflag [#allocation6], %s292
        %s294 = sand.u32 %s184, 1
        %s295 = smul.addr %s294, 16
        %s296 = scalar_lea.vmem [#allocation7], %s295
        %vm297 = vcmask 146432
        %298 = vst.msk [vmem:[#allocation2] sm:$0xff] %vm297, 0.0
        %299 = vst.msk [vmem:[#allocation2 + $0x8] sm:$0xff] %vm297, 0.0
        %vm300 = vcmask 140288
        %301 = vst.msk [vmem:[#allocation2 + $0x10] sm:$0x3] %vm300, 0.0
        %302 = vst.msk [vmem:[#allocation2 + $0x18] sm:$0xff] %vm297, 0.0
        %303 = vst.msk [vmem:[#allocation2 + $0x20] sm:$0xff] %vm297, 0.0
        %304 = vst.msk [vmem:[#allocation2 + $0x28] sm:$0x3] %vm300, 0.0
        %305 = vst.msk [vmem:[#allocation2 + $0x30] sm:$0xff] %vm297, 0.0
        %306 = vst.msk [vmem:[#allocation2 + $0x38] sm:$0xff] %vm297, 0.0
        %307 = vst.msk [vmem:[#allocation2 + $0x40] sm:$0x3] %vm300, 0.0
        %308 = vst.msk [vmem:[#allocation2 + $0x48] sm:$0xff] %vm297, 0.0
        %309 = vst.msk [vmem:[#allocation2 + $0x50] sm:$0xff] %vm297, 0.0
        %310 = vst.msk [vmem:[#allocation2 + $0x58] sm:$0x3] %vm300, 0.0
        %v311 = vld [vmem:[%s266] sm:$0xff]
        %v312 = vld [vmem:[%s266 + $0x8] sm:$0xff]
        %v313 = vld [vmem:[%s266 + $0x10] sm:$0xff]
        %v314 = vld [vmem:[%s266 + $0x18] sm:$0xff]
        %v315 = vld [vmem:[%s266 + $0x20] sm:$0xff]
        %v316 = vld [vmem:[%s266 + $0x28] sm:$0xff]
        %v317 = vld [vmem:[%s266 + $0x30] sm:$0xff]
        %v318 = vld [vmem:[%s266 + $0x38] sm:$0xff]
        %327 = vrot.lane.b32.xlu0 %v311, 1
        %v328 = vpop.permute.xlu0 %327
        %329 = vrot.lane.b32.xlu0 %v312, 1
        %v330 = vpop.permute.xlu0 %329
        %331 = vrot.lane.b32.xlu0 %v313, 1
        %v332 = vpop.permute.xlu0 %331
        %333 = vrot.lane.b32.xlu0 %v314, 1
        %v334 = vpop.permute.xlu0 %333
        %335 = vrot.lane.b32.xlu0 %v315, 1
        %v336 = vpop.permute.xlu0 %335
        %337 = vrot.lane.b32.xlu0 %v316, 1
        %v338 = vpop.permute.xlu0 %337
        %339 = vrot.lane.b32.xlu0 %v317, 1
        %v340 = vpop.permute.xlu0 %339
        %341 = vrot.lane.b32.xlu0 %v318, 1
        %v342 = vpop.permute.xlu0 %341
        %vm351 = vcmask 138248
        %352 = vst.msk [vmem:[#allocation2 + $0x1] sm:$0xff] %vm351, %v328
        %353 = vst.msk [vmem:[#allocation2 + $0x9] sm:$0xff] %vm351, %v330
        %354 = vst.msk [vmem:[#allocation2 + $0x19] sm:$0xff] %vm351, %v332
        %355 = vst.msk [vmem:[#allocation2 + $0x21] sm:$0xff] %vm351, %v334
        %356 = vst.msk [vmem:[#allocation2 + $0x31] sm:$0xff] %vm351, %v336
        %357 = vst.msk [vmem:[#allocation2 + $0x39] sm:$0xff] %vm351, %v338
        %358 = vst.msk [vmem:[#allocation2 + $0x49] sm:$0xff] %vm351, %v340
        %359 = vst.msk [vmem:[#allocation2 + $0x51] sm:$0xff] %vm351, %v342
        %v360 = vld [vmem:[#allocation2] sm:$0xff]
        %v361 = vld [vmem:[#allocation2 + $0x8] sm:$0xff]
        %v362 = vld [vmem:[#allocation2 + $0x10] sm:$0x3]
        %v363 = vld [vmem:[#allocation2 + $0x18] sm:$0xff]
        %v364 = vld [vmem:[#allocation2 + $0x20] sm:$0xff]
        %v365 = vld [vmem:[#allocation2 + $0x28] sm:$0x3]
        %v366 = vld [vmem:[#allocation2 + $0x30] sm:$0xff]
        %v367 = vld [vmem:[#allocation2 + $0x38] sm:$0xff]
        %v368 = vld [vmem:[#allocation2 + $0x40] sm:$0x3]
        %v369 = vld [vmem:[#allocation2 + $0x48] sm:$0xff]
        %v370 = vld [vmem:[#allocation2 + $0x50] sm:$0xff]
        %v371 = vld [vmem:[#allocation2 + $0x58] sm:$0x3]
        %v372 = vcombine.low %v360, %v366
        %v373 = vcombine.high %v360, %v366
        %v375 = vunpack.c.l.s4 1983009808
        %v376 = vunpack.c.0.s8 %v375
        %v377 = vlaneseq
        %v378 = vshrl.u32 %v377, 7
        %v379 = vsub.s32 %v376, %v378
        %v380 = vrot.slane %v372, %v379
        %v382 = vunpack.c.l.s4 1983009808
        %v383 = vunpack.c.0.s8 %v382
        %v384 = vlaneseq
        %v385 = vshrl.u32 %v384, 7
        %v386 = vsub.s32 %v383, %v385
        %v387 = vrot.slane %v373, %v386
        %v388 = vcombine.low %v363, %v369
        %v389 = vcombine.high %v363, %v369
        %v391 = vunpack.c.l.s4 1983009808
        %v392 = vunpack.c.0.s8 %v391
        %v393 = vlaneseq
        %v394 = vshrl.u32 %v393, 7
        %v395 = vsub.s32 %v392, %v394
        %v396 = vrot.slane %v388, %v395
        %v398 = vunpack.c.l.s4 1983009808
        %v399 = vunpack.c.0.s8 %v398
        %v400 = vlaneseq
        %v401 = vshrl.u32 %v400, 7
        %v402 = vsub.s32 %v399, %v401
        %v403 = vrot.slane %v389, %v402
        %v404 = vcombine.low %v380, %v396
        %v405 = vcombine.high %v380, %v396
        %v407 = vunpack.c.l.s4 1934713408
        %v408 = vunpack.c.0.s8 %v407
        %v409 = vlaneseq
        %v410 = vshrl.u32 %v409, 7
        %v411 = vsub.s32 %v408, %v410
        %v412 = vrot.slane %v404, %v411
        %v414 = vunpack.c.l.s4 1934713408
        %v415 = vunpack.c.0.s8 %v414
        %v416 = vlaneseq
        %v417 = vshrl.u32 %v416, 7
        %v418 = vsub.s32 %v415, %v417
        %v419 = vrot.slane %v405, %v418
        %v420 = vcombine.low %v387, %v403
        %v421 = vcombine.high %v387, %v403
        %v423 = vunpack.c.l.s4 1934713408
        %v424 = vunpack.c.0.s8 %v423
        %v425 = vlaneseq
        %v426 = vshrl.u32 %v425, 7
        %v427 = vsub.s32 %v424, %v426
        %v428 = vrot.slane %v420, %v427
        %v430 = vunpack.c.l.s4 1934713408
        %v431 = vunpack.c.0.s8 %v430
        %v432 = vlaneseq
        %v433 = vshrl.u32 %v432, 7
        %v434 = vsub.s32 %v431, %v433
        %v435 = vrot.slane %v421, %v434
        %v436 = vcombine.high %v412, 0.0
        %v437 = vcombine.high %v419, 0.0
        %v438 = vcombine.high %v428, 0.0
        %v439 = vcombine.high %v435, 0.0
        %v440 = vcombine.low %v361, %v367
        %v441 = vcombine.high %v361, %v367
        %v443 = vunpack.c.l.s4 1983009808
        %v444 = vunpack.c.0.s8 %v443
        %v445 = vlaneseq
        %v446 = vshrl.u32 %v445, 7
        %v447 = vsub.s32 %v444, %v446
        %v448 = vrot.slane %v440, %v447
        %v450 = vunpack.c.l.s4 1983009808
        %v451 = vunpack.c.0.s8 %v450
        %v452 = vlaneseq
        %v453 = vshrl.u32 %v452, 7
        %v454 = vsub.s32 %v451, %v453
        %v455 = vrot.slane %v441, %v454
        %v456 = vcombine.low %v364, %v370
        %v457 = vcombine.high %v364, %v370
        %v459 = vunpack.c.l.s4 1983009808
        %v460 = vunpack.c.0.s8 %v459
        %v461 = vlaneseq
        %v462 = vshrl.u32 %v461, 7
        %v463 = vsub.s32 %v460, %v462
        %v464 = vrot.slane %v456, %v463
        %v466 = vunpack.c.l.s4 1983009808
        %v467 = vunpack.c.0.s8 %v466
        %v468 = vlaneseq
        %v469 = vshrl.u32 %v468, 7
        %v470 = vsub.s32 %v467, %v469
        %v471 = vrot.slane %v457, %v470
        %v472 = vcombine.low %v448, %v464
        %v473 = vcombine.high %v448, %v464
        %v475 = vunpack.c.l.s4 1934713408
        %v476 = vunpack.c.0.s8 %v475
        %v477 = vlaneseq
        %v478 = vshrl.u32 %v477, 7
        %v479 = vsub.s32 %v476, %v478
        %v480 = vrot.slane %v472, %v479
        %v482 = vunpack.c.l.s4 1934713408
        %v483 = vunpack.c.0.s8 %v482
        %v484 = vlaneseq
        %v485 = vshrl.u32 %v484, 7
        %v486 = vsub.s32 %v483, %v485
        %v487 = vrot.slane %v473, %v486
        %v488 = vcombine.low %v455, %v471
        %v489 = vcombine.high %v455, %v471
        %v491 = vunpack.c.l.s4 1934713408
        %v492 = vunpack.c.0.s8 %v491
        %v493 = vlaneseq
        %v494 = vshrl.u32 %v493, 7
        %v495 = vsub.s32 %v492, %v494
        %v496 = vrot.slane %v488, %v495
        %v498 = vunpack.c.l.s4 1934713408
        %v499 = vunpack.c.0.s8 %v498
        %v500 = vlaneseq
        %v501 = vshrl.u32 %v500, 7
        %v502 = vsub.s32 %v499, %v501
        %v503 = vrot.slane %v489, %v502
        %v504 = vcombine.high %v480, 0.0
        %v505 = vcombine.high %v487, 0.0
        %v506 = vcombine.high %v496, 0.0
        %v507 = vcombine.high %v503, 0.0
        %509 = vrot.lane.b32.xlu0 %v436, 16
        %v510 = vpop.permute.xlu0 %509
        %513 = vrot.lane.b32.xlu0 %v419, 32
        %v514 = vpop.permute.xlu0 %513
        %517 = vrot.lane.b32.xlu0 %v437, 48
        %v518 = vpop.permute.xlu0 %517
        %521 = vrot.lane.b32.xlu0 %v428, 64
        %v522 = vpop.permute.xlu0 %521
        %525 = vrot.lane.b32.xlu0 %v438, 80
        %v526 = vpop.permute.xlu0 %525
        %529 = vrot.lane.b32.xlu0 %v435, 96
        %v530 = vpop.permute.xlu0 %529
        %533 = vrot.lane.b32.xlu0 %v439, 112
        %v534 = vpop.permute.xlu0 %533
        %537 = vrot.lane.b32.xlu0 %v504, 16
        %v538 = vpop.permute.xlu0 %537
        %541 = vrot.lane.b32.xlu0 %v487, 32
        %v542 = vpop.permute.xlu0 %541
        %545 = vrot.lane.b32.xlu0 %v505, 48
        %v546 = vpop.permute.xlu0 %545
        %549 = vrot.lane.b32.xlu0 %v496, 64
        %v550 = vpop.permute.xlu0 %549
        %553 = vrot.lane.b32.xlu0 %v506, 80
        %v554 = vpop.permute.xlu0 %553
        %557 = vrot.lane.b32.xlu0 %v503, 96
        %v558 = vpop.permute.xlu0 %557
        %561 = vrot.lane.b32.xlu0 %v507, 112
        %v562 = vpop.permute.xlu0 %561
        %vm564 = vcmask 130048
        %v565 = vsel %vm564, %v412, %v510
        %vm566 = vcmask 261120
        %v567 = vsel %vm566, %v565, %v514
        %vm568 = vcmask 392192
        %v569 = vsel %vm568, %v567, %v518
        %vm570 = vcmask 523264
        %v571 = vsel %vm570, %v569, %v522
        %vm572 = vcmask 654336
        %v573 = vsel %vm572, %v571, %v526
        %vm574 = vcmask 785408
        %v575 = vsel %vm574, %v573, %v530
        %vm576 = vcmask 916480
        %v577 = vsel %vm576, %v575, %v534
        %v578 = vsel %vm564, %v480, %v538
        %v579 = vsel %vm566, %v578, %v542
        %v580 = vsel %vm568, %v579, %v546
        %v581 = vsel %vm570, %v580, %v550
        %v582 = vsel %vm572, %v581, %v554
        %v583 = vsel %vm574, %v582, %v558
        %v584 = vsel %vm576, %v583, %v562
        %593 = vrot.lane.b32.xlu0 %v360, 127
        %v594 = vpop.permute.xlu0 %593
        %595 = vrot.lane.b32.xlu0 %v361, 127
        %v596 = vpop.permute.xlu0 %595
        %597 = vrot.lane.b32.xlu0 %v363, 127
        %v598 = vpop.permute.xlu0 %597
        %599 = vrot.lane.b32.xlu0 %v364, 127
        %v600 = vpop.permute.xlu0 %599
        %601 = vrot.lane.b32.xlu0 %v366, 127
        %v602 = vpop.permute.xlu0 %601
        %603 = vrot.lane.b32.xlu0 %v367, 127
        %v604 = vpop.permute.xlu0 %603
        %605 = vrot.lane.b32.xlu0 %v369, 127
        %v606 = vpop.permute.xlu0 %605
        %607 = vrot.lane.b32.xlu0 %v370, 127
        %v608 = vpop.permute.xlu0 %607
        %v617 = vcombine.low %v594, %v602
        %v618 = vcombine.high %v594, %v602
        %v620 = vunpack.c.l.s4 1983009808
        %v621 = vunpack.c.0.s8 %v620
        %v622 = vlaneseq
        %v623 = vshrl.u32 %v622, 7
        %v624 = vsub.s32 %v621, %v623
        %v625 = vrot.slane %v617, %v624
        %v627 = vunpack.c.l.s4 1983009808
        %v628 = vunpack.c.0.s8 %v627
        %v629 = vlaneseq
        %v630 = vshrl.u32 %v629, 7
        %v631 = vsub.s32 %v628, %v630
        %v632 = vrot.slane %v618, %v631
        %v633 = vcombine.low %v598, %v606
        %v634 = vcombine.high %v598, %v606
        %v636 = vunpack.c.l.s4 1983009808
        %v637 = vunpack.c.0.s8 %v636
        %v638 = vlaneseq
        %v639 = vshrl.u32 %v638, 7
        %v640 = vsub.s32 %v637, %v639
        %v641 = vrot.slane %v633, %v640
        %v643 = vunpack.c.l.s4 1983009808
        %v644 = vunpack.c.0.s8 %v643
        %v645 = vlaneseq
        %v646 = vshrl.u32 %v645, 7
        %v647 = vsub.s32 %v644, %v646
        %v648 = vrot.slane %v634, %v647
        %v649 = vcombine.low %v625, %v641
        %v650 = vcombine.high %v625, %v641
        %v652 = vunpack.c.l.s4 1934713408
        %v653 = vunpack.c.0.s8 %v652
        %v654 = vlaneseq
        %v655 = vshrl.u32 %v654, 7
        %v656 = vsub.s32 %v653, %v655
        %v657 = vrot.slane %v649, %v656
        %v659 = vunpack.c.l.s4 1934713408
        %v660 = vunpack.c.0.s8 %v659
        %v661 = vlaneseq
        %v662 = vshrl.u32 %v661, 7
        %v663 = vsub.s32 %v660, %v662
        %v664 = vrot.slane %v650, %v663
        %v665 = vcombine.low %v632, %v648
        %v666 = vcombine.high %v632, %v648
        %v668 = vunpack.c.l.s4 1934713408
        %v669 = vunpack.c.0.s8 %v668
        %v670 = vlaneseq
        %v671 = vshrl.u32 %v670, 7
        %v672 = vsub.s32 %v669, %v671
        %v673 = vrot.slane %v665, %v672
        %v675 = vunpack.c.l.s4 1934713408
        %v676 = vunpack.c.0.s8 %v675
        %v677 = vlaneseq
        %v678 = vshrl.u32 %v677, 7
        %v679 = vsub.s32 %v676, %v678
        %v680 = vrot.slane %v666, %v679
        %v681 = vcombine.high %v657, 0.0
        %v682 = vcombine.high %v664, 0.0
        %v683 = vcombine.high %v673, 0.0
        %v684 = vcombine.high %v680, 0.0
        %v685 = vcombine.low %v596, %v604
        %v686 = vcombine.high %v596, %v604
        %v688 = vunpack.c.l.s4 1983009808
        %v689 = vunpack.c.0.s8 %v688
        %v690 = vlaneseq
        %v691 = vshrl.u32 %v690, 7
        %v692 = vsub.s32 %v689, %v691
        %v693 = vrot.slane %v685, %v692
        %v695 = vunpack.c.l.s4 1983009808
        %v696 = vunpack.c.0.s8 %v695
        %v697 = vlaneseq
        %v698 = vshrl.u32 %v697, 7
        %v699 = vsub.s32 %v696, %v698
        %v700 = vrot.slane %v686, %v699
        %v701 = vcombine.low %v600, %v608
        %v702 = vcombine.high %v600, %v608
        %v704 = vunpack.c.l.s4 1983009808
        %v705 = vunpack.c.0.s8 %v704
        %v706 = vlaneseq
        %v707 = vshrl.u32 %v706, 7
        %v708 = vsub.s32 %v705, %v707
        %v709 = vrot.slane %v701, %v708
        %v711 = vunpack.c.l.s4 1983009808
        %v712 = vunpack.c.0.s8 %v711
        %v713 = vlaneseq
        %v714 = vshrl.u32 %v713, 7
        %v715 = vsub.s32 %v712, %v714
        %v716 = vrot.slane %v702, %v715
        %v717 = vcombine.low %v693, %v709
        %v718 = vcombine.high %v693, %v709
        %v720 = vunpack.c.l.s4 1934713408
        %v721 = vunpack.c.0.s8 %v720
        %v722 = vlaneseq
        %v723 = vshrl.u32 %v722, 7
        %v724 = vsub.s32 %v721, %v723
        %v725 = vrot.slane %v717, %v724
        %v727 = vunpack.c.l.s4 1934713408
        %v728 = vunpack.c.0.s8 %v727
        %v729 = vlaneseq
        %v730 = vshrl.u32 %v729, 7
        %v731 = vsub.s32 %v728, %v730
        %v732 = vrot.slane %v718, %v731
        %v733 = vcombine.low %v700, %v716
        %v734 = vcombine.high %v700, %v716
        %v736 = vunpack.c.l.s4 1934713408
        %v737 = vunpack.c.0.s8 %v736
        %v738 = vlaneseq
        %v739 = vshrl.u32 %v738, 7
        %v740 = vsub.s32 %v737, %v739
        %v741 = vrot.slane %v733, %v740
        %v743 = vunpack.c.l.s4 1934713408
        %v744 = vunpack.c.0.s8 %v743
        %v745 = vlaneseq
        %v746 = vshrl.u32 %v745, 7
        %v747 = vsub.s32 %v744, %v746
        %v748 = vrot.slane %v734, %v747
        %v749 = vcombine.high %v725, 0.0
        %v750 = vcombine.high %v732, 0.0
        %v751 = vcombine.high %v741, 0.0
        %v752 = vcombine.high %v748, 0.0
        %754 = vrot.lane.b32.xlu0 %v681, 16
        %v755 = vpop.permute.xlu0 %754
        %758 = vrot.lane.b32.xlu0 %v664, 32
        %v759 = vpop.permute.xlu0 %758
        %762 = vrot.lane.b32.xlu0 %v682, 48
        %v763 = vpop.permute.xlu0 %762
        %766 = vrot.lane.b32.xlu0 %v673, 64
        %v767 = vpop.permute.xlu0 %766
        %770 = vrot.lane.b32.xlu0 %v683, 80
        %v771 = vpop.permute.xlu0 %770
        %774 = vrot.lane.b32.xlu0 %v680, 96
        %v775 = vpop.permute.xlu0 %774
        %778 = vrot.lane.b32.xlu0 %v684, 112
        %v779 = vpop.permute.xlu0 %778
        %782 = vrot.lane.b32.xlu0 %v749, 16
        %v783 = vpop.permute.xlu0 %782
        %786 = vrot.lane.b32.xlu0 %v732, 32
        %v787 = vpop.permute.xlu0 %786
        %790 = vrot.lane.b32.xlu0 %v750, 48
        %v791 = vpop.permute.xlu0 %790
        %794 = vrot.lane.b32.xlu0 %v741, 64
        %v795 = vpop.permute.xlu0 %794
        %798 = vrot.lane.b32.xlu0 %v751, 80
        %v799 = vpop.permute.xlu0 %798
        %802 = vrot.lane.b32.xlu0 %v748, 96
        %v803 = vpop.permute.xlu0 %802
        %806 = vrot.lane.b32.xlu0 %v752, 112
        %v807 = vpop.permute.xlu0 %806
        %v809 = vsel %vm564, %v657, %v755
        %v810 = vsel %vm566, %v809, %v759
        %v811 = vsel %vm568, %v810, %v763
        %v812 = vsel %vm570, %v811, %v767
        %v813 = vsel %vm572, %v812, %v771
        %v814 = vsel %vm574, %v813, %v775
        %v815 = vsel %vm576, %v814, %v779
        %v816 = vsel %vm564, %v725, %v783
        %v817 = vsel %vm566, %v816, %v787
        %v818 = vsel %vm568, %v817, %v791
        %v819 = vsel %vm570, %v818, %v795
        %v820 = vsel %vm572, %v819, %v799
        %v821 = vsel %vm574, %v820, %v803
        %v822 = vsel %vm576, %v821, %v807
        %823 = vrot.lane.b32.xlu0 %v360, 126
        %v824 = vpop.permute.xlu0 %823
        %825 = vrot.lane.b32.xlu0 %v361, 126
        %v826 = vpop.permute.xlu0 %825
        %827 = vrot.lane.b32.xlu0 %v363, 126
        %v828 = vpop.permute.xlu0 %827
        %829 = vrot.lane.b32.xlu0 %v364, 126
        %v830 = vpop.permute.xlu0 %829
        %831 = vrot.lane.b32.xlu0 %v366, 126
        %v832 = vpop.permute.xlu0 %831
        %833 = vrot.lane.b32.xlu0 %v367, 126
        %v834 = vpop.permute.xlu0 %833
        %835 = vrot.lane.b32.xlu0 %v369, 126
        %v836 = vpop.permute.xlu0 %835
        %837 = vrot.lane.b32.xlu0 %v370, 126
        %v838 = vpop.permute.xlu0 %837
        %v847 = vcombine.low %v824, %v832
        %v848 = vcombine.high %v824, %v832
        %v850 = vunpack.c.l.s4 1983009808
        %v851 = vunpack.c.0.s8 %v850
        %v852 = vlaneseq
        %v853 = vshrl.u32 %v852, 7
        %v854 = vsub.s32 %v851, %v853
        %v855 = vrot.slane %v847, %v854
        %v857 = vunpack.c.l.s4 1983009808
        %v858 = vunpack.c.0.s8 %v857
        %v859 = vlaneseq
        %v860 = vshrl.u32 %v859, 7
        %v861 = vsub.s32 %v858, %v860
        %v862 = vrot.slane %v848, %v861
        %v863 = vcombine.low %v828, %v836
        %v864 = vcombine.high %v828, %v836
        %v866 = vunpack.c.l.s4 1983009808
        %v867 = vunpack.c.0.s8 %v866
        %v868 = vlaneseq
        %v869 = vshrl.u32 %v868, 7
        %v870 = vsub.s32 %v867, %v869
        %v871 = vrot.slane %v863, %v870
        %v873 = vunpack.c.l.s4 1983009808
        %v874 = vunpack.c.0.s8 %v873
        %v875 = vlaneseq
        %v876 = vshrl.u32 %v875, 7
        %v877 = vsub.s32 %v874, %v876
        %v878 = vrot.slane %v864, %v877
        %v879 = vcombine.low %v855, %v871
        %v880 = vcombine.high %v855, %v871
        %v882 = vunpack.c.l.s4 1934713408
        %v883 = vunpack.c.0.s8 %v882
        %v884 = vlaneseq
        %v885 = vshrl.u32 %v884, 7
        %v886 = vsub.s32 %v883, %v885
        %v887 = vrot.slane %v879, %v886
        %v889 = vunpack.c.l.s4 1934713408
        %v890 = vunpack.c.0.s8 %v889
        %v891 = vlaneseq
        %v892 = vshrl.u32 %v891, 7
        %v893 = vsub.s32 %v890, %v892
        %v894 = vrot.slane %v880, %v893
        %v895 = vcombine.low %v862, %v878
        %v896 = vcombine.high %v862, %v878
        %v898 = vunpack.c.l.s4 1934713408
        %v899 = vunpack.c.0.s8 %v898
        %v900 = vlaneseq
        %v901 = vshrl.u32 %v900, 7
        %v902 = vsub.s32 %v899, %v901
        %v903 = vrot.slane %v895, %v902
        %v905 = vunpack.c.l.s4 1934713408
        %v906 = vunpack.c.0.s8 %v905
        %v907 = vlaneseq
        %v908 = vshrl.u32 %v907, 7
        %v909 = vsub.s32 %v906, %v908
        %v910 = vrot.slane %v896, %v909
        %v911 = vcombine.high %v887, 0.0
        %v912 = vcombine.high %v894, 0.0
        %v913 = vcombine.high %v903, 0.0
        %v914 = vcombine.high %v910, 0.0
        %v915 = vcombine.low %v826, %v834
        %v916 = vcombine.high %v826, %v834
        %v918 = vunpack.c.l.s4 1983009808
        %v919 = vunpack.c.0.s8 %v918
        %v920 = vlaneseq
        %v921 = vshrl.u32 %v920, 7
        %v922 = vsub.s32 %v919, %v921
        %v923 = vrot.slane %v915, %v922
        %v925 = vunpack.c.l.s4 1983009808
        %v926 = vunpack.c.0.s8 %v925
        %v927 = vlaneseq
        %v928 = vshrl.u32 %v927, 7
        %v929 = vsub.s32 %v926, %v928
        %v930 = vrot.slane %v916, %v929
        %v931 = vcombine.low %v830, %v838
        %v932 = vcombine.high %v830, %v838
        %v934 = vunpack.c.l.s4 1983009808
        %v935 = vunpack.c.0.s8 %v934
        %v936 = vlaneseq
        %v937 = vshrl.u32 %v936, 7
        %v938 = vsub.s32 %v935, %v937
        %v939 = vrot.slane %v931, %v938
        %v941 = vunpack.c.l.s4 1983009808
        %v942 = vunpack.c.0.s8 %v941
        %v943 = vlaneseq
        %v944 = vshrl.u32 %v943, 7
        %v945 = vsub.s32 %v942, %v944
        %v946 = vrot.slane %v932, %v945
        %v947 = vcombine.low %v923, %v939
        %v948 = vcombine.high %v923, %v939
        %v950 = vunpack.c.l.s4 1934713408
        %v951 = vunpack.c.0.s8 %v950
        %v952 = vlaneseq
        %v953 = vshrl.u32 %v952, 7
        %v954 = vsub.s32 %v951, %v953
        %v955 = vrot.slane %v947, %v954
        %v957 = vunpack.c.l.s4 1934713408
        %v958 = vunpack.c.0.s8 %v957
        %v959 = vlaneseq
        %v960 = vshrl.u32 %v959, 7
        %v961 = vsub.s32 %v958, %v960
        %v962 = vrot.slane %v948, %v961
        %v963 = vcombine.low %v930, %v946
        %v964 = vcombine.high %v930, %v946
        %v966 = vunpack.c.l.s4 1934713408
        %v967 = vunpack.c.0.s8 %v966
        %v968 = vlaneseq
        %v969 = vshrl.u32 %v968, 7
        %v970 = vsub.s32 %v967, %v969
        %v971 = vrot.slane %v963, %v970
        %v973 = vunpack.c.l.s4 1934713408
        %v974 = vunpack.c.0.s8 %v973
        %v975 = vlaneseq
        %v976 = vshrl.u32 %v975, 7
        %v977 = vsub.s32 %v974, %v976
        %v978 = vrot.slane %v964, %v977
        %v979 = vcombine.high %v955, 0.0
        %v980 = vcombine.high %v962, 0.0
        %v981 = vcombine.high %v971, 0.0
        %v982 = vcombine.high %v978, 0.0
        %984 = vrot.lane.b32.xlu0 %v911, 16
        %v985 = vpop.permute.xlu0 %984
        %988 = vrot.lane.b32.xlu0 %v894, 32
        %v989 = vpop.permute.xlu0 %988
        %992 = vrot.lane.b32.xlu0 %v912, 48
        %v993 = vpop.permute.xlu0 %992
        %996 = vrot.lane.b32.xlu0 %v903, 64
        %v997 = vpop.permute.xlu0 %996
        %1000 = vrot.lane.b32.xlu0 %v913, 80
        %v1001 = vpop.permute.xlu0 %1000
        %1004 = vrot.lane.b32.xlu0 %v910, 96
        %v1005 = vpop.permute.xlu0 %1004
        %1008 = vrot.lane.b32.xlu0 %v914, 112
        %v1009 = vpop.permute.xlu0 %1008
        %1012 = vrot.lane.b32.xlu0 %v979, 16
        %v1013 = vpop.permute.xlu0 %1012
        %1016 = vrot.lane.b32.xlu0 %v962, 32
        %v1017 = vpop.permute.xlu0 %1016
        %1020 = vrot.lane.b32.xlu0 %v980, 48
        %v1021 = vpop.permute.xlu0 %1020
        %1024 = vrot.lane.b32.xlu0 %v971, 64
        %v1025 = vpop.permute.xlu0 %1024
        %1028 = vrot.lane.b32.xlu0 %v981, 80
        %v1029 = vpop.permute.xlu0 %1028
        %1032 = vrot.lane.b32.xlu0 %v978, 96
        %v1033 = vpop.permute.xlu0 %1032
        %1036 = vrot.lane.b32.xlu0 %v982, 112
        %v1037 = vpop.permute.xlu0 %1036
        %v1039 = vsel %vm564, %v887, %v985
        %v1040 = vsel %vm566, %v1039, %v989
        %v1041 = vsel %vm568, %v1040, %v993
        %v1042 = vsel %vm570, %v1041, %v997
        %v1043 = vsel %vm572, %v1042, %v1001
        %v1044 = vsel %vm574, %v1043, %v1005
        %v1045 = vsel %vm576, %v1044, %v1009
        %v1046 = vsel %vm564, %v955, %v1013
        %v1047 = vsel %vm566, %v1046, %v1017
        %v1048 = vsel %vm568, %v1047, %v1021
        %v1049 = vsel %vm570, %v1048, %v1025
        %v1050 = vsel %vm572, %v1049, %v1029
        %v1051 = vsel %vm574, %v1050, %v1033
        %v1052 = vsel %vm576, %v1051, %v1037
        %vm1057 = vcmask 1046528
        %v1058 = vrot.slane %v360, 1
        %v1059 = vrot.slane %v361, 1
        %v1060 = vsel %vm1057, %v1058, %v1059
        %v1061 = vrot.slane %v362, 1
        %v1062 = vsel %vm1057, %v1059, %v1061
        %v1063 = vrot.slane %v363, 1
        %v1064 = vrot.slane %v364, 1
        %v1065 = vsel %vm1057, %v1063, %v1064
        %v1066 = vrot.slane %v365, 1
        %v1067 = vsel %vm1057, %v1064, %v1066
        %v1068 = vrot.slane %v366, 1
        %v1069 = vrot.slane %v367, 1
        %v1070 = vsel %vm1057, %v1068, %v1069
        %v1071 = vrot.slane %v368, 1
        %v1072 = vsel %vm1057, %v1069, %v1071
        %v1073 = vrot.slane %v369, 1
        %v1074 = vrot.slane %v370, 1
        %v1075 = vsel %vm1057, %v1073, %v1074
        %v1076 = vrot.slane %v371, 1
        %v1077 = vsel %vm1057, %v1074, %v1076
        %v1086 = vcombine.low %v1060, %v1070
        %v1087 = vcombine.high %v1060, %v1070
        %v1089 = vunpack.c.l.s4 1983009808
        %v1090 = vunpack.c.0.s8 %v1089
        %v1091 = vlaneseq
        %v1092 = vshrl.u32 %v1091, 7
        %v1093 = vsub.s32 %v1090, %v1092
        %v1094 = vrot.slane %v1086, %v1093
        %v1096 = vunpack.c.l.s4 1983009808
        %v1097 = vunpack.c.0.s8 %v1096
        %v1098 = vlaneseq
        %v1099 = vshrl.u32 %v1098, 7
        %v1100 = vsub.s32 %v1097, %v1099
        %v1101 = vrot.slane %v1087, %v1100
        %v1102 = vcombine.low %v1065, %v1075
        %v1103 = vcombine.high %v1065, %v1075
        %v1105 = vunpack.c.l.s4 1983009808
        %v1106 = vunpack.c.0.s8 %v1105
        %v1107 = vlaneseq
        %v1108 = vshrl.u32 %v1107, 7
        %v1109 = vsub.s32 %v1106, %v1108
        %v1110 = vrot.slane %v1102, %v1109
        %v1112 = vunpack.c.l.s4 1983009808
        %v1113 = vunpack.c.0.s8 %v1112
        %v1114 = vlaneseq
        %v1115 = vshrl.u32 %v1114, 7
        %v1116 = vsub.s32 %v1113, %v1115
        %v1117 = vrot.slane %v1103, %v1116
        %v1118 = vcombine.low %v1094, %v1110
        %v1119 = vcombine.high %v1094, %v1110
        %v1121 = vunpack.c.l.s4 1934713408
        %v1122 = vunpack.c.0.s8 %v1121
        %v1123 = vlaneseq
        %v1124 = vshrl.u32 %v1123, 7
        %v1125 = vsub.s32 %v1122, %v1124
        %v1126 = vrot.slane %v1118, %v1125
        %v1128 = vunpack.c.l.s4 1934713408
        %v1129 = vunpack.c.0.s8 %v1128
        %v1130 = vlaneseq
        %v1131 = vshrl.u32 %v1130, 7
        %v1132 = vsub.s32 %v1129, %v1131
        %v1133 = vrot.slane %v1119, %v1132
        %v1134 = vcombine.low %v1101, %v1117
        %v1135 = vcombine.high %v1101, %v1117
        %v1137 = vunpack.c.l.s4 1934713408
        %v1138 = vunpack.c.0.s8 %v1137
        %v1139 = vlaneseq
        %v1140 = vshrl.u32 %v1139, 7
        %v1141 = vsub.s32 %v1138, %v1140
        %v1142 = vrot.slane %v1134, %v1141
        %v1144 = vunpack.c.l.s4 1934713408
        %v1145 = vunpack.c.0.s8 %v1144
        %v1146 = vlaneseq
        %v1147 = vshrl.u32 %v1146, 7
        %v1148 = vsub.s32 %v1145, %v1147
        %v1149 = vrot.slane %v1135, %v1148
        %v1150 = vcombine.high %v1126, 0.0
        %v1151 = vcombine.high %v1133, 0.0
        %v1152 = vcombine.high %v1142, 0.0
        %v1153 = vcombine.high %v1149, 0.0
        %v1154 = vcombine.low %v1062, %v1072
        %v1155 = vcombine.high %v1062, %v1072
        %v1157 = vunpack.c.l.s4 1983009808
        %v1158 = vunpack.c.0.s8 %v1157
        %v1159 = vlaneseq
        %v1160 = vshrl.u32 %v1159, 7
        %v1161 = vsub.s32 %v1158, %v1160
        %v1162 = vrot.slane %v1154, %v1161
        %v1164 = vunpack.c.l.s4 1983009808
        %v1165 = vunpack.c.0.s8 %v1164
        %v1166 = vlaneseq
        %v1167 = vshrl.u32 %v1166, 7
        %v1168 = vsub.s32 %v1165, %v1167
        %v1169 = vrot.slane %v1155, %v1168
        %v1170 = vcombine.low %v1067, %v1077
        %v1171 = vcombine.high %v1067, %v1077
        %v1173 = vunpack.c.l.s4 1983009808
        %v1174 = vunpack.c.0.s8 %v1173
        %v1175 = vlaneseq
        %v1176 = vshrl.u32 %v1175, 7
        %v1177 = vsub.s32 %v1174, %v1176
        %v1178 = vrot.slane %v1170, %v1177
        %v1180 = vunpack.c.l.s4 1983009808
        %v1181 = vunpack.c.0.s8 %v1180
        %v1182 = vlaneseq
        %v1183 = vshrl.u32 %v1182, 7
        %v1184 = vsub.s32 %v1181, %v1183
        %v1185 = vrot.slane %v1171, %v1184
        %v1186 = vcombine.low %v1162, %v1178
        %v1187 = vcombine.high %v1162, %v1178
        %v1189 = vunpack.c.l.s4 1934713408
        %v1190 = vunpack.c.0.s8 %v1189
        %v1191 = vlaneseq
        %v1192 = vshrl.u32 %v1191, 7
        %v1193 = vsub.s32 %v1190, %v1192
        %v1194 = vrot.slane %v1186, %v1193
        %v1196 = vunpack.c.l.s4 1934713408
        %v1197 = vunpack.c.0.s8 %v1196
        %v1198 = vlaneseq
        %v1199 = vshrl.u32 %v1198, 7
        %v1200 = vsub.s32 %v1197, %v1199
        %v1201 = vrot.slane %v1187, %v1200
        %v1202 = vcombine.low %v1169, %v1185
        %v1203 = vcombine.high %v1169, %v1185
        %v1205 = vunpack.c.l.s4 1934713408
        %v1206 = vunpack.c.0.s8 %v1205
        %v1207 = vlaneseq
        %v1208 = vshrl.u32 %v1207, 7
        %v1209 = vsub.s32 %v1206, %v1208
        %v1210 = vrot.slane %v1202, %v1209
        %v1212 = vunpack.c.l.s4 1934713408
        %v1213 = vunpack.c.0.s8 %v1212
        %v1214 = vlaneseq
        %v1215 = vshrl.u32 %v1214, 7
        %v1216 = vsub.s32 %v1213, %v1215
        %v1217 = vrot.slane %v1203, %v1216
        %v1218 = vcombine.high %v1194, 0.0
        %v1219 = vcombine.high %v1201, 0.0
        %v1220 = vcombine.high %v1210, 0.0
        %v1221 = vcombine.high %v1217, 0.0
        %1223 = vrot.lane.b32.xlu0 %v1150, 16
        %v1224 = vpop.permute.xlu0 %1223
        %1227 = vrot.lane.b32.xlu0 %v1133, 32
        %v1228 = vpop.permute.xlu0 %1227
        %1231 = vrot.lane.b32.xlu0 %v1151, 48
        %v1232 = vpop.permute.xlu0 %1231
        %1235 = vrot.lane.b32.xlu0 %v1142, 64
        %v1236 = vpop.permute.xlu0 %1235
        %1239 = vrot.lane.b32.xlu0 %v1152, 80
        %v1240 = vpop.permute.xlu0 %1239
        %1243 = vrot.lane.b32.xlu0 %v1149, 96
        %v1244 = vpop.permute.xlu0 %1243
        %1247 = vrot.lane.b32.xlu0 %v1153, 112
        %v1248 = vpop.permute.xlu0 %1247
        %1251 = vrot.lane.b32.xlu0 %v1218, 16
        %v1252 = vpop.permute.xlu0 %1251
        %1255 = vrot.lane.b32.xlu0 %v1201, 32
        %v1256 = vpop.permute.xlu0 %1255
        %1259 = vrot.lane.b32.xlu0 %v1219, 48
        %v1260 = vpop.permute.xlu0 %1259
        %1263 = vrot.lane.b32.xlu0 %v1210, 64
        %v1264 = vpop.permute.xlu0 %1263
        %1267 = vrot.lane.b32.xlu0 %v1220, 80
        %v1268 = vpop.permute.xlu0 %1267
        %1271 = vrot.lane.b32.xlu0 %v1217, 96
        %v1272 = vpop.permute.xlu0 %1271
        %1275 = vrot.lane.b32.xlu0 %v1221, 112
        %v1276 = vpop.permute.xlu0 %1275
        %v1278 = vsel %vm564, %v1126, %v1224
        %v1279 = vsel %vm566, %v1278, %v1228
        %v1280 = vsel %vm568, %v1279, %v1232
        %v1281 = vsel %vm570, %v1280, %v1236
        %v1282 = vsel %vm572, %v1281, %v1240
        %v1283 = vsel %vm574, %v1282, %v1244
        %v1284 = vsel %vm576, %v1283, %v1248
        %v1285 = vsel %vm564, %v1194, %v1252
        %v1286 = vsel %vm566, %v1285, %v1256
        %v1287 = vsel %vm568, %v1286, %v1260
        %v1288 = vsel %vm570, %v1287, %v1264
        %v1289 = vsel %vm572, %v1288, %v1268
        %v1290 = vsel %vm574, %v1289, %v1272
        %v1291 = vsel %vm576, %v1290, %v1276
        %1292 = vrot.lane.b32.xlu0 %v1060, 127
        %v1293 = vpop.permute.xlu0 %1292
        %1294 = vrot.lane.b32.xlu0 %v1062, 127
        %v1295 = vpop.permute.xlu0 %1294
        %1296 = vrot.lane.b32.xlu0 %v1065, 127
        %v1297 = vpop.permute.xlu0 %1296
        %1298 = vrot.lane.b32.xlu0 %v1067, 127
        %v1299 = vpop.permute.xlu0 %1298
        %1300 = vrot.lane.b32.xlu0 %v1070, 127
        %v1301 = vpop.permute.xlu0 %1300
        %1302 = vrot.lane.b32.xlu0 %v1072, 127
        %v1303 = vpop.permute.xlu0 %1302
        %1304 = vrot.lane.b32.xlu0 %v1075, 127
        %v1305 = vpop.permute.xlu0 %1304
        %1306 = vrot.lane.b32.xlu0 %v1077, 127
        %v1307 = vpop.permute.xlu0 %1306
        %v1316 = vcombine.low %v1293, %v1301
        %v1317 = vcombine.high %v1293, %v1301
        %v1319 = vunpack.c.l.s4 1983009808
        %v1320 = vunpack.c.0.s8 %v1319
        %v1321 = vlaneseq
        %v1322 = vshrl.u32 %v1321, 7
        %v1323 = vsub.s32 %v1320, %v1322
        %v1324 = vrot.slane %v1316, %v1323
        %v1326 = vunpack.c.l.s4 1983009808
        %v1327 = vunpack.c.0.s8 %v1326
        %v1328 = vlaneseq
        %v1329 = vshrl.u32 %v1328, 7
        %v1330 = vsub.s32 %v1327, %v1329
        %v1331 = vrot.slane %v1317, %v1330
        %v1332 = vcombine.low %v1297, %v1305
        %v1333 = vcombine.high %v1297, %v1305
        %v1335 = vunpack.c.l.s4 1983009808
        %v1336 = vunpack.c.0.s8 %v1335
        %v1337 = vlaneseq
        %v1338 = vshrl.u32 %v1337, 7
        %v1339 = vsub.s32 %v1336, %v1338
        %v1340 = vrot.slane %v1332, %v1339
        %v1342 = vunpack.c.l.s4 1983009808
        %v1343 = vunpack.c.0.s8 %v1342
        %v1344 = vlaneseq
        %v1345 = vshrl.u32 %v1344, 7
        %v1346 = vsub.s32 %v1343, %v1345
        %v1347 = vrot.slane %v1333, %v1346
        %v1348 = vcombine.low %v1324, %v1340
        %v1349 = vcombine.high %v1324, %v1340
        %v1351 = vunpack.c.l.s4 1934713408
        %v1352 = vunpack.c.0.s8 %v1351
        %v1353 = vlaneseq
        %v1354 = vshrl.u32 %v1353, 7
        %v1355 = vsub.s32 %v1352, %v1354
        %v1356 = vrot.slane %v1348, %v1355
        %v1358 = vunpack.c.l.s4 1934713408
        %v1359 = vunpack.c.0.s8 %v1358
        %v1360 = vlaneseq
        %v1361 = vshrl.u32 %v1360, 7
        %v1362 = vsub.s32 %v1359, %v1361
        %v1363 = vrot.slane %v1349, %v1362
        %v1364 = vcombine.low %v1331, %v1347
        %v1365 = vcombine.high %v1331, %v1347
        %v1367 = vunpack.c.l.s4 1934713408
        %v1368 = vunpack.c.0.s8 %v1367
        %v1369 = vlaneseq
        %v1370 = vshrl.u32 %v1369, 7
        %v1371 = vsub.s32 %v1368, %v1370
        %v1372 = vrot.slane %v1364, %v1371
        %v1374 = vunpack.c.l.s4 1934713408
        %v1375 = vunpack.c.0.s8 %v1374
        %v1376 = vlaneseq
        %v1377 = vshrl.u32 %v1376, 7
        %v1378 = vsub.s32 %v1375, %v1377
        %v1379 = vrot.slane %v1365, %v1378
        %v1380 = vcombine.high %v1356, 0.0
        %v1381 = vcombine.high %v1363, 0.0
        %v1382 = vcombine.high %v1372, 0.0
        %v1383 = vcombine.high %v1379, 0.0
        %v1384 = vcombine.low %v1295, %v1303
        %v1385 = vcombine.high %v1295, %v1303
        %v1387 = vunpack.c.l.s4 1983009808
        %v1388 = vunpack.c.0.s8 %v1387
        %v1389 = vlaneseq
        %v1390 = vshrl.u32 %v1389, 7
        %v1391 = vsub.s32 %v1388, %v1390
        %v1392 = vrot.slane %v1384, %v1391
        %v1394 = vunpack.c.l.s4 1983009808
        %v1395 = vunpack.c.0.s8 %v1394
        %v1396 = vlaneseq
        %v1397 = vshrl.u32 %v1396, 7
        %v1398 = vsub.s32 %v1395, %v1397
        %v1399 = vrot.slane %v1385, %v1398
        %v1400 = vcombine.low %v1299, %v1307
        %v1401 = vcombine.high %v1299, %v1307
        %v1403 = vunpack.c.l.s4 1983009808
        %v1404 = vunpack.c.0.s8 %v1403
        %v1405 = vlaneseq
        %v1406 = vshrl.u32 %v1405, 7
        %v1407 = vsub.s32 %v1404, %v1406
        %v1408 = vrot.slane %v1400, %v1407
        %v1410 = vunpack.c.l.s4 1983009808
        %v1411 = vunpack.c.0.s8 %v1410
        %v1412 = vlaneseq
        %v1413 = vshrl.u32 %v1412, 7
        %v1414 = vsub.s32 %v1411, %v1413
        %v1415 = vrot.slane %v1401, %v1414
        %v1416 = vcombine.low %v1392, %v1408
        %v1417 = vcombine.high %v1392, %v1408
        %v1419 = vunpack.c.l.s4 1934713408
        %v1420 = vunpack.c.0.s8 %v1419
        %v1421 = vlaneseq
        %v1422 = vshrl.u32 %v1421, 7
        %v1423 = vsub.s32 %v1420, %v1422
        %v1424 = vrot.slane %v1416, %v1423
        %v1426 = vunpack.c.l.s4 1934713408
        %v1427 = vunpack.c.0.s8 %v1426
        %v1428 = vlaneseq
        %v1429 = vshrl.u32 %v1428, 7
        %v1430 = vsub.s32 %v1427, %v1429
        %v1431 = vrot.slane %v1417, %v1430
        %v1432 = vcombine.low %v1399, %v1415
        %v1433 = vcombine.high %v1399, %v1415
        %v1435 = vunpack.c.l.s4 1934713408
        %v1436 = vunpack.c.0.s8 %v1435
        %v1437 = vlaneseq
        %v1438 = vshrl.u32 %v1437, 7
        %v1439 = vsub.s32 %v1436, %v1438
        %v1440 = vrot.slane %v1432, %v1439
        %v1442 = vunpack.c.l.s4 1934713408
        %v1443 = vunpack.c.0.s8 %v1442
        %v1444 = vlaneseq
        %v1445 = vshrl.u32 %v1444, 7
        %v1446 = vsub.s32 %v1443, %v1445
        %v1447 = vrot.slane %v1433, %v1446
        %v1448 = vcombine.high %v1424, 0.0
        %v1449 = vcombine.high %v1431, 0.0
        %v1450 = vcombine.high %v1440, 0.0
        %v1451 = vcombine.high %v1447, 0.0
        %1453 = vrot.lane.b32.xlu0 %v1380, 16
        %v1454 = vpop.permute.xlu0 %1453
        %1457 = vrot.lane.b32.xlu0 %v1363, 32
        %v1458 = vpop.permute.xlu0 %1457
        %1461 = vrot.lane.b32.xlu0 %v1381, 48
        %v1462 = vpop.permute.xlu0 %1461
        %1465 = vrot.lane.b32.xlu0 %v1372, 64
        %v1466 = vpop.permute.xlu0 %1465
        %1469 = vrot.lane.b32.xlu0 %v1382, 80
        %v1470 = vpop.permute.xlu0 %1469
        %1473 = vrot.lane.b32.xlu0 %v1379, 96
        %v1474 = vpop.permute.xlu0 %1473
        %1477 = vrot.lane.b32.xlu0 %v1383, 112
        %v1478 = vpop.permute.xlu0 %1477
        %1481 = vrot.lane.b32.xlu0 %v1448, 16
        %v1482 = vpop.permute.xlu0 %1481
        %1485 = vrot.lane.b32.xlu0 %v1431, 32
        %v1486 = vpop.permute.xlu0 %1485
        %1489 = vrot.lane.b32.xlu0 %v1449, 48
        %v1490 = vpop.permute.xlu0 %1489
        %1493 = vrot.lane.b32.xlu0 %v1440, 64
        %v1494 = vpop.permute.xlu0 %1493
        %1497 = vrot.lane.b32.xlu0 %v1450, 80
        %v1498 = vpop.permute.xlu0 %1497
        %1501 = vrot.lane.b32.xlu0 %v1447, 96
        %v1502 = vpop.permute.xlu0 %1501
        %1505 = vrot.lane.b32.xlu0 %v1451, 112
        %v1506 = vpop.permute.xlu0 %1505
        %v1508 = vsel %vm564, %v1356, %v1454
        %v1509 = vsel %vm566, %v1508, %v1458
        %v1510 = vsel %vm568, %v1509, %v1462
        %v1511 = vsel %vm570, %v1510, %v1466
        %v1512 = vsel %vm572, %v1511, %v1470
        %v1513 = vsel %vm574, %v1512, %v1474
        %v1514 = vsel %vm576, %v1513, %v1478
        %v1515 = vsel %vm564, %v1424, %v1482
        %v1516 = vsel %vm566, %v1515, %v1486
        %v1517 = vsel %vm568, %v1516, %v1490
        %v1518 = vsel %vm570, %v1517, %v1494
        %v1519 = vsel %vm572, %v1518, %v1498
        %v1520 = vsel %vm574, %v1519, %v1502
        %v1521 = vsel %vm576, %v1520, %v1506
        %1522 = vrot.lane.b32.xlu0 %v1060, 126
        %v1523 = vpop.permute.xlu0 %1522
        %1524 = vrot.lane.b32.xlu0 %v1062, 126
        %v1525 = vpop.permute.xlu0 %1524
        %1526 = vrot.lane.b32.xlu0 %v1065, 126
        %v1527 = vpop.permute.xlu0 %1526
        %1528 = vrot.lane.b32.xlu0 %v1067, 126
        %v1529 = vpop.permute.xlu0 %1528
        %1530 = vrot.lane.b32.xlu0 %v1070, 126
        %v1531 = vpop.permute.xlu0 %1530
        %1532 = vrot.lane.b32.xlu0 %v1072, 126
        %v1533 = vpop.permute.xlu0 %1532
        %1534 = vrot.lane.b32.xlu0 %v1075, 126
        %v1535 = vpop.permute.xlu0 %1534
        %1536 = vrot.lane.b32.xlu0 %v1077, 126
        %v1537 = vpop.permute.xlu0 %1536
        %v1546 = vcombine.low %v1523, %v1531
        %v1547 = vcombine.high %v1523, %v1531
        %v1549 = vunpack.c.l.s4 1983009808
        %v1550 = vunpack.c.0.s8 %v1549
        %v1551 = vlaneseq
        %v1552 = vshrl.u32 %v1551, 7
        %v1553 = vsub.s32 %v1550, %v1552
        %v1554 = vrot.slane %v1546, %v1553
        %v1556 = vunpack.c.l.s4 1983009808
        %v1557 = vunpack.c.0.s8 %v1556
        %v1558 = vlaneseq
        %v1559 = vshrl.u32 %v1558, 7
        %v1560 = vsub.s32 %v1557, %v1559
        %v1561 = vrot.slane %v1547, %v1560
        %v1562 = vcombine.low %v1527, %v1535
        %v1563 = vcombine.high %v1527, %v1535
        %v1565 = vunpack.c.l.s4 1983009808
        %v1566 = vunpack.c.0.s8 %v1565
        %v1567 = vlaneseq
        %v1568 = vshrl.u32 %v1567, 7
        %v1569 = vsub.s32 %v1566, %v1568
        %v1570 = vrot.slane %v1562, %v1569
        %v1572 = vunpack.c.l.s4 1983009808
        %v1573 = vunpack.c.0.s8 %v1572
        %v1574 = vlaneseq
        %v1575 = vshrl.u32 %v1574, 7
        %v1576 = vsub.s32 %v1573, %v1575
        %v1577 = vrot.slane %v1563, %v1576
        %v1578 = vcombine.low %v1554, %v1570
        %v1579 = vcombine.high %v1554, %v1570
        %v1581 = vunpack.c.l.s4 1934713408
        %v1582 = vunpack.c.0.s8 %v1581
        %v1583 = vlaneseq
        %v1584 = vshrl.u32 %v1583, 7
        %v1585 = vsub.s32 %v1582, %v1584
        %v1586 = vrot.slane %v1578, %v1585
        %v1588 = vunpack.c.l.s4 1934713408
        %v1589 = vunpack.c.0.s8 %v1588
        %v1590 = vlaneseq
        %v1591 = vshrl.u32 %v1590, 7
        %v1592 = vsub.s32 %v1589, %v1591
        %v1593 = vrot.slane %v1579, %v1592
        %v1594 = vcombine.low %v1561, %v1577
        %v1595 = vcombine.high %v1561, %v1577
        %v1597 = vunpack.c.l.s4 1934713408
        %v1598 = vunpack.c.0.s8 %v1597
        %v1599 = vlaneseq
        %v1600 = vshrl.u32 %v1599, 7
        %v1601 = vsub.s32 %v1598, %v1600
        %v1602 = vrot.slane %v1594, %v1601
        %v1604 = vunpack.c.l.s4 1934713408
        %v1605 = vunpack.c.0.s8 %v1604
        %v1606 = vlaneseq
        %v1607 = vshrl.u32 %v1606, 7
        %v1608 = vsub.s32 %v1605, %v1607
        %v1609 = vrot.slane %v1595, %v1608
        %v1610 = vcombine.high %v1586, 0.0
        %v1611 = vcombine.high %v1593, 0.0
        %v1612 = vcombine.high %v1602, 0.0
        %v1613 = vcombine.high %v1609, 0.0
        %v1614 = vcombine.low %v1525, %v1533
        %v1615 = vcombine.high %v1525, %v1533
        %v1617 = vunpack.c.l.s4 1983009808
        %v1618 = vunpack.c.0.s8 %v1617
        %v1619 = vlaneseq
        %v1620 = vshrl.u32 %v1619, 7
        %v1621 = vsub.s32 %v1618, %v1620
        %v1622 = vrot.slane %v1614, %v1621
        %v1624 = vunpack.c.l.s4 1983009808
        %v1625 = vunpack.c.0.s8 %v1624
        %v1626 = vlaneseq
        %v1627 = vshrl.u32 %v1626, 7
        %v1628 = vsub.s32 %v1625, %v1627
        %v1629 = vrot.slane %v1615, %v1628
        %v1630 = vcombine.low %v1529, %v1537
        %v1631 = vcombine.high %v1529, %v1537
        %v1633 = vunpack.c.l.s4 1983009808
        %v1634 = vunpack.c.0.s8 %v1633
        %v1635 = vlaneseq
        %v1636 = vshrl.u32 %v1635, 7
        %v1637 = vsub.s32 %v1634, %v1636
        %v1638 = vrot.slane %v1630, %v1637
        %v1640 = vunpack.c.l.s4 1983009808
        %v1641 = vunpack.c.0.s8 %v1640
        %v1642 = vlaneseq
        %v1643 = vshrl.u32 %v1642, 7
        %v1644 = vsub.s32 %v1641, %v1643
        %v1645 = vrot.slane %v1631, %v1644
        %v1646 = vcombine.low %v1622, %v1638
        %v1647 = vcombine.high %v1622, %v1638
        %v1649 = vunpack.c.l.s4 1934713408
        %v1650 = vunpack.c.0.s8 %v1649
        %v1651 = vlaneseq
        %v1652 = vshrl.u32 %v1651, 7
        %v1653 = vsub.s32 %v1650, %v1652
        %v1654 = vrot.slane %v1646, %v1653
        %v1656 = vunpack.c.l.s4 1934713408
        %v1657 = vunpack.c.0.s8 %v1656
        %v1658 = vlaneseq
        %v1659 = vshrl.u32 %v1658, 7
        %v1660 = vsub.s32 %v1657, %v1659
        %v1661 = vrot.slane %v1647, %v1660
        %v1662 = vcombine.low %v1629, %v1645
        %v1663 = vcombine.high %v1629, %v1645
        %v1665 = vunpack.c.l.s4 1934713408
        %v1666 = vunpack.c.0.s8 %v1665
        %v1667 = vlaneseq
        %v1668 = vshrl.u32 %v1667, 7
        %v1669 = vsub.s32 %v1666, %v1668
        %v1670 = vrot.slane %v1662, %v1669
        %v1672 = vunpack.c.l.s4 1934713408
        %v1673 = vunpack.c.0.s8 %v1672
        %v1674 = vlaneseq
        %v1675 = vshrl.u32 %v1674, 7
        %v1676 = vsub.s32 %v1673, %v1675
        %v1677 = vrot.slane %v1663, %v1676
        %v1678 = vcombine.high %v1654, 0.0
        %v1679 = vcombine.high %v1661, 0.0
        %v1680 = vcombine.high %v1670, 0.0
        %v1681 = vcombine.high %v1677, 0.0
        %1683 = vrot.lane.b32.xlu0 %v1610, 16
        %v1684 = vpop.permute.xlu0 %1683
        %1687 = vrot.lane.b32.xlu0 %v1593, 32
        %v1688 = vpop.permute.xlu0 %1687
        %1691 = vrot.lane.b32.xlu0 %v1611, 48
        %v1692 = vpop.permute.xlu0 %1691
        %1695 = vrot.lane.b32.xlu0 %v1602, 64
        %v1696 = vpop.permute.xlu0 %1695
        %1699 = vrot.lane.b32.xlu0 %v1612, 80
        %v1700 = vpop.permute.xlu0 %1699
        %1703 = vrot.lane.b32.xlu0 %v1609, 96
        %v1704 = vpop.permute.xlu0 %1703
        %1707 = vrot.lane.b32.xlu0 %v1613, 112
        %v1708 = vpop.permute.xlu0 %1707
        %1711 = vrot.lane.b32.xlu0 %v1678, 16
        %v1712 = vpop.permute.xlu0 %1711
        %1715 = vrot.lane.b32.xlu0 %v1661, 32
        %v1716 = vpop.permute.xlu0 %1715
        %1719 = vrot.lane.b32.xlu0 %v1679, 48
        %v1720 = vpop.permute.xlu0 %1719
        %1723 = vrot.lane.b32.xlu0 %v1670, 64
        %v1724 = vpop.permute.xlu0 %1723
        %1727 = vrot.lane.b32.xlu0 %v1680, 80
        %v1728 = vpop.permute.xlu0 %1727
        %1731 = vrot.lane.b32.xlu0 %v1677, 96
        %v1732 = vpop.permute.xlu0 %1731
        %1735 = vrot.lane.b32.xlu0 %v1681, 112
        %v1736 = vpop.permute.xlu0 %1735
        %v1738 = vsel %vm564, %v1586, %v1684
        %v1739 = vsel %vm566, %v1738, %v1688
        %v1740 = vsel %vm568, %v1739, %v1692
        %v1741 = vsel %vm570, %v1740, %v1696
        %v1742 = vsel %vm572, %v1741, %v1700
        %v1743 = vsel %vm574, %v1742, %v1704
        %v1744 = vsel %vm576, %v1743, %v1708
        %v1745 = vsel %vm564, %v1654, %v1712
        %v1746 = vsel %vm566, %v1745, %v1716
        %v1747 = vsel %vm568, %v1746, %v1720
        %v1748 = vsel %vm570, %v1747, %v1724
        %v1749 = vsel %vm572, %v1748, %v1728
        %v1750 = vsel %vm574, %v1749, %v1732
        %v1751 = vsel %vm576, %v1750, %v1736
        %vm1752 = vcmask 1045504
        %v1753 = vrot.slane %v360, 2
        %v1754 = vrot.slane %v361, 2
        %v1755 = vsel %vm1752, %v1753, %v1754
        %v1756 = vrot.slane %v362, 2
        %v1757 = vsel %vm1752, %v1754, %v1756
        %v1758 = vrot.slane %v363, 2
        %v1759 = vrot.slane %v364, 2
        %v1760 = vsel %vm1752, %v1758, %v1759
        %v1761 = vrot.slane %v365, 2
        %v1762 = vsel %vm1752, %v1759, %v1761
        %v1763 = vrot.slane %v366, 2
        %v1764 = vrot.slane %v367, 2
        %v1765 = vsel %vm1752, %v1763, %v1764
        %v1766 = vrot.slane %v368, 2
        %v1767 = vsel %vm1752, %v1764, %v1766
        %v1768 = vrot.slane %v369, 2
        %v1769 = vrot.slane %v370, 2
        %v1770 = vsel %vm1752, %v1768, %v1769
        %v1771 = vrot.slane %v371, 2
        %v1772 = vsel %vm1752, %v1769, %v1771
        %v1781 = vcombine.low %v1755, %v1765
        %v1782 = vcombine.high %v1755, %v1765
        %v1784 = vunpack.c.l.s4 1983009808
        %v1785 = vunpack.c.0.s8 %v1784
        %v1786 = vlaneseq
        %v1787 = vshrl.u32 %v1786, 7
        %v1788 = vsub.s32 %v1785, %v1787
        %v1789 = vrot.slane %v1781, %v1788
        %v1791 = vunpack.c.l.s4 1983009808
        %v1792 = vunpack.c.0.s8 %v1791
        %v1793 = vlaneseq
        %v1794 = vshrl.u32 %v1793, 7
        %v1795 = vsub.s32 %v1792, %v1794
        %v1796 = vrot.slane %v1782, %v1795
        %v1797 = vcombine.low %v1760, %v1770
        %v1798 = vcombine.high %v1760, %v1770
        %v1800 = vunpack.c.l.s4 1983009808
        %v1801 = vunpack.c.0.s8 %v1800
        %v1802 = vlaneseq
        %v1803 = vshrl.u32 %v1802, 7
        %v1804 = vsub.s32 %v1801, %v1803
        %v1805 = vrot.slane %v1797, %v1804
        %v1807 = vunpack.c.l.s4 1983009808
        %v1808 = vunpack.c.0.s8 %v1807
        %v1809 = vlaneseq
        %v1810 = vshrl.u32 %v1809, 7
        %v1811 = vsub.s32 %v1808, %v1810
        %v1812 = vrot.slane %v1798, %v1811
        %v1813 = vcombine.low %v1789, %v1805
        %v1814 = vcombine.high %v1789, %v1805
        %v1816 = vunpack.c.l.s4 1934713408
        %v1817 = vunpack.c.0.s8 %v1816
        %v1818 = vlaneseq
        %v1819 = vshrl.u32 %v1818, 7
        %v1820 = vsub.s32 %v1817, %v1819
        %v1821 = vrot.slane %v1813, %v1820
        %v1823 = vunpack.c.l.s4 1934713408
        %v1824 = vunpack.c.0.s8 %v1823
        %v1825 = vlaneseq
        %v1826 = vshrl.u32 %v1825, 7
        %v1827 = vsub.s32 %v1824, %v1826
        %v1828 = vrot.slane %v1814, %v1827
        %v1829 = vcombine.low %v1796, %v1812
        %v1830 = vcombine.high %v1796, %v1812
        %v1832 = vunpack.c.l.s4 1934713408
        %v1833 = vunpack.c.0.s8 %v1832
        %v1834 = vlaneseq
        %v1835 = vshrl.u32 %v1834, 7
        %v1836 = vsub.s32 %v1833, %v1835
        %v1837 = vrot.slane %v1829, %v1836
        %v1839 = vunpack.c.l.s4 1934713408
        %v1840 = vunpack.c.0.s8 %v1839
        %v1841 = vlaneseq
        %v1842 = vshrl.u32 %v1841, 7
        %v1843 = vsub.s32 %v1840, %v1842
        %v1844 = vrot.slane %v1830, %v1843
        %v1845 = vcombine.high %v1821, 0.0
        %v1846 = vcombine.high %v1828, 0.0
        %v1847 = vcombine.high %v1837, 0.0
        %v1848 = vcombine.high %v1844, 0.0
        %v1849 = vcombine.low %v1757, %v1767
        %v1850 = vcombine.high %v1757, %v1767
        %v1852 = vunpack.c.l.s4 1983009808
        %v1853 = vunpack.c.0.s8 %v1852
        %v1854 = vlaneseq
        %v1855 = vshrl.u32 %v1854, 7
        %v1856 = vsub.s32 %v1853, %v1855
        %v1857 = vrot.slane %v1849, %v1856
        %v1859 = vunpack.c.l.s4 1983009808
        %v1860 = vunpack.c.0.s8 %v1859
        %v1861 = vlaneseq
        %v1862 = vshrl.u32 %v1861, 7
        %v1863 = vsub.s32 %v1860, %v1862
        %v1864 = vrot.slane %v1850, %v1863
        %v1865 = vcombine.low %v1762, %v1772
        %v1866 = vcombine.high %v1762, %v1772
        %v1868 = vunpack.c.l.s4 1983009808
        %v1869 = vunpack.c.0.s8 %v1868
        %v1870 = vlaneseq
        %v1871 = vshrl.u32 %v1870, 7
        %v1872 = vsub.s32 %v1869, %v1871
        %v1873 = vrot.slane %v1865, %v1872
        %v1875 = vunpack.c.l.s4 1983009808
        %v1876 = vunpack.c.0.s8 %v1875
        %v1877 = vlaneseq
        %v1878 = vshrl.u32 %v1877, 7
        %v1879 = vsub.s32 %v1876, %v1878
        %v1880 = vrot.slane %v1866, %v1879
        %v1881 = vcombine.low %v1857, %v1873
        %v1882 = vcombine.high %v1857, %v1873
        %v1884 = vunpack.c.l.s4 1934713408
        %v1885 = vunpack.c.0.s8 %v1884
        %v1886 = vlaneseq
        %v1887 = vshrl.u32 %v1886, 7
        %v1888 = vsub.s32 %v1885, %v1887
        %v1889 = vrot.slane %v1881, %v1888
        %v1891 = vunpack.c.l.s4 1934713408
        %v1892 = vunpack.c.0.s8 %v1891
        %v1893 = vlaneseq
        %v1894 = vshrl.u32 %v1893, 7
        %v1895 = vsub.s32 %v1892, %v1894
        %v1896 = vrot.slane %v1882, %v1895
        %v1897 = vcombine.low %v1864, %v1880
        %v1898 = vcombine.high %v1864, %v1880
        %v1900 = vunpack.c.l.s4 1934713408
        %v1901 = vunpack.c.0.s8 %v1900
        %v1902 = vlaneseq
        %v1903 = vshrl.u32 %v1902, 7
        %v1904 = vsub.s32 %v1901, %v1903
        %v1905 = vrot.slane %v1897, %v1904
        %v1907 = vunpack.c.l.s4 1934713408
        %v1908 = vunpack.c.0.s8 %v1907
        %v1909 = vlaneseq
        %v1910 = vshrl.u32 %v1909, 7
        %v1911 = vsub.s32 %v1908, %v1910
        %v1912 = vrot.slane %v1898, %v1911
        %v1913 = vcombine.high %v1889, 0.0
        %v1914 = vcombine.high %v1896, 0.0
        %v1915 = vcombine.high %v1905, 0.0
        %v1916 = vcombine.high %v1912, 0.0
        %1918 = vrot.lane.b32.xlu0 %v1845, 16
        %v1919 = vpop.permute.xlu0 %1918
        %1922 = vrot.lane.b32.xlu0 %v1828, 32
        %v1923 = vpop.permute.xlu0 %1922
        %1926 = vrot.lane.b32.xlu0 %v1846, 48
        %v1927 = vpop.permute.xlu0 %1926
        %1930 = vrot.lane.b32.xlu0 %v1837, 64
        %v1931 = vpop.permute.xlu0 %1930
        %1934 = vrot.lane.b32.xlu0 %v1847, 80
        %v1935 = vpop.permute.xlu0 %1934
        %1938 = vrot.lane.b32.xlu0 %v1844, 96
        %v1939 = vpop.permute.xlu0 %1938
        %1942 = vrot.lane.b32.xlu0 %v1848, 112
        %v1943 = vpop.permute.xlu0 %1942
        %1946 = vrot.lane.b32.xlu0 %v1913, 16
        %v1947 = vpop.permute.xlu0 %1946
        %1950 = vrot.lane.b32.xlu0 %v1896, 32
        %v1951 = vpop.permute.xlu0 %1950
        %1954 = vrot.lane.b32.xlu0 %v1914, 48
        %v1955 = vpop.permute.xlu0 %1954
        %1958 = vrot.lane.b32.xlu0 %v1905, 64
        %v1959 = vpop.permute.xlu0 %1958
        %1962 = vrot.lane.b32.xlu0 %v1915, 80
        %v1963 = vpop.permute.xlu0 %1962
        %1966 = vrot.lane.b32.xlu0 %v1912, 96
        %v1967 = vpop.permute.xlu0 %1966
        %1970 = vrot.lane.b32.xlu0 %v1916, 112
        %v1971 = vpop.permute.xlu0 %1970
        %v1973 = vsel %vm564, %v1821, %v1919
        %v1974 = vsel %vm566, %v1973, %v1923
        %v1975 = vsel %vm568, %v1974, %v1927
        %v1976 = vsel %vm570, %v1975, %v1931
        %v1977 = vsel %vm572, %v1976, %v1935
        %v1978 = vsel %vm574, %v1977, %v1939
        %v1979 = vsel %vm576, %v1978, %v1943
        %v1980 = vsel %vm564, %v1889, %v1947
        %v1981 = vsel %vm566, %v1980, %v1951
        %v1982 = vsel %vm568, %v1981, %v1955
        %v1983 = vsel %vm570, %v1982, %v1959
        %v1984 = vsel %vm572, %v1983, %v1963
        %v1985 = vsel %vm574, %v1984, %v1967
        %v1986 = vsel %vm576, %v1985, %v1971
        %1987 = vrot.lane.b32.xlu0 %v1755, 127
        %v1988 = vpop.permute.xlu0 %1987
        %1989 = vrot.lane.b32.xlu0 %v1757, 127
        %v1990 = vpop.permute.xlu0 %1989
        %1991 = vrot.lane.b32.xlu0 %v1760, 127
        %v1992 = vpop.permute.xlu0 %1991
        %1993 = vrot.lane.b32.xlu0 %v1762, 127
        %v1994 = vpop.permute.xlu0 %1993
        %1995 = vrot.lane.b32.xlu0 %v1765, 127
        %v1996 = vpop.permute.xlu0 %1995
        %1997 = vrot.lane.b32.xlu0 %v1767, 127
        %v1998 = vpop.permute.xlu0 %1997
        %1999 = vrot.lane.b32.xlu0 %v1770, 127
        %v2000 = vpop.permute.xlu0 %1999
        %2001 = vrot.lane.b32.xlu0 %v1772, 127
        %v2002 = vpop.permute.xlu0 %2001
        %v2011 = vcombine.low %v1988, %v1996
        %v2012 = vcombine.high %v1988, %v1996
        %v2014 = vunpack.c.l.s4 1983009808
        %v2015 = vunpack.c.0.s8 %v2014
        %v2016 = vlaneseq
        %v2017 = vshrl.u32 %v2016, 7
        %v2018 = vsub.s32 %v2015, %v2017
        %v2019 = vrot.slane %v2011, %v2018
        %v2021 = vunpack.c.l.s4 1983009808
        %v2022 = vunpack.c.0.s8 %v2021
        %v2023 = vlaneseq
        %v2024 = vshrl.u32 %v2023, 7
        %v2025 = vsub.s32 %v2022, %v2024
        %v2026 = vrot.slane %v2012, %v2025
        %v2027 = vcombine.low %v1992, %v2000
        %v2028 = vcombine.high %v1992, %v2000
        %v2030 = vunpack.c.l.s4 1983009808
        %v2031 = vunpack.c.0.s8 %v2030
        %v2032 = vlaneseq
        %v2033 = vshrl.u32 %v2032, 7
        %v2034 = vsub.s32 %v2031, %v2033
        %v2035 = vrot.slane %v2027, %v2034
        %v2037 = vunpack.c.l.s4 1983009808
        %v2038 = vunpack.c.0.s8 %v2037
        %v2039 = vlaneseq
        %v2040 = vshrl.u32 %v2039, 7
        %v2041 = vsub.s32 %v2038, %v2040
        %v2042 = vrot.slane %v2028, %v2041
        %v2043 = vcombine.low %v2019, %v2035
        %v2044 = vcombine.high %v2019, %v2035
        %v2046 = vunpack.c.l.s4 1934713408
        %v2047 = vunpack.c.0.s8 %v2046
        %v2048 = vlaneseq
        %v2049 = vshrl.u32 %v2048, 7
        %v2050 = vsub.s32 %v2047, %v2049
        %v2051 = vrot.slane %v2043, %v2050
        %v2053 = vunpack.c.l.s4 1934713408
        %v2054 = vunpack.c.0.s8 %v2053
        %v2055 = vlaneseq
        %v2056 = vshrl.u32 %v2055, 7
        %v2057 = vsub.s32 %v2054, %v2056
        %v2058 = vrot.slane %v2044, %v2057
        %v2059 = vcombine.low %v2026, %v2042
        %v2060 = vcombine.high %v2026, %v2042
        %v2062 = vunpack.c.l.s4 1934713408
        %v2063 = vunpack.c.0.s8 %v2062
        %v2064 = vlaneseq
        %v2065 = vshrl.u32 %v2064, 7
        %v2066 = vsub.s32 %v2063, %v2065
        %v2067 = vrot.slane %v2059, %v2066
        %v2069 = vunpack.c.l.s4 1934713408
        %v2070 = vunpack.c.0.s8 %v2069
        %v2071 = vlaneseq
        %v2072 = vshrl.u32 %v2071, 7
        %v2073 = vsub.s32 %v2070, %v2072
        %v2074 = vrot.slane %v2060, %v2073
        %v2075 = vcombine.high %v2051, 0.0
        %v2076 = vcombine.high %v2058, 0.0
        %v2077 = vcombine.high %v2067, 0.0
        %v2078 = vcombine.high %v2074, 0.0
        %v2079 = vcombine.low %v1990, %v1998
        %v2080 = vcombine.high %v1990, %v1998
        %v2082 = vunpack.c.l.s4 1983009808
        %v2083 = vunpack.c.0.s8 %v2082
        %v2084 = vlaneseq
        %v2085 = vshrl.u32 %v2084, 7
        %v2086 = vsub.s32 %v2083, %v2085
        %v2087 = vrot.slane %v2079, %v2086
        %v2089 = vunpack.c.l.s4 1983009808
        %v2090 = vunpack.c.0.s8 %v2089
        %v2091 = vlaneseq
        %v2092 = vshrl.u32 %v2091, 7
        %v2093 = vsub.s32 %v2090, %v2092
        %v2094 = vrot.slane %v2080, %v2093
        %v2095 = vcombine.low %v1994, %v2002
        %v2096 = vcombine.high %v1994, %v2002
        %v2098 = vunpack.c.l.s4 1983009808
        %v2099 = vunpack.c.0.s8 %v2098
        %v2100 = vlaneseq
        %v2101 = vshrl.u32 %v2100, 7
        %v2102 = vsub.s32 %v2099, %v2101
        %v2103 = vrot.slane %v2095, %v2102
        %v2105 = vunpack.c.l.s4 1983009808
        %v2106 = vunpack.c.0.s8 %v2105
        %v2107 = vlaneseq
        %v2108 = vshrl.u32 %v2107, 7
        %v2109 = vsub.s32 %v2106, %v2108
        %v2110 = vrot.slane %v2096, %v2109
        %v2111 = vcombine.low %v2087, %v2103
        %v2112 = vcombine.high %v2087, %v2103
        %v2114 = vunpack.c.l.s4 1934713408
        %v2115 = vunpack.c.0.s8 %v2114
        %v2116 = vlaneseq
        %v2117 = vshrl.u32 %v2116, 7
        %v2118 = vsub.s32 %v2115, %v2117
        %v2119 = vrot.slane %v2111, %v2118
        %v2121 = vunpack.c.l.s4 1934713408
        %v2122 = vunpack.c.0.s8 %v2121
        %v2123 = vlaneseq
        %v2124 = vshrl.u32 %v2123, 7
        %v2125 = vsub.s32 %v2122, %v2124
        %v2126 = vrot.slane %v2112, %v2125
        %v2127 = vcombine.low %v2094, %v2110
        %v2128 = vcombine.high %v2094, %v2110
        %v2130 = vunpack.c.l.s4 1934713408
        %v2131 = vunpack.c.0.s8 %v2130
        %v2132 = vlaneseq
        %v2133 = vshrl.u32 %v2132, 7
        %v2134 = vsub.s32 %v2131, %v2133
        %v2135 = vrot.slane %v2127, %v2134
        %v2137 = vunpack.c.l.s4 1934713408
        %v2138 = vunpack.c.0.s8 %v2137
        %v2139 = vlaneseq
        %v2140 = vshrl.u32 %v2139, 7
        %v2141 = vsub.s32 %v2138, %v2140
        %v2142 = vrot.slane %v2128, %v2141
        %v2143 = vcombine.high %v2119, 0.0
        %v2144 = vcombine.high %v2126, 0.0
        %v2145 = vcombine.high %v2135, 0.0
        %v2146 = vcombine.high %v2142, 0.0
        %2148 = vrot.lane.b32.xlu0 %v2075, 16
        %v2149 = vpop.permute.xlu0 %2148
        %2152 = vrot.lane.b32.xlu0 %v2058, 32
        %v2153 = vpop.permute.xlu0 %2152
        %2156 = vrot.lane.b32.xlu0 %v2076, 48
        %v2157 = vpop.permute.xlu0 %2156
        %2160 = vrot.lane.b32.xlu0 %v2067, 64
        %v2161 = vpop.permute.xlu0 %2160
        %2164 = vrot.lane.b32.xlu0 %v2077, 80
        %v2165 = vpop.permute.xlu0 %2164
        %2168 = vrot.lane.b32.xlu0 %v2074, 96
        %v2169 = vpop.permute.xlu0 %2168
        %2172 = vrot.lane.b32.xlu0 %v2078, 112
        %v2173 = vpop.permute.xlu0 %2172
        %2176 = vrot.lane.b32.xlu0 %v2143, 16
        %v2177 = vpop.permute.xlu0 %2176
        %2180 = vrot.lane.b32.xlu0 %v2126, 32
        %v2181 = vpop.permute.xlu0 %2180
        %2184 = vrot.lane.b32.xlu0 %v2144, 48
        %v2185 = vpop.permute.xlu0 %2184
        %2188 = vrot.lane.b32.xlu0 %v2135, 64
        %v2189 = vpop.permute.xlu0 %2188
        %2192 = vrot.lane.b32.xlu0 %v2145, 80
        %v2193 = vpop.permute.xlu0 %2192
        %2196 = vrot.lane.b32.xlu0 %v2142, 96
        %v2197 = vpop.permute.xlu0 %2196
        %2200 = vrot.lane.b32.xlu0 %v2146, 112
        %v2201 = vpop.permute.xlu0 %2200
        %v2203 = vsel %vm564, %v2051, %v2149
        %v2204 = vsel %vm566, %v2203, %v2153
        %v2205 = vsel %vm568, %v2204, %v2157
        %v2206 = vsel %vm570, %v2205, %v2161
        %v2207 = vsel %vm572, %v2206, %v2165
        %v2208 = vsel %vm574, %v2207, %v2169
        %v2209 = vsel %vm576, %v2208, %v2173
        %v2210 = vsel %vm564, %v2119, %v2177
        %v2211 = vsel %vm566, %v2210, %v2181
        %v2212 = vsel %vm568, %v2211, %v2185
        %v2213 = vsel %vm570, %v2212, %v2189
        %v2214 = vsel %vm572, %v2213, %v2193
        %v2215 = vsel %vm574, %v2214, %v2197
        %v2216 = vsel %vm576, %v2215, %v2201
        %2217 = vrot.lane.b32.xlu0 %v1755, 126
        %v2218 = vpop.permute.xlu0 %2217
        %2219 = vrot.lane.b32.xlu0 %v1757, 126
        %v2220 = vpop.permute.xlu0 %2219
        %2221 = vrot.lane.b32.xlu0 %v1760, 126
        %v2222 = vpop.permute.xlu0 %2221
        %2223 = vrot.lane.b32.xlu0 %v1762, 126
        %v2224 = vpop.permute.xlu0 %2223
        %2225 = vrot.lane.b32.xlu0 %v1765, 126
        %v2226 = vpop.permute.xlu0 %2225
        %2227 = vrot.lane.b32.xlu0 %v1767, 126
        %v2228 = vpop.permute.xlu0 %2227
        %2229 = vrot.lane.b32.xlu0 %v1770, 126
        %v2230 = vpop.permute.xlu0 %2229
        %2231 = vrot.lane.b32.xlu0 %v1772, 126
        %v2232 = vpop.permute.xlu0 %2231
        %v2241 = vcombine.low %v2218, %v2226
        %v2242 = vcombine.high %v2218, %v2226
        %v2244 = vunpack.c.l.s4 1983009808
        %v2245 = vunpack.c.0.s8 %v2244
        %v2246 = vlaneseq
        %v2247 = vshrl.u32 %v2246, 7
        %v2248 = vsub.s32 %v2245, %v2247
        %v2249 = vrot.slane %v2241, %v2248
        %v2251 = vunpack.c.l.s4 1983009808
        %v2252 = vunpack.c.0.s8 %v2251
        %v2253 = vlaneseq
        %v2254 = vshrl.u32 %v2253, 7
        %v2255 = vsub.s32 %v2252, %v2254
        %v2256 = vrot.slane %v2242, %v2255
        %v2257 = vcombine.low %v2222, %v2230
        %v2258 = vcombine.high %v2222, %v2230
        %v2260 = vunpack.c.l.s4 1983009808
        %v2261 = vunpack.c.0.s8 %v2260
        %v2262 = vlaneseq
        %v2263 = vshrl.u32 %v2262, 7
        %v2264 = vsub.s32 %v2261, %v2263
        %v2265 = vrot.slane %v2257, %v2264
        %v2267 = vunpack.c.l.s4 1983009808
        %v2268 = vunpack.c.0.s8 %v2267
        %v2269 = vlaneseq
        %v2270 = vshrl.u32 %v2269, 7
        %v2271 = vsub.s32 %v2268, %v2270
        %v2272 = vrot.slane %v2258, %v2271
        %v2273 = vcombine.low %v2249, %v2265
        %v2274 = vcombine.high %v2249, %v2265
        %v2276 = vunpack.c.l.s4 1934713408
        %v2277 = vunpack.c.0.s8 %v2276
        %v2278 = vlaneseq
        %v2279 = vshrl.u32 %v2278, 7
        %v2280 = vsub.s32 %v2277, %v2279
        %v2281 = vrot.slane %v2273, %v2280
        %v2283 = vunpack.c.l.s4 1934713408
        %v2284 = vunpack.c.0.s8 %v2283
        %v2285 = vlaneseq
        %v2286 = vshrl.u32 %v2285, 7
        %v2287 = vsub.s32 %v2284, %v2286
        %v2288 = vrot.slane %v2274, %v2287
        %v2289 = vcombine.low %v2256, %v2272
        %v2290 = vcombine.high %v2256, %v2272
        %v2292 = vunpack.c.l.s4 1934713408
        %v2293 = vunpack.c.0.s8 %v2292
        %v2294 = vlaneseq
        %v2295 = vshrl.u32 %v2294, 7
        %v2296 = vsub.s32 %v2293, %v2295
        %v2297 = vrot.slane %v2289, %v2296
        %v2299 = vunpack.c.l.s4 1934713408
        %v2300 = vunpack.c.0.s8 %v2299
        %v2301 = vlaneseq
        %v2302 = vshrl.u32 %v2301, 7
        %v2303 = vsub.s32 %v2300, %v2302
        %v2304 = vrot.slane %v2290, %v2303
        %v2305 = vcombine.high %v2281, 0.0
        %v2306 = vcombine.high %v2288, 0.0
        %v2307 = vcombine.high %v2297, 0.0
        %v2308 = vcombine.high %v2304, 0.0
        %v2309 = vcombine.low %v2220, %v2228
        %v2310 = vcombine.high %v2220, %v2228
        %v2312 = vunpack.c.l.s4 1983009808
        %v2313 = vunpack.c.0.s8 %v2312
        %v2314 = vlaneseq
        %v2315 = vshrl.u32 %v2314, 7
        %v2316 = vsub.s32 %v2313, %v2315
        %v2317 = vrot.slane %v2309, %v2316
        %v2319 = vunpack.c.l.s4 1983009808
        %v2320 = vunpack.c.0.s8 %v2319
        %v2321 = vlaneseq
        %v2322 = vshrl.u32 %v2321, 7
        %v2323 = vsub.s32 %v2320, %v2322
        %v2324 = vrot.slane %v2310, %v2323
        %v2325 = vcombine.low %v2224, %v2232
        %v2326 = vcombine.high %v2224, %v2232
        %v2328 = vunpack.c.l.s4 1983009808
        %v2329 = vunpack.c.0.s8 %v2328
        %v2330 = vlaneseq
        %v2331 = vshrl.u32 %v2330, 7
        %v2332 = vsub.s32 %v2329, %v2331
        %v2333 = vrot.slane %v2325, %v2332
        %v2335 = vunpack.c.l.s4 1983009808
        %v2336 = vunpack.c.0.s8 %v2335
        %v2337 = vlaneseq
        %v2338 = vshrl.u32 %v2337, 7
        %v2339 = vsub.s32 %v2336, %v2338
        %v2340 = vrot.slane %v2326, %v2339
        %v2341 = vcombine.low %v2317, %v2333
        %v2342 = vcombine.high %v2317, %v2333
        %v2344 = vunpack.c.l.s4 1934713408
        %v2345 = vunpack.c.0.s8 %v2344
        %v2346 = vlaneseq
        %v2347 = vshrl.u32 %v2346, 7
        %v2348 = vsub.s32 %v2345, %v2347
        %v2349 = vrot.slane %v2341, %v2348
        %v2351 = vunpack.c.l.s4 1934713408
        %v2352 = vunpack.c.0.s8 %v2351
        %v2353 = vlaneseq
        %v2354 = vshrl.u32 %v2353, 7
        %v2355 = vsub.s32 %v2352, %v2354
        %v2356 = vrot.slane %v2342, %v2355
        %v2357 = vcombine.low %v2324, %v2340
        %v2358 = vcombine.high %v2324, %v2340
        %v2360 = vunpack.c.l.s4 1934713408
        %v2361 = vunpack.c.0.s8 %v2360
        %v2362 = vlaneseq
        %v2363 = vshrl.u32 %v2362, 7
        %v2364 = vsub.s32 %v2361, %v2363
        %v2365 = vrot.slane %v2357, %v2364
        %v2367 = vunpack.c.l.s4 1934713408
        %v2368 = vunpack.c.0.s8 %v2367
        %v2369 = vlaneseq
        %v2370 = vshrl.u32 %v2369, 7
        %v2371 = vsub.s32 %v2368, %v2370
        %v2372 = vrot.slane %v2358, %v2371
        %v2373 = vcombine.high %v2349, 0.0
        %v2374 = vcombine.high %v2356, 0.0
        %v2375 = vcombine.high %v2365, 0.0
        %v2376 = vcombine.high %v2372, 0.0
        %2378 = vrot.lane.b32.xlu0 %v2305, 16
        %v2379 = vpop.permute.xlu0 %2378
        %2382 = vrot.lane.b32.xlu0 %v2288, 32
        %v2383 = vpop.permute.xlu0 %2382
        %2386 = vrot.lane.b32.xlu0 %v2306, 48
        %v2387 = vpop.permute.xlu0 %2386
        %2390 = vrot.lane.b32.xlu0 %v2297, 64
        %v2391 = vpop.permute.xlu0 %2390
        %2394 = vrot.lane.b32.xlu0 %v2307, 80
        %v2395 = vpop.permute.xlu0 %2394
        %2398 = vrot.lane.b32.xlu0 %v2304, 96
        %v2399 = vpop.permute.xlu0 %2398
        %2402 = vrot.lane.b32.xlu0 %v2308, 112
        %v2403 = vpop.permute.xlu0 %2402
        %2406 = vrot.lane.b32.xlu0 %v2373, 16
        %v2407 = vpop.permute.xlu0 %2406
        %2410 = vrot.lane.b32.xlu0 %v2356, 32
        %v2411 = vpop.permute.xlu0 %2410
        %2414 = vrot.lane.b32.xlu0 %v2374, 48
        %v2415 = vpop.permute.xlu0 %2414
        %2418 = vrot.lane.b32.xlu0 %v2365, 64
        %v2419 = vpop.permute.xlu0 %2418
        %2422 = vrot.lane.b32.xlu0 %v2375, 80
        %v2423 = vpop.permute.xlu0 %2422
        %2426 = vrot.lane.b32.xlu0 %v2372, 96
        %v2427 = vpop.permute.xlu0 %2426
        %2430 = vrot.lane.b32.xlu0 %v2376, 112
        %v2431 = vpop.permute.xlu0 %2430
        %v2433 = vsel %vm564, %v2281, %v2379
        %v2434 = vsel %vm566, %v2433, %v2383
        %v2435 = vsel %vm568, %v2434, %v2387
        %v2436 = vsel %vm570, %v2435, %v2391
        %v2437 = vsel %vm572, %v2436, %v2395
        %v2438 = vsel %vm574, %v2437, %v2399
        %v2439 = vsel %vm576, %v2438, %v2403
        %v2440 = vsel %vm564, %v2349, %v2407
        %v2441 = vsel %vm566, %v2440, %v2411
        %v2442 = vsel %vm568, %v2441, %v2415
        %v2443 = vsel %vm570, %v2442, %v2419
        %v2444 = vsel %vm572, %v2443, %v2423
        %v2445 = vsel %vm574, %v2444, %v2427
        %v2446 = vsel %vm576, %v2445, %v2431
        %v2449 = vrot.slane %v815, 4
        %v2450 = vrot.slane %v822, 4
        %v2455 = vrot.slane %v1284, 4
        %v2456 = vrot.slane %v1291, 4
        %v2461 = vrot.slane %v1744, 4
        %v2462 = vrot.slane %v1751, 4
        %v2467 = vrot.slane %v2209, 4
        %v2468 = vrot.slane %v2216, 4
        %vm2471 = vcmask 1043456
        %v2472 = vsel %vm2471, %v577, %v2449
        %v2473 = vsel %vm2471, %v584, %v2450
        %v2474 = vsel %vm2471, %v1045, %v2455
        %v2475 = vsel %vm2471, %v1052, %v2456
        %v2476 = vsel %vm2471, %v1514, %v2461
        %v2477 = vsel %vm2471, %v1521, %v2462
        %v2478 = vsel %vm2471, %v1979, %v2467
        %v2479 = vsel %vm2471, %v1986, %v2468
        %v2480 = vld [vmem:[%s1] sm:$0xff]
        %vm2481 = vcmask 293888
        %v2483 = vsel %vm2481, %v2480, 0
        %v2486 = vsel %vm2471, %v2439, 0
        %v2489 = vsel %vm2471, %v2446, 0
        %2491 = vmatprep.subr.mxu0 %v2473
        %2492 = vmatpush1.msra.mxu0 %v2472
        %2493 = vmatprep.subr.mxu0 %v2475
        %2494 = vmatpush1.msra.mxu0 %v2474
        %2495 = vmatprep.subr.mxu0 %v2477
        %2496 = vmatpush1.msra.mxu0 %v2476
        %2497 = vmatprep.subr.mxu0 %v2479
        %2498 = vmatpush1.msra.mxu0 %v2478
        %2499 = vmatprep.subr.mxu0 %v2489
        %2500 = vmatpush1.msra.mxu0 %v2486
        %2501 = vmatprep.subr.mxu0 0.0
        %2502 = vmatpush1.msra.mxu0 0.0
        %2503 = vmatprep.subr.mxu0 0.0
        %2504 = vmatpush1.msra.mxu0 0.0
        %2505 = vmatprep.subr.mxu0 0.0
        %2506 = vmatpush1.msra.mxu0 0.0
        %2507 = vmatprep.subr.mxu0 0.0
        %2508 = vmatpush1.msra.mxu0 0.0
        %2509 = vmatprep.subr.mxu0 0.0
        %2510 = vmatpush1.msra.mxu0 0.0
        %2511 = vmatprep.subr.mxu0 0.0
        %2512 = vmatpush1.msra.mxu0 0.0
        %2513 = vmatprep.subr.mxu0 0.0
        %2514 = vmatpush1.msra.mxu0 0.0
        %2515 = vmatprep.subr.mxu0 0.0
        %2516 = vmatpush1.msra.mxu0 0.0
        %2517 = vmatprep.subr.mxu0 0.0
        %2518 = vmatpush1.msra.mxu0 0.0
        %2519 = vmatprep.subr.mxu0 0.0
        %2520 = vmatpush1.msra.mxu0 0.0
        %2521 = vmatprep.subr.mxu0 0.0
        %2522 = vmatpush1.msra.mxu0 0.0
        %2523 = vmatprep.subr.mxu0 0.0
        %2524 = vmatpush1.msra.mxu0 0.0
        %2525 = vmatprep.subr.mxu0 0.0
        %2526 = vmatpush1.msra.mxu0 0.0
        %2527 = vmatprep.subr.mxu0 0.0
        %2528 = vmatpush1.msra.mxu0 0.0
        %2529 = vmatprep.subr.mxu0 0.0
        %2530 = vmatpush1.msra.mxu0 0.0
        %2531 = vmatprep.subr.mxu0 0.0
        %2532 = vmatpush1.msra.mxu0 0.0
        %2533 = vmatprep.subr.mxu0 0.0
        %2534 = vmatpush1.msra.mxu0 0.0
        %2535 = vmatprep.subr.mxu0 0.0
        %2536 = vmatpush1.msra.mxu0 0.0
        %2537 = vmatprep.subr.mxu0 0.0
        %2538 = vmatpush1.msra.mxu0 0.0
        %2539 = vmatprep.subr.mxu0 0.0
        %2540 = vmatpush1.msra.mxu0 0.0
        %2541 = vmatprep.subr.mxu0 0.0
        %2542 = vmatpush1.msra.mxu0 0.0
        %2543 = vmatprep.subr.mxu0 0.0
        %2544 = vmatpush1.msra.mxu0 0.0
        %2545 = vmatprep.subr.mxu0 0.0
        %2546 = vmatpush1.msra.mxu0 0.0
        %2547 = vmatprep.subr.mxu0 0.0
        %2548 = vmatpush1.msra.mxu0 0.0
        %2549 = vmatprep.subr.mxu0 0.0
        %2550 = vmatpush1.msra.mxu0 0.0
        %2551 = vmatprep.subr.mxu0 0.0
        %2552 = vmatpush1.msra.mxu0 0.0
        %2553 = vmatprep.subr.mxu0 0.0
        %2554 = vmatpush1.msra.mxu0 0.0
        %2555 = vmatprep.mubr.f32.mxu0 0.0
        %2556 = vmatmul.mubr.f32.gmra.mrb[0].mxu0 %v2483
        %v2557 = vpop.f32.mrb[0].mxu0
        %v2558 = vadd.f32 0.0, %v2557
        %v2559 = vpop.f32.mrb[0].mxu0
        %v2560 = vadd.f32 0.0, %v2559
        %2561 = vdwg.mxu0
        %v2562 = vld [vmem:[%s3] sm:$0xff]
        %2564 = vset.pattern.permute.xlu0 0
        %2565 = vperm.xlu0 %2564, %v2562
        %v2566 = vpop.permute.xlu0 %2565
        %v2568 = vmul.f32 %v2558, %v2566
        %v2569 = vmul.f32 %v2560, %v2566
        %v2570 = vld [vmem:[%s4] sm:$0xff]
        %2572 = vset.pattern.permute.xlu0 0
        %2573 = vperm.xlu0 %2572, %v2570
        %v2574 = vpop.permute.xlu0 %2573
        %v2576 = vadd.f32 %v2568, %v2574
        %v2577 = vadd.f32 %v2569, %v2574
        %v2578 = vmax.f32 %v2576, 0.0
        %v2579 = vmax.f32 %v2577, 0.0
        %2580 = vst.msk [vmem:[#allocation3] sm:$0xff] %vm297, 0.0
        %2581 = vst.msk [vmem:[#allocation3 + $0x8] sm:$0xff] %vm297, 0.0
        %2582 = vst.msk [vmem:[#allocation3 + $0x10] sm:$0x3] %vm300, 0.0
        %2583 = vst.msk [vmem:[#allocation3 + $0x18] sm:$0xff] %vm297, 0.0
        %2584 = vst.msk [vmem:[#allocation3 + $0x20] sm:$0xff] %vm297, 0.0
        %2585 = vst.msk [vmem:[#allocation3 + $0x28] sm:$0x3] %vm300, 0.0
        %2586 = vst.msk [vmem:[#allocation3 + $0x30] sm:$0xff] %vm297, 0.0
        %2587 = vst.msk [vmem:[#allocation3 + $0x38] sm:$0xff] %vm297, 0.0
        %2588 = vst.msk [vmem:[#allocation3 + $0x40] sm:$0x3] %vm300, 0.0
        %2589 = vst.msk [vmem:[#allocation3 + $0x48] sm:$0xff] %vm297, 0.0
        %2590 = vst.msk [vmem:[#allocation3 + $0x50] sm:$0xff] %vm297, 0.0
        %2591 = vst.msk [vmem:[#allocation3 + $0x58] sm:$0x3] %vm300, 0.0
        %2592 = vst.msk [vmem:[#allocation3 + $0x60] sm:$0xff] %vm297, 0.0
        %2593 = vst.msk [vmem:[#allocation3 + $0x68] sm:$0xff] %vm297, 0.0
        %2594 = vst.msk [vmem:[#allocation3 + $0x70] sm:$0x3] %vm300, 0.0
        %2595 = vst.msk [vmem:[#allocation3 + $0x78] sm:$0xff] %vm297, 0.0
        %2596 = vst.msk [vmem:[#allocation3 + $0x80] sm:$0xff] %vm297, 0.0
        %2597 = vst.msk [vmem:[#allocation3 + $0x88] sm:$0x3] %vm300, 0.0
        %2598 = vst.msk [vmem:[#allocation3 + $0x90] sm:$0xff] %vm297, 0.0
        %2599 = vst.msk [vmem:[#allocation3 + $0x98] sm:$0xff] %vm297, 0.0
        %2600 = vst.msk [vmem:[#allocation3 + $0xa0] sm:$0x3] %vm300, 0.0
        %2601 = vst.msk [vmem:[#allocation3 + $0xa8] sm:$0xff] %vm297, 0.0
        %2602 = vst.msk [vmem:[#allocation3 + $0xb0] sm:$0xff] %vm297, 0.0
        %2603 = vst.msk [vmem:[#allocation3 + $0xb8] sm:$0x3] %vm300, 0.0
        %2605 = vrot.lane.b32.xlu0 %v2578, 112
        %v2606 = vpop.permute.xlu0 %2605
        %2608 = vrot.lane.b32.xlu0 %v2578, 96
        %v2609 = vpop.permute.xlu0 %2608
        %2611 = vrot.lane.b32.xlu0 %v2578, 80
        %v2612 = vpop.permute.xlu0 %2611
        %2614 = vrot.lane.b32.xlu0 %v2578, 64
        %v2615 = vpop.permute.xlu0 %2614
        %2617 = vrot.lane.b32.xlu0 %v2578, 48
        %v2618 = vpop.permute.xlu0 %2617
        %2620 = vrot.lane.b32.xlu0 %v2578, 32
        %v2621 = vpop.permute.xlu0 %2620
        %2623 = vrot.lane.b32.xlu0 %v2578, 16
        %v2624 = vpop.permute.xlu0 %2623
        %2627 = vrot.lane.b32.xlu0 %v2579, 112
        %v2628 = vpop.permute.xlu0 %2627
        %2630 = vrot.lane.b32.xlu0 %v2579, 96
        %v2631 = vpop.permute.xlu0 %2630
        %2633 = vrot.lane.b32.xlu0 %v2579, 80
        %v2634 = vpop.permute.xlu0 %2633
        %2636 = vrot.lane.b32.xlu0 %v2579, 64
        %v2637 = vpop.permute.xlu0 %2636
        %2639 = vrot.lane.b32.xlu0 %v2579, 48
        %v2640 = vpop.permute.xlu0 %2639
        %2642 = vrot.lane.b32.xlu0 %v2579, 32
        %v2643 = vpop.permute.xlu0 %2642
        %2645 = vrot.lane.b32.xlu0 %v2579, 16
        %v2646 = vpop.permute.xlu0 %2645
        %v2648 = vcombine.low %v2578, %v2609
        %v2649 = vcombine.high %v2578, %v2609
        %v2651 = vunpack.c.l.s4 1983009808
        %v2652 = vunpack.c.0.s8 %v2651
        %v2653 = vlaneseq
        %v2654 = vshrl.u32 %v2653, 7
        %v2655 = vsub.s32 %v2652, %v2654
        %v2656 = vrot.slane %v2648, %v2655
        %v2658 = vunpack.c.l.s4 1983009808
        %v2659 = vunpack.c.0.s8 %v2658
        %v2660 = vlaneseq
        %v2661 = vshrl.u32 %v2660, 7
        %v2662 = vsub.s32 %v2659, %v2661
        %v2663 = vrot.slane %v2649, %v2662
        %v2664 = vcombine.low %v2606, %v2612
        %v2665 = vcombine.high %v2606, %v2612
        %v2667 = vunpack.c.l.s4 1983009808
        %v2668 = vunpack.c.0.s8 %v2667
        %v2669 = vlaneseq
        %v2670 = vshrl.u32 %v2669, 7
        %v2671 = vsub.s32 %v2668, %v2670
        %v2672 = vrot.slane %v2664, %v2671
        %v2674 = vunpack.c.l.s4 1983009808
        %v2675 = vunpack.c.0.s8 %v2674
        %v2676 = vlaneseq
        %v2677 = vshrl.u32 %v2676, 7
        %v2678 = vsub.s32 %v2675, %v2677
        %v2679 = vrot.slane %v2665, %v2678
        %v2680 = vcombine.low %v2615, %v2621
        %v2681 = vcombine.high %v2615, %v2621
        %v2683 = vunpack.c.l.s4 1983009808
        %v2684 = vunpack.c.0.s8 %v2683
        %v2685 = vlaneseq
        %v2686 = vshrl.u32 %v2685, 7
        %v2687 = vsub.s32 %v2684, %v2686
        %v2688 = vrot.slane %v2680, %v2687
        %v2690 = vunpack.c.l.s4 1983009808
        %v2691 = vunpack.c.0.s8 %v2690
        %v2692 = vlaneseq
        %v2693 = vshrl.u32 %v2692, 7
        %v2694 = vsub.s32 %v2691, %v2693
        %v2695 = vrot.slane %v2681, %v2694
        %v2696 = vcombine.low %v2618, %v2624
        %v2697 = vcombine.high %v2618, %v2624
        %v2699 = vunpack.c.l.s4 1983009808
        %v2700 = vunpack.c.0.s8 %v2699
        %v2701 = vlaneseq
        %v2702 = vshrl.u32 %v2701, 7
        %v2703 = vsub.s32 %v2700, %v2702
        %v2704 = vrot.slane %v2696, %v2703
        %v2706 = vunpack.c.l.s4 1983009808
        %v2707 = vunpack.c.0.s8 %v2706
        %v2708 = vlaneseq
        %v2709 = vshrl.u32 %v2708, 7
        %v2710 = vsub.s32 %v2707, %v2709
        %v2711 = vrot.slane %v2697, %v2710
        %v2712 = vcombine.low %v2656, %v2672
        %v2713 = vcombine.high %v2656, %v2672
        %v2715 = vunpack.c.l.s4 1934713408
        %v2716 = vunpack.c.0.s8 %v2715
        %v2717 = vlaneseq
        %v2718 = vshrl.u32 %v2717, 7
        %v2719 = vsub.s32 %v2716, %v2718
        %v2720 = vrot.slane %v2712, %v2719
        %v2722 = vunpack.c.l.s4 1934713408
        %v2723 = vunpack.c.0.s8 %v2722
        %v2724 = vlaneseq
        %v2725 = vshrl.u32 %v2724, 7
        %v2726 = vsub.s32 %v2723, %v2725
        %v2727 = vrot.slane %v2713, %v2726
        %v2728 = vcombine.low %v2663, %v2679
        %v2729 = vcombine.high %v2663, %v2679
        %v2731 = vunpack.c.l.s4 1934713408
        %v2732 = vunpack.c.0.s8 %v2731
        %v2733 = vlaneseq
        %v2734 = vshrl.u32 %v2733, 7
        %v2735 = vsub.s32 %v2732, %v2734
        %v2736 = vrot.slane %v2728, %v2735
        %v2738 = vunpack.c.l.s4 1934713408
        %v2739 = vunpack.c.0.s8 %v2738
        %v2740 = vlaneseq
        %v2741 = vshrl.u32 %v2740, 7
        %v2742 = vsub.s32 %v2739, %v2741
        %v2743 = vrot.slane %v2729, %v2742
        %v2744 = vcombine.low %v2688, %v2704
        %v2745 = vcombine.high %v2688, %v2704
        %v2747 = vunpack.c.l.s4 1934713408
        %v2748 = vunpack.c.0.s8 %v2747
        %v2749 = vlaneseq
        %v2750 = vshrl.u32 %v2749, 7
        %v2751 = vsub.s32 %v2748, %v2750
        %v2752 = vrot.slane %v2744, %v2751
        %v2754 = vunpack.c.l.s4 1934713408
        %v2755 = vunpack.c.0.s8 %v2754
        %v2756 = vlaneseq
        %v2757 = vshrl.u32 %v2756, 7
        %v2758 = vsub.s32 %v2755, %v2757
        %v2759 = vrot.slane %v2745, %v2758
        %v2760 = vcombine.low %v2695, %v2711
        %v2761 = vcombine.high %v2695, %v2711
        %v2763 = vunpack.c.l.s4 1934713408
        %v2764 = vunpack.c.0.s8 %v2763
        %v2765 = vlaneseq
        %v2766 = vshrl.u32 %v2765, 7
        %v2767 = vsub.s32 %v2764, %v2766
        %v2768 = vrot.slane %v2760, %v2767
        %v2770 = vunpack.c.l.s4 1934713408
        %v2771 = vunpack.c.0.s8 %v2770
        %v2772 = vlaneseq
        %v2773 = vshrl.u32 %v2772, 7
        %v2774 = vsub.s32 %v2771, %v2773
        %v2775 = vrot.slane %v2761, %v2774
        %v2776 = vcombine.low %v2720, %v2752
        %v2777 = vcombine.high %v2720, %v2752
        %v2778 = vcombine.low %v2727, %v2759
        %v2779 = vcombine.high %v2727, %v2759
        %v2780 = vcombine.low %v2736, %v2768
        %v2781 = vcombine.high %v2736, %v2768
        %v2782 = vcombine.low %v2743, %v2775
        %v2783 = vcombine.high %v2743, %v2775
        %v2784 = vcombine.low %v2579, %v2631
        %v2785 = vcombine.high %v2579, %v2631
        %v2787 = vunpack.c.l.s4 1983009808
        %v2788 = vunpack.c.0.s8 %v2787
        %v2789 = vlaneseq
        %v2790 = vshrl.u32 %v2789, 7
        %v2791 = vsub.s32 %v2788, %v2790
        %v2792 = vrot.slane %v2784, %v2791
        %v2794 = vunpack.c.l.s4 1983009808
        %v2795 = vunpack.c.0.s8 %v2794
        %v2796 = vlaneseq
        %v2797 = vshrl.u32 %v2796, 7
        %v2798 = vsub.s32 %v2795, %v2797
        %v2799 = vrot.slane %v2785, %v2798
        %v2800 = vcombine.low %v2628, %v2634
        %v2801 = vcombine.high %v2628, %v2634
        %v2803 = vunpack.c.l.s4 1983009808
        %v2804 = vunpack.c.0.s8 %v2803
        %v2805 = vlaneseq
        %v2806 = vshrl.u32 %v2805, 7
        %v2807 = vsub.s32 %v2804, %v2806
        %v2808 = vrot.slane %v2800, %v2807
        %v2810 = vunpack.c.l.s4 1983009808
        %v2811 = vunpack.c.0.s8 %v2810
        %v2812 = vlaneseq
        %v2813 = vshrl.u32 %v2812, 7
        %v2814 = vsub.s32 %v2811, %v2813
        %v2815 = vrot.slane %v2801, %v2814
        %v2816 = vcombine.low %v2637, %v2643
        %v2817 = vcombine.high %v2637, %v2643
        %v2819 = vunpack.c.l.s4 1983009808
        %v2820 = vunpack.c.0.s8 %v2819
        %v2821 = vlaneseq
        %v2822 = vshrl.u32 %v2821, 7
        %v2823 = vsub.s32 %v2820, %v2822
        %v2824 = vrot.slane %v2816, %v2823
        %v2826 = vunpack.c.l.s4 1983009808
        %v2827 = vunpack.c.0.s8 %v2826
        %v2828 = vlaneseq
        %v2829 = vshrl.u32 %v2828, 7
        %v2830 = vsub.s32 %v2827, %v2829
        %v2831 = vrot.slane %v2817, %v2830
        %v2832 = vcombine.low %v2640, %v2646
        %v2833 = vcombine.high %v2640, %v2646
        %v2835 = vunpack.c.l.s4 1983009808
        %v2836 = vunpack.c.0.s8 %v2835
        %v2837 = vlaneseq
        %v2838 = vshrl.u32 %v2837, 7
        %v2839 = vsub.s32 %v2836, %v2838
        %v2840 = vrot.slane %v2832, %v2839
        %v2842 = vunpack.c.l.s4 1983009808
        %v2843 = vunpack.c.0.s8 %v2842
        %v2844 = vlaneseq
        %v2845 = vshrl.u32 %v2844, 7
        %v2846 = vsub.s32 %v2843, %v2845
        %v2847 = vrot.slane %v2833, %v2846
        %v2848 = vcombine.low %v2792, %v2808
        %v2849 = vcombine.high %v2792, %v2808
        %v2851 = vunpack.c.l.s4 1934713408
        %v2852 = vunpack.c.0.s8 %v2851
        %v2853 = vlaneseq
        %v2854 = vshrl.u32 %v2853, 7
        %v2855 = vsub.s32 %v2852, %v2854
        %v2856 = vrot.slane %v2848, %v2855
        %v2858 = vunpack.c.l.s4 1934713408
        %v2859 = vunpack.c.0.s8 %v2858
        %v2860 = vlaneseq
        %v2861 = vshrl.u32 %v2860, 7
        %v2862 = vsub.s32 %v2859, %v2861
        %v2863 = vrot.slane %v2849, %v2862
        %v2864 = vcombine.low %v2799, %v2815
        %v2865 = vcombine.high %v2799, %v2815
        %v2867 = vunpack.c.l.s4 1934713408
        %v2868 = vunpack.c.0.s8 %v2867
        %v2869 = vlaneseq
        %v2870 = vshrl.u32 %v2869, 7
        %v2871 = vsub.s32 %v2868, %v2870
        %v2872 = vrot.slane %v2864, %v2871
        %v2874 = vunpack.c.l.s4 1934713408
        %v2875 = vunpack.c.0.s8 %v2874
        %v2876 = vlaneseq
        %v2877 = vshrl.u32 %v2876, 7
        %v2878 = vsub.s32 %v2875, %v2877
        %v2879 = vrot.slane %v2865, %v2878
        %v2880 = vcombine.low %v2824, %v2840
        %v2881 = vcombine.high %v2824, %v2840
        %v2883 = vunpack.c.l.s4 1934713408
        %v2884 = vunpack.c.0.s8 %v2883
        %v2885 = vlaneseq
        %v2886 = vshrl.u32 %v2885, 7
        %v2887 = vsub.s32 %v2884, %v2886
        %v2888 = vrot.slane %v2880, %v2887
        %v2890 = vunpack.c.l.s4 1934713408
        %v2891 = vunpack.c.0.s8 %v2890
        %v2892 = vlaneseq
        %v2893 = vshrl.u32 %v2892, 7
        %v2894 = vsub.s32 %v2891, %v2893
        %v2895 = vrot.slane %v2881, %v2894
        %v2896 = vcombine.low %v2831, %v2847
        %v2897 = vcombine.high %v2831, %v2847
        %v2899 = vunpack.c.l.s4 1934713408
        %v2900 = vunpack.c.0.s8 %v2899
        %v2901 = vlaneseq
        %v2902 = vshrl.u32 %v2901, 7
        %v2903 = vsub.s32 %v2900, %v2902
        %v2904 = vrot.slane %v2896, %v2903
        %v2906 = vunpack.c.l.s4 1934713408
        %v2907 = vunpack.c.0.s8 %v2906
        %v2908 = vlaneseq
        %v2909 = vshrl.u32 %v2908, 7
        %v2910 = vsub.s32 %v2907, %v2909
        %v2911 = vrot.slane %v2897, %v2910
        %v2912 = vcombine.low %v2856, %v2888
        %v2913 = vcombine.high %v2856, %v2888
        %v2914 = vcombine.low %v2863, %v2895
        %v2915 = vcombine.high %v2863, %v2895
        %v2916 = vcombine.low %v2872, %v2904
        %v2917 = vcombine.high %v2872, %v2904
        %v2918 = vcombine.low %v2879, %v2911
        %v2919 = vcombine.high %v2879, %v2911
        %2936 = vrot.lane.b32.xlu0 %v2776, 1
        %v2937 = vpop.permute.xlu0 %2936
        %2938 = vrot.lane.b32.xlu0 %v2912, 1
        %v2939 = vpop.permute.xlu0 %2938
        %2940 = vrot.lane.b32.xlu0 %v2777, 1
        %v2941 = vpop.permute.xlu0 %2940
        %2942 = vrot.lane.b32.xlu0 %v2913, 1
        %v2943 = vpop.permute.xlu0 %2942
        %2944 = vrot.lane.b32.xlu0 %v2778, 1
        %v2945 = vpop.permute.xlu0 %2944
        %2946 = vrot.lane.b32.xlu0 %v2914, 1
        %v2947 = vpop.permute.xlu0 %2946
        %2948 = vrot.lane.b32.xlu0 %v2779, 1
        %v2949 = vpop.permute.xlu0 %2948
        %2950 = vrot.lane.b32.xlu0 %v2915, 1
        %v2951 = vpop.permute.xlu0 %2950
        %2952 = vrot.lane.b32.xlu0 %v2780, 1
        %v2953 = vpop.permute.xlu0 %2952
        %2954 = vrot.lane.b32.xlu0 %v2916, 1
        %v2955 = vpop.permute.xlu0 %2954
        %2956 = vrot.lane.b32.xlu0 %v2781, 1
        %v2957 = vpop.permute.xlu0 %2956
        %2958 = vrot.lane.b32.xlu0 %v2917, 1
        %v2959 = vpop.permute.xlu0 %2958
        %2960 = vrot.lane.b32.xlu0 %v2782, 1
        %v2961 = vpop.permute.xlu0 %2960
        %2962 = vrot.lane.b32.xlu0 %v2918, 1
        %v2963 = vpop.permute.xlu0 %2962
        %2964 = vrot.lane.b32.xlu0 %v2783, 1
        %v2965 = vpop.permute.xlu0 %2964
        %2966 = vrot.lane.b32.xlu0 %v2919, 1
        %v2967 = vpop.permute.xlu0 %2966
        %2984 = vst.msk [vmem:[#allocation3 + $0x1] sm:$0xff] %vm351, %v2937
        %2985 = vst.msk [vmem:[#allocation3 + $0x9] sm:$0xff] %vm351, %v2939
        %2986 = vst.msk [vmem:[#allocation3 + $0x19] sm:$0xff] %vm351, %v2941
        %2987 = vst.msk [vmem:[#allocation3 + $0x21] sm:$0xff] %vm351, %v2943
        %2988 = vst.msk [vmem:[#allocation3 + $0x31] sm:$0xff] %vm351, %v2945
        %2989 = vst.msk [vmem:[#allocation3 + $0x39] sm:$0xff] %vm351, %v2947
        %2990 = vst.msk [vmem:[#allocation3 + $0x49] sm:$0xff] %vm351, %v2949
        %2991 = vst.msk [vmem:[#allocation3 + $0x51] sm:$0xff] %vm351, %v2951
        %2992 = vst.msk [vmem:[#allocation3 + $0x61] sm:$0xff] %vm351, %v2953
        %2993 = vst.msk [vmem:[#allocation3 + $0x69] sm:$0xff] %vm351, %v2955
        %2994 = vst.msk [vmem:[#allocation3 + $0x79] sm:$0xff] %vm351, %v2957
        %2995 = vst.msk [vmem:[#allocation3 + $0x81] sm:$0xff] %vm351, %v2959
        %2996 = vst.msk [vmem:[#allocation3 + $0x91] sm:$0xff] %vm351, %v2961
        %2997 = vst.msk [vmem:[#allocation3 + $0x99] sm:$0xff] %vm351, %v2963
        %2998 = vst.msk [vmem:[#allocation3 + $0xa9] sm:$0xff] %vm351, %v2965
        %2999 = vst.msk [vmem:[#allocation3 + $0xb1] sm:$0xff] %vm351, %v2967
        %v3000 = vld [vmem:[#allocation3] sm:$0xff]
        %v3001 = vld [vmem:[#allocation3 + $0x8] sm:$0xff]
        %v3002 = vld [vmem:[#allocation3 + $0x10] sm:$0x3]
        %v3003 = vld [vmem:[#allocation3 + $0x18] sm:$0xff]
        %v3004 = vld [vmem:[#allocation3 + $0x20] sm:$0xff]
        %v3005 = vld [vmem:[#allocation3 + $0x28] sm:$0x3]
        %v3006 = vld [vmem:[#allocation3 + $0x30] sm:$0xff]
        %v3007 = vld [vmem:[#allocation3 + $0x38] sm:$0xff]
        %v3008 = vld [vmem:[#allocation3 + $0x40] sm:$0x3]
        %v3009 = vld [vmem:[#allocation3 + $0x48] sm:$0xff]
        %v3010 = vld [vmem:[#allocation3 + $0x50] sm:$0xff]
        %v3011 = vld [vmem:[#allocation3 + $0x58] sm:$0x3]
        %v3012 = vld [vmem:[#allocation3 + $0x60] sm:$0xff]
        %v3013 = vld [vmem:[#allocation3 + $0x68] sm:$0xff]
        %v3014 = vld [vmem:[#allocation3 + $0x70] sm:$0x3]
        %v3015 = vld [vmem:[#allocation3 + $0x78] sm:$0xff]
        %v3016 = vld [vmem:[#allocation3 + $0x80] sm:$0xff]
        %v3017 = vld [vmem:[#allocation3 + $0x88] sm:$0x3]
        %v3018 = vld [vmem:[#allocation3 + $0x90] sm:$0xff]
        %v3019 = vld [vmem:[#allocation3 + $0x98] sm:$0xff]
        %v3020 = vld [vmem:[#allocation3 + $0xa0] sm:$0x3]
        %v3021 = vld [vmem:[#allocation3 + $0xa8] sm:$0xff]
        %v3022 = vld [vmem:[#allocation3 + $0xb0] sm:$0xff]
        %v3023 = vld [vmem:[#allocation3 + $0xb8] sm:$0x3]
        %v3024 = vcombine.low %v3000, %v3006
        %v3025 = vcombine.high %v3000, %v3006
        %v3027 = vunpack.c.l.s4 1983009808
        %v3028 = vunpack.c.0.s8 %v3027
        %v3029 = vlaneseq
        %v3030 = vshrl.u32 %v3029, 7
        %v3031 = vsub.s32 %v3028, %v3030
        %v3032 = vrot.slane %v3024, %v3031
        %v3034 = vunpack.c.l.s4 1983009808
        %v3035 = vunpack.c.0.s8 %v3034
        %v3036 = vlaneseq
        %v3037 = vshrl.u32 %v3036, 7
        %v3038 = vsub.s32 %v3035, %v3037
        %v3039 = vrot.slane %v3025, %v3038
        %v3040 = vcombine.low %v3003, %v3009
        %v3041 = vcombine.high %v3003, %v3009
        %v3043 = vunpack.c.l.s4 1983009808
        %v3044 = vunpack.c.0.s8 %v3043
        %v3045 = vlaneseq
        %v3046 = vshrl.u32 %v3045, 7
        %v3047 = vsub.s32 %v3044, %v3046
        %v3048 = vrot.slane %v3040, %v3047
        %v3050 = vunpack.c.l.s4 1983009808
        %v3051 = vunpack.c.0.s8 %v3050
        %v3052 = vlaneseq
        %v3053 = vshrl.u32 %v3052, 7
        %v3054 = vsub.s32 %v3051, %v3053
        %v3055 = vrot.slane %v3041, %v3054
        %v3056 = vcombine.low %v3012, %v3018
        %v3057 = vcombine.high %v3012, %v3018
        %v3059 = vunpack.c.l.s4 1983009808
        %v3060 = vunpack.c.0.s8 %v3059
        %v3061 = vlaneseq
        %v3062 = vshrl.u32 %v3061, 7
        %v3063 = vsub.s32 %v3060, %v3062
        %v3064 = vrot.slane %v3056, %v3063
        %v3066 = vunpack.c.l.s4 1983009808
        %v3067 = vunpack.c.0.s8 %v3066
        %v3068 = vlaneseq
        %v3069 = vshrl.u32 %v3068, 7
        %v3070 = vsub.s32 %v3067, %v3069
        %v3071 = vrot.slane %v3057, %v3070
        %v3072 = vcombine.low %v3015, %v3021
        %v3073 = vcombine.high %v3015, %v3021
        %v3075 = vunpack.c.l.s4 1983009808
        %v3076 = vunpack.c.0.s8 %v3075
        %v3077 = vlaneseq
        %v3078 = vshrl.u32 %v3077, 7
        %v3079 = vsub.s32 %v3076, %v3078
        %v3080 = vrot.slane %v3072, %v3079
        %v3082 = vunpack.c.l.s4 1983009808
        %v3083 = vunpack.c.0.s8 %v3082
        %v3084 = vlaneseq
        %v3085 = vshrl.u32 %v3084, 7
        %v3086 = vsub.s32 %v3083, %v3085
        %v3087 = vrot.slane %v3073, %v3086
        %v3088 = vcombine.low %v3032, %v3048
        %v3089 = vcombine.high %v3032, %v3048
        %v3091 = vunpack.c.l.s4 1934713408
        %v3092 = vunpack.c.0.s8 %v3091
        %v3093 = vlaneseq
        %v3094 = vshrl.u32 %v3093, 7
        %v3095 = vsub.s32 %v3092, %v3094
        %v3096 = vrot.slane %v3088, %v3095
        %v3098 = vunpack.c.l.s4 1934713408
        %v3099 = vunpack.c.0.s8 %v3098
        %v3100 = vlaneseq
        %v3101 = vshrl.u32 %v3100, 7
        %v3102 = vsub.s32 %v3099, %v3101
        %v3103 = vrot.slane %v3089, %v3102
        %v3104 = vcombine.low %v3039, %v3055
        %v3105 = vcombine.high %v3039, %v3055
        %v3107 = vunpack.c.l.s4 1934713408
        %v3108 = vunpack.c.0.s8 %v3107
        %v3109 = vlaneseq
        %v3110 = vshrl.u32 %v3109, 7
        %v3111 = vsub.s32 %v3108, %v3110
        %v3112 = vrot.slane %v3104, %v3111
        %v3114 = vunpack.c.l.s4 1934713408
        %v3115 = vunpack.c.0.s8 %v3114
        %v3116 = vlaneseq
        %v3117 = vshrl.u32 %v3116, 7
        %v3118 = vsub.s32 %v3115, %v3117
        %v3119 = vrot.slane %v3105, %v3118
        %v3120 = vcombine.low %v3064, %v3080
        %v3121 = vcombine.high %v3064, %v3080
        %v3123 = vunpack.c.l.s4 1934713408
        %v3124 = vunpack.c.0.s8 %v3123
        %v3125 = vlaneseq
        %v3126 = vshrl.u32 %v3125, 7
        %v3127 = vsub.s32 %v3124, %v3126
        %v3128 = vrot.slane %v3120, %v3127
        %v3130 = vunpack.c.l.s4 1934713408
        %v3131 = vunpack.c.0.s8 %v3130
        %v3132 = vlaneseq
        %v3133 = vshrl.u32 %v3132, 7
        %v3134 = vsub.s32 %v3131, %v3133
        %v3135 = vrot.slane %v3121, %v3134
        %v3136 = vcombine.low %v3071, %v3087
        %v3137 = vcombine.high %v3071, %v3087
        %v3139 = vunpack.c.l.s4 1934713408
        %v3140 = vunpack.c.0.s8 %v3139
        %v3141 = vlaneseq
        %v3142 = vshrl.u32 %v3141, 7
        %v3143 = vsub.s32 %v3140, %v3142
        %v3144 = vrot.slane %v3136, %v3143
        %v3146 = vunpack.c.l.s4 1934713408
        %v3147 = vunpack.c.0.s8 %v3146
        %v3148 = vlaneseq
        %v3149 = vshrl.u32 %v3148, 7
        %v3150 = vsub.s32 %v3147, %v3149
        %v3151 = vrot.slane %v3137, %v3150
        %v3152 = vcombine.low %v3096, %v3128
        %v3153 = vcombine.high %v3096, %v3128
        %v3154 = vcombine.low %v3103, %v3135
        %v3155 = vcombine.high %v3103, %v3135
        %v3156 = vcombine.low %v3112, %v3144
        %v3157 = vcombine.high %v3112, %v3144
        %v3158 = vcombine.low %v3119, %v3151
        %v3159 = vcombine.high %v3119, %v3151
        %v3160 = vcombine.low %v3001, %v3007
        %v3161 = vcombine.high %v3001, %v3007
        %v3163 = vunpack.c.l.s4 1983009808
        %v3164 = vunpack.c.0.s8 %v3163
        %v3165 = vlaneseq
        %v3166 = vshrl.u32 %v3165, 7
        %v3167 = vsub.s32 %v3164, %v3166
        %v3168 = vrot.slane %v3160, %v3167
        %v3170 = vunpack.c.l.s4 1983009808
        %v3171 = vunpack.c.0.s8 %v3170
        %v3172 = vlaneseq
        %v3173 = vshrl.u32 %v3172, 7
        %v3174 = vsub.s32 %v3171, %v3173
        %v3175 = vrot.slane %v3161, %v3174
        %v3176 = vcombine.low %v3004, %v3010
        %v3177 = vcombine.high %v3004, %v3010
        %v3179 = vunpack.c.l.s4 1983009808
        %v3180 = vunpack.c.0.s8 %v3179
        %v3181 = vlaneseq
        %v3182 = vshrl.u32 %v3181, 7
        %v3183 = vsub.s32 %v3180, %v3182
        %v3184 = vrot.slane %v3176, %v3183
        %v3186 = vunpack.c.l.s4 1983009808
        %v3187 = vunpack.c.0.s8 %v3186
        %v3188 = vlaneseq
        %v3189 = vshrl.u32 %v3188, 7
        %v3190 = vsub.s32 %v3187, %v3189
        %v3191 = vrot.slane %v3177, %v3190
        %v3192 = vcombine.low %v3013, %v3019
        %v3193 = vcombine.high %v3013, %v3019
        %v3195 = vunpack.c.l.s4 1983009808
        %v3196 = vunpack.c.0.s8 %v3195
        %v3197 = vlaneseq
        %v3198 = vshrl.u32 %v3197, 7
        %v3199 = vsub.s32 %v3196, %v3198
        %v3200 = vrot.slane %v3192, %v3199
        %v3202 = vunpack.c.l.s4 1983009808
        %v3203 = vunpack.c.0.s8 %v3202
        %v3204 = vlaneseq
        %v3205 = vshrl.u32 %v3204, 7
        %v3206 = vsub.s32 %v3203, %v3205
        %v3207 = vrot.slane %v3193, %v3206
        %v3208 = vcombine.low %v3016, %v3022
        %v3209 = vcombine.high %v3016, %v3022
        %v3211 = vunpack.c.l.s4 1983009808
        %v3212 = vunpack.c.0.s8 %v3211
        %v3213 = vlaneseq
        %v3214 = vshrl.u32 %v3213, 7
        %v3215 = vsub.s32 %v3212, %v3214
        %v3216 = vrot.slane %v3208, %v3215
        %v3218 = vunpack.c.l.s4 1983009808
        %v3219 = vunpack.c.0.s8 %v3218
        %v3220 = vlaneseq
        %v3221 = vshrl.u32 %v3220, 7
        %v3222 = vsub.s32 %v3219, %v3221
        %v3223 = vrot.slane %v3209, %v3222
        %v3224 = vcombine.low %v3168, %v3184
        %v3225 = vcombine.high %v3168, %v3184
        %v3227 = vunpack.c.l.s4 1934713408
        %v3228 = vunpack.c.0.s8 %v3227
        %v3229 = vlaneseq
        %v3230 = vshrl.u32 %v3229, 7
        %v3231 = vsub.s32 %v3228, %v3230
        %v3232 = vrot.slane %v3224, %v3231
        %v3234 = vunpack.c.l.s4 1934713408
        %v3235 = vunpack.c.0.s8 %v3234
        %v3236 = vlaneseq
        %v3237 = vshrl.u32 %v3236, 7
        %v3238 = vsub.s32 %v3235, %v3237
        %v3239 = vrot.slane %v3225, %v3238
        %v3240 = vcombine.low %v3175, %v3191
        %v3241 = vcombine.high %v3175, %v3191
        %v3243 = vunpack.c.l.s4 1934713408
        %v3244 = vunpack.c.0.s8 %v3243
        %v3245 = vlaneseq
        %v3246 = vshrl.u32 %v3245, 7
        %v3247 = vsub.s32 %v3244, %v3246
        %v3248 = vrot.slane %v3240, %v3247
        %v3250 = vunpack.c.l.s4 1934713408
        %v3251 = vunpack.c.0.s8 %v3250
        %v3252 = vlaneseq
        %v3253 = vshrl.u32 %v3252, 7
        %v3254 = vsub.s32 %v3251, %v3253
        %v3255 = vrot.slane %v3241, %v3254
        %v3256 = vcombine.low %v3200, %v3216
        %v3257 = vcombine.high %v3200, %v3216
        %v3259 = vunpack.c.l.s4 1934713408
        %v3260 = vunpack.c.0.s8 %v3259
        %v3261 = vlaneseq
        %v3262 = vshrl.u32 %v3261, 7
        %v3263 = vsub.s32 %v3260, %v3262
        %v3264 = vrot.slane %v3256, %v3263
        %v3266 = vunpack.c.l.s4 1934713408
        %v3267 = vunpack.c.0.s8 %v3266
        %v3268 = vlaneseq
        %v3269 = vshrl.u32 %v3268, 7
        %v3270 = vsub.s32 %v3267, %v3269
        %v3271 = vrot.slane %v3257, %v3270
        %v3272 = vcombine.low %v3207, %v3223
        %v3273 = vcombine.high %v3207, %v3223
        %v3275 = vunpack.c.l.s4 1934713408
        %v3276 = vunpack.c.0.s8 %v3275
        %v3277 = vlaneseq
        %v3278 = vshrl.u32 %v3277, 7
        %v3279 = vsub.s32 %v3276, %v3278
        %v3280 = vrot.slane %v3272, %v3279
        %v3282 = vunpack.c.l.s4 1934713408
        %v3283 = vunpack.c.0.s8 %v3282
        %v3284 = vlaneseq
        %v3285 = vshrl.u32 %v3284, 7
        %v3286 = vsub.s32 %v3283, %v3285
        %v3287 = vrot.slane %v3273, %v3286
        %v3288 = vcombine.low %v3232, %v3264
        %v3289 = vcombine.high %v3232, %v3264
        %v3290 = vcombine.low %v3239, %v3271
        %v3291 = vcombine.high %v3239, %v3271
        %v3292 = vcombine.low %v3248, %v3280
        %v3293 = vcombine.high %v3248, %v3280
        %v3294 = vcombine.low %v3255, %v3287
        %v3295 = vcombine.high %v3255, %v3287
        %3297 = vrot.lane.b32.xlu0 %v3153, 16
        %v3298 = vpop.permute.xlu0 %3297
        %3301 = vrot.lane.b32.xlu0 %v3154, 32
        %v3302 = vpop.permute.xlu0 %3301
        %3305 = vrot.lane.b32.xlu0 %v3155, 48
        %v3306 = vpop.permute.xlu0 %3305
        %3309 = vrot.lane.b32.xlu0 %v3156, 64
        %v3310 = vpop.permute.xlu0 %3309
        %3313 = vrot.lane.b32.xlu0 %v3157, 80
        %v3314 = vpop.permute.xlu0 %3313
        %3317 = vrot.lane.b32.xlu0 %v3158, 96
        %v3318 = vpop.permute.xlu0 %3317
        %3321 = vrot.lane.b32.xlu0 %v3159, 112
        %v3322 = vpop.permute.xlu0 %3321
        %3325 = vrot.lane.b32.xlu0 %v3289, 16
        %v3326 = vpop.permute.xlu0 %3325
        %3329 = vrot.lane.b32.xlu0 %v3290, 32
        %v3330 = vpop.permute.xlu0 %3329
        %3333 = vrot.lane.b32.xlu0 %v3291, 48
        %v3334 = vpop.permute.xlu0 %3333
        %3337 = vrot.lane.b32.xlu0 %v3292, 64
        %v3338 = vpop.permute.xlu0 %3337
        %3341 = vrot.lane.b32.xlu0 %v3293, 80
        %v3342 = vpop.permute.xlu0 %3341
        %3345 = vrot.lane.b32.xlu0 %v3294, 96
        %v3346 = vpop.permute.xlu0 %3345
        %3349 = vrot.lane.b32.xlu0 %v3295, 112
        %v3350 = vpop.permute.xlu0 %3349
        %v3352 = vsel %vm564, %v3152, %v3298
        %v3353 = vsel %vm566, %v3352, %v3302
        %v3354 = vsel %vm568, %v3353, %v3306
        %v3355 = vsel %vm570, %v3354, %v3310
        %v3356 = vsel %vm572, %v3355, %v3314
        %v3357 = vsel %vm574, %v3356, %v3318
        %v3358 = vsel %vm576, %v3357, %v3322
        %v3359 = vsel %vm564, %v3288, %v3326
        %v3360 = vsel %vm566, %v3359, %v3330
        %v3361 = vsel %vm568, %v3360, %v3334
        %v3362 = vsel %vm570, %v3361, %v3338
        %v3363 = vsel %vm572, %v3362, %v3342
        %v3364 = vsel %vm574, %v3363, %v3346
        %v3365 = vsel %vm576, %v3364, %v3350
        %3382 = vrot.lane.b32.xlu0 %v3000, 127
        %v3383 = vpop.permute.xlu0 %3382
        %3384 = vrot.lane.b32.xlu0 %v3001, 127
        %v3385 = vpop.permute.xlu0 %3384
        %3386 = vrot.lane.b32.xlu0 %v3003, 127
        %v3387 = vpop.permute.xlu0 %3386
        %3388 = vrot.lane.b32.xlu0 %v3004, 127
        %v3389 = vpop.permute.xlu0 %3388
        %3390 = vrot.lane.b32.xlu0 %v3006, 127
        %v3391 = vpop.permute.xlu0 %3390
        %3392 = vrot.lane.b32.xlu0 %v3007, 127
        %v3393 = vpop.permute.xlu0 %3392
        %3394 = vrot.lane.b32.xlu0 %v3009, 127
        %v3395 = vpop.permute.xlu0 %3394
        %3396 = vrot.lane.b32.xlu0 %v3010, 127
        %v3397 = vpop.permute.xlu0 %3396
        %3398 = vrot.lane.b32.xlu0 %v3012, 127
        %v3399 = vpop.permute.xlu0 %3398
        %3400 = vrot.lane.b32.xlu0 %v3013, 127
        %v3401 = vpop.permute.xlu0 %3400
        %3402 = vrot.lane.b32.xlu0 %v3015, 127
        %v3403 = vpop.permute.xlu0 %3402
        %3404 = vrot.lane.b32.xlu0 %v3016, 127
        %v3405 = vpop.permute.xlu0 %3404
        %3406 = vrot.lane.b32.xlu0 %v3018, 127
        %v3407 = vpop.permute.xlu0 %3406
        %3408 = vrot.lane.b32.xlu0 %v3019, 127
        %v3409 = vpop.permute.xlu0 %3408
        %3410 = vrot.lane.b32.xlu0 %v3021, 127
        %v3411 = vpop.permute.xlu0 %3410
        %3412 = vrot.lane.b32.xlu0 %v3022, 127
        %v3413 = vpop.permute.xlu0 %3412
        %v3430 = vcombine.low %v3383, %v3391
        %v3431 = vcombine.high %v3383, %v3391
        %v3433 = vunpack.c.l.s4 1983009808
        %v3434 = vunpack.c.0.s8 %v3433
        %v3435 = vlaneseq
        %v3436 = vshrl.u32 %v3435, 7
        %v3437 = vsub.s32 %v3434, %v3436
        %v3438 = vrot.slane %v3430, %v3437
        %v3440 = vunpack.c.l.s4 1983009808
        %v3441 = vunpack.c.0.s8 %v3440
        %v3442 = vlaneseq
        %v3443 = vshrl.u32 %v3442, 7
        %v3444 = vsub.s32 %v3441, %v3443
        %v3445 = vrot.slane %v3431, %v3444
        %v3446 = vcombine.low %v3387, %v3395
        %v3447 = vcombine.high %v3387, %v3395
        %v3449 = vunpack.c.l.s4 1983009808
        %v3450 = vunpack.c.0.s8 %v3449
        %v3451 = vlaneseq
        %v3452 = vshrl.u32 %v3451, 7
        %v3453 = vsub.s32 %v3450, %v3452
        %v3454 = vrot.slane %v3446, %v3453
        %v3456 = vunpack.c.l.s4 1983009808
        %v3457 = vunpack.c.0.s8 %v3456
        %v3458 = vlaneseq
        %v3459 = vshrl.u32 %v3458, 7
        %v3460 = vsub.s32 %v3457, %v3459
        %v3461 = vrot.slane %v3447, %v3460
        %v3462 = vcombine.low %v3399, %v3407
        %v3463 = vcombine.high %v3399, %v3407
        %v3465 = vunpack.c.l.s4 1983009808
        %v3466 = vunpack.c.0.s8 %v3465
        %v3467 = vlaneseq
        %v3468 = vshrl.u32 %v3467, 7
        %v3469 = vsub.s32 %v3466, %v3468
        %v3470 = vrot.slane %v3462, %v3469
        %v3472 = vunpack.c.l.s4 1983009808
        %v3473 = vunpack.c.0.s8 %v3472
        %v3474 = vlaneseq
        %v3475 = vshrl.u32 %v3474, 7
        %v3476 = vsub.s32 %v3473, %v3475
        %v3477 = vrot.slane %v3463, %v3476
        %v3478 = vcombine.low %v3403, %v3411
        %v3479 = vcombine.high %v3403, %v3411
        %v3481 = vunpack.c.l.s4 1983009808
        %v3482 = vunpack.c.0.s8 %v3481
        %v3483 = vlaneseq
        %v3484 = vshrl.u32 %v3483, 7
        %v3485 = vsub.s32 %v3482, %v3484
        %v3486 = vrot.slane %v3478, %v3485
        %v3488 = vunpack.c.l.s4 1983009808
        %v3489 = vunpack.c.0.s8 %v3488
        %v3490 = vlaneseq
        %v3491 = vshrl.u32 %v3490, 7
        %v3492 = vsub.s32 %v3489, %v3491
        %v3493 = vrot.slane %v3479, %v3492
        %v3494 = vcombine.low %v3438, %v3454
        %v3495 = vcombine.high %v3438, %v3454
        %v3497 = vunpack.c.l.s4 1934713408
        %v3498 = vunpack.c.0.s8 %v3497
        %v3499 = vlaneseq
        %v3500 = vshrl.u32 %v3499, 7
        %v3501 = vsub.s32 %v3498, %v3500
        %v3502 = vrot.slane %v3494, %v3501
        %v3504 = vunpack.c.l.s4 1934713408
        %v3505 = vunpack.c.0.s8 %v3504
        %v3506 = vlaneseq
        %v3507 = vshrl.u32 %v3506, 7
        %v3508 = vsub.s32 %v3505, %v3507
        %v3509 = vrot.slane %v3495, %v3508
        %v3510 = vcombine.low %v3445, %v3461
        %v3511 = vcombine.high %v3445, %v3461
        %v3513 = vunpack.c.l.s4 1934713408
        %v3514 = vunpack.c.0.s8 %v3513
        %v3515 = vlaneseq
        %v3516 = vshrl.u32 %v3515, 7
        %v3517 = vsub.s32 %v3514, %v3516
        %v3518 = vrot.slane %v3510, %v3517
        %v3520 = vunpack.c.l.s4 1934713408
        %v3521 = vunpack.c.0.s8 %v3520
        %v3522 = vlaneseq
        %v3523 = vshrl.u32 %v3522, 7
        %v3524 = vsub.s32 %v3521, %v3523
        %v3525 = vrot.slane %v3511, %v3524
        %v3526 = vcombine.low %v3470, %v3486
        %v3527 = vcombine.high %v3470, %v3486
        %v3529 = vunpack.c.l.s4 1934713408
        %v3530 = vunpack.c.0.s8 %v3529
        %v3531 = vlaneseq
        %v3532 = vshrl.u32 %v3531, 7
        %v3533 = vsub.s32 %v3530, %v3532
        %v3534 = vrot.slane %v3526, %v3533
        %v3536 = vunpack.c.l.s4 1934713408
        %v3537 = vunpack.c.0.s8 %v3536
        %v3538 = vlaneseq
        %v3539 = vshrl.u32 %v3538, 7
        %v3540 = vsub.s32 %v3537, %v3539
        %v3541 = vrot.slane %v3527, %v3540
        %v3542 = vcombine.low %v3477, %v3493
        %v3543 = vcombine.high %v3477, %v3493
        %v3545 = vunpack.c.l.s4 1934713408
        %v3546 = vunpack.c.0.s8 %v3545
        %v3547 = vlaneseq
        %v3548 = vshrl.u32 %v3547, 7
        %v3549 = vsub.s32 %v3546, %v3548
        %v3550 = vrot.slane %v3542, %v3549
        %v3552 = vunpack.c.l.s4 1934713408
        %v3553 = vunpack.c.0.s8 %v3552
        %v3554 = vlaneseq
        %v3555 = vshrl.u32 %v3554, 7
        %v3556 = vsub.s32 %v3553, %v3555
        %v3557 = vrot.slane %v3543, %v3556
        %v3558 = vcombine.low %v3502, %v3534
        %v3559 = vcombine.high %v3502, %v3534
        %v3560 = vcombine.low %v3509, %v3541
        %v3561 = vcombine.high %v3509, %v3541
        %v3562 = vcombine.low %v3518, %v3550
        %v3563 = vcombine.high %v3518, %v3550
        %v3564 = vcombine.low %v3525, %v3557
        %v3565 = vcombine.high %v3525, %v3557
        %v3566 = vcombine.low %v3385, %v3393
        %v3567 = vcombine.high %v3385, %v3393
        %v3569 = vunpack.c.l.s4 1983009808
        %v3570 = vunpack.c.0.s8 %v3569
        %v3571 = vlaneseq
        %v3572 = vshrl.u32 %v3571, 7
        %v3573 = vsub.s32 %v3570, %v3572
        %v3574 = vrot.slane %v3566, %v3573
        %v3576 = vunpack.c.l.s4 1983009808
        %v3577 = vunpack.c.0.s8 %v3576
        %v3578 = vlaneseq
        %v3579 = vshrl.u32 %v3578, 7
        %v3580 = vsub.s32 %v3577, %v3579
        %v3581 = vrot.slane %v3567, %v3580
        %v3582 = vcombine.low %v3389, %v3397
        %v3583 = vcombine.high %v3389, %v3397
        %v3585 = vunpack.c.l.s4 1983009808
        %v3586 = vunpack.c.0.s8 %v3585
        %v3587 = vlaneseq
        %v3588 = vshrl.u32 %v3587, 7
        %v3589 = vsub.s32 %v3586, %v3588
        %v3590 = vrot.slane %v3582, %v3589
        %v3592 = vunpack.c.l.s4 1983009808
        %v3593 = vunpack.c.0.s8 %v3592
        %v3594 = vlaneseq
        %v3595 = vshrl.u32 %v3594, 7
        %v3596 = vsub.s32 %v3593, %v3595
        %v3597 = vrot.slane %v3583, %v3596
        %v3598 = vcombine.low %v3401, %v3409
        %v3599 = vcombine.high %v3401, %v3409
        %v3601 = vunpack.c.l.s4 1983009808
        %v3602 = vunpack.c.0.s8 %v3601
        %v3603 = vlaneseq
        %v3604 = vshrl.u32 %v3603, 7
        %v3605 = vsub.s32 %v3602, %v3604
        %v3606 = vrot.slane %v3598, %v3605
        %v3608 = vunpack.c.l.s4 1983009808
        %v3609 = vunpack.c.0.s8 %v3608
        %v3610 = vlaneseq
        %v3611 = vshrl.u32 %v3610, 7
        %v3612 = vsub.s32 %v3609, %v3611
        %v3613 = vrot.slane %v3599, %v3612
        %v3614 = vcombine.low %v3405, %v3413
        %v3615 = vcombine.high %v3405, %v3413
        %v3617 = vunpack.c.l.s4 1983009808
        %v3618 = vunpack.c.0.s8 %v3617
        %v3619 = vlaneseq
        %v3620 = vshrl.u32 %v3619, 7
        %v3621 = vsub.s32 %v3618, %v3620
        %v3622 = vrot.slane %v3614, %v3621
        %v3624 = vunpack.c.l.s4 1983009808
        %v3625 = vunpack.c.0.s8 %v3624
        %v3626 = vlaneseq
        %v3627 = vshrl.u32 %v3626, 7
        %v3628 = vsub.s32 %v3625, %v3627
        %v3629 = vrot.slane %v3615, %v3628
        %v3630 = vcombine.low %v3574, %v3590
        %v3631 = vcombine.high %v3574, %v3590
        %v3633 = vunpack.c.l.s4 1934713408
        %v3634 = vunpack.c.0.s8 %v3633
        %v3635 = vlaneseq
        %v3636 = vshrl.u32 %v3635, 7
        %v3637 = vsub.s32 %v3634, %v3636
        %v3638 = vrot.slane %v3630, %v3637
        %v3640 = vunpack.c.l.s4 1934713408
        %v3641 = vunpack.c.0.s8 %v3640
        %v3642 = vlaneseq
        %v3643 = vshrl.u32 %v3642, 7
        %v3644 = vsub.s32 %v3641, %v3643
        %v3645 = vrot.slane %v3631, %v3644
        %v3646 = vcombine.low %v3581, %v3597
        %v3647 = vcombine.high %v3581, %v3597
        %v3649 = vunpack.c.l.s4 1934713408
        %v3650 = vunpack.c.0.s8 %v3649
        %v3651 = vlaneseq
        %v3652 = vshrl.u32 %v3651, 7
        %v3653 = vsub.s32 %v3650, %v3652
        %v3654 = vrot.slane %v3646, %v3653
        %v3656 = vunpack.c.l.s4 1934713408
        %v3657 = vunpack.c.0.s8 %v3656
        %v3658 = vlaneseq
        %v3659 = vshrl.u32 %v3658, 7
        %v3660 = vsub.s32 %v3657, %v3659
        %v3661 = vrot.slane %v3647, %v3660
        %v3662 = vcombine.low %v3606, %v3622
        %v3663 = vcombine.high %v3606, %v3622
        %v3665 = vunpack.c.l.s4 1934713408
        %v3666 = vunpack.c.0.s8 %v3665
        %v3667 = vlaneseq
        %v3668 = vshrl.u32 %v3667, 7
        %v3669 = vsub.s32 %v3666, %v3668
        %v3670 = vrot.slane %v3662, %v3669
        %v3672 = vunpack.c.l.s4 1934713408
        %v3673 = vunpack.c.0.s8 %v3672
        %v3674 = vlaneseq
        %v3675 = vshrl.u32 %v3674, 7
        %v3676 = vsub.s32 %v3673, %v3675
        %v3677 = vrot.slane %v3663, %v3676
        %v3678 = vcombine.low %v3613, %v3629
        %v3679 = vcombine.high %v3613, %v3629
        %v3681 = vunpack.c.l.s4 1934713408
        %v3682 = vunpack.c.0.s8 %v3681
        %v3683 = vlaneseq
        %v3684 = vshrl.u32 %v3683, 7
        %v3685 = vsub.s32 %v3682, %v3684
        %v3686 = vrot.slane %v3678, %v3685
        %v3688 = vunpack.c.l.s4 1934713408
        %v3689 = vunpack.c.0.s8 %v3688
        %v3690 = vlaneseq
        %v3691 = vshrl.u32 %v3690, 7
        %v3692 = vsub.s32 %v3689, %v3691
        %v3693 = vrot.slane %v3679, %v3692
        %v3694 = vcombine.low %v3638, %v3670
        %v3695 = vcombine.high %v3638, %v3670
        %v3696 = vcombine.low %v3645, %v3677
        %v3697 = vcombine.high %v3645, %v3677
        %v3698 = vcombine.low %v3654, %v3686
        %v3699 = vcombine.high %v3654, %v3686
        %v3700 = vcombine.low %v3661, %v3693
        %v3701 = vcombine.high %v3661, %v3693
        %3703 = vrot.lane.b32.xlu0 %v3559, 16
        %v3704 = vpop.permute.xlu0 %3703
        %3707 = vrot.lane.b32.xlu0 %v3560, 32
        %v3708 = vpop.permute.xlu0 %3707
        %3711 = vrot.lane.b32.xlu0 %v3561, 48
        %v3712 = vpop.permute.xlu0 %3711
        %3715 = vrot.lane.b32.xlu0 %v3562, 64
        %v3716 = vpop.permute.xlu0 %3715
        %3719 = vrot.lane.b32.xlu0 %v3563, 80
        %v3720 = vpop.permute.xlu0 %3719
        %3723 = vrot.lane.b32.xlu0 %v3564, 96
        %v3724 = vpop.permute.xlu0 %3723
        %3727 = vrot.lane.b32.xlu0 %v3565, 112
        %v3728 = vpop.permute.xlu0 %3727
        %3731 = vrot.lane.b32.xlu0 %v3695, 16
        %v3732 = vpop.permute.xlu0 %3731
        %3735 = vrot.lane.b32.xlu0 %v3696, 32
        %v3736 = vpop.permute.xlu0 %3735
        %3739 = vrot.lane.b32.xlu0 %v3697, 48
        %v3740 = vpop.permute.xlu0 %3739
        %3743 = vrot.lane.b32.xlu0 %v3698, 64
        %v3744 = vpop.permute.xlu0 %3743
        %3747 = vrot.lane.b32.xlu0 %v3699, 80
        %v3748 = vpop.permute.xlu0 %3747
        %3751 = vrot.lane.b32.xlu0 %v3700, 96
        %v3752 = vpop.permute.xlu0 %3751
        %3755 = vrot.lane.b32.xlu0 %v3701, 112
        %v3756 = vpop.permute.xlu0 %3755
        %v3758 = vsel %vm564, %v3558, %v3704
        %v3759 = vsel %vm566, %v3758, %v3708
        %v3760 = vsel %vm568, %v3759, %v3712
        %v3761 = vsel %vm570, %v3760, %v3716
        %v3762 = vsel %vm572, %v3761, %v3720
        %v3763 = vsel %vm574, %v3762, %v3724
        %v3764 = vsel %vm576, %v3763, %v3728
        %v3765 = vsel %vm564, %v3694, %v3732
        %v3766 = vsel %vm566, %v3765, %v3736
        %v3767 = vsel %vm568, %v3766, %v3740
        %v3768 = vsel %vm570, %v3767, %v3744
        %v3769 = vsel %vm572, %v3768, %v3748
        %v3770 = vsel %vm574, %v3769, %v3752
        %v3771 = vsel %vm576, %v3770, %v3756
        %3772 = vrot.lane.b32.xlu0 %v3000, 126
        %v3773 = vpop.permute.xlu0 %3772
        %3774 = vrot.lane.b32.xlu0 %v3001, 126
        %v3775 = vpop.permute.xlu0 %3774
        %3776 = vrot.lane.b32.xlu0 %v3003, 126
        %v3777 = vpop.permute.xlu0 %3776
        %3778 = vrot.lane.b32.xlu0 %v3004, 126
        %v3779 = vpop.permute.xlu0 %3778
        %3780 = vrot.lane.b32.xlu0 %v3006, 126
        %v3781 = vpop.permute.xlu0 %3780
        %3782 = vrot.lane.b32.xlu0 %v3007, 126
        %v3783 = vpop.permute.xlu0 %3782
        %3784 = vrot.lane.b32.xlu0 %v3009, 126
        %v3785 = vpop.permute.xlu0 %3784
        %3786 = vrot.lane.b32.xlu0 %v3010, 126
        %v3787 = vpop.permute.xlu0 %3786
        %3788 = vrot.lane.b32.xlu0 %v3012, 126
        %v3789 = vpop.permute.xlu0 %3788
        %3790 = vrot.lane.b32.xlu0 %v3013, 126
        %v3791 = vpop.permute.xlu0 %3790
        %3792 = vrot.lane.b32.xlu0 %v3015, 126
        %v3793 = vpop.permute.xlu0 %3792
        %3794 = vrot.lane.b32.xlu0 %v3016, 126
        %v3795 = vpop.permute.xlu0 %3794
        %3796 = vrot.lane.b32.xlu0 %v3018, 126
        %v3797 = vpop.permute.xlu0 %3796
        %3798 = vrot.lane.b32.xlu0 %v3019, 126
        %v3799 = vpop.permute.xlu0 %3798
        %3800 = vrot.lane.b32.xlu0 %v3021, 126
        %v3801 = vpop.permute.xlu0 %3800
        %3802 = vrot.lane.b32.xlu0 %v3022, 126
        %v3803 = vpop.permute.xlu0 %3802
        %v3820 = vcombine.low %v3773, %v3781
        %v3821 = vcombine.high %v3773, %v3781
        %v3823 = vunpack.c.l.s4 1983009808
        %v3824 = vunpack.c.0.s8 %v3823
        %v3825 = vlaneseq
        %v3826 = vshrl.u32 %v3825, 7
        %v3827 = vsub.s32 %v3824, %v3826
        %v3828 = vrot.slane %v3820, %v3827
        %v3830 = vunpack.c.l.s4 1983009808
        %v3831 = vunpack.c.0.s8 %v3830
        %v3832 = vlaneseq
        %v3833 = vshrl.u32 %v3832, 7
        %v3834 = vsub.s32 %v3831, %v3833
        %v3835 = vrot.slane %v3821, %v3834
        %v3836 = vcombine.low %v3777, %v3785
        %v3837 = vcombine.high %v3777, %v3785
        %v3839 = vunpack.c.l.s4 1983009808
        %v3840 = vunpack.c.0.s8 %v3839
        %v3841 = vlaneseq
        %v3842 = vshrl.u32 %v3841, 7
        %v3843 = vsub.s32 %v3840, %v3842
        %v3844 = vrot.slane %v3836, %v3843
        %v3846 = vunpack.c.l.s4 1983009808
        %v3847 = vunpack.c.0.s8 %v3846
        %v3848 = vlaneseq
        %v3849 = vshrl.u32 %v3848, 7
        %v3850 = vsub.s32 %v3847, %v3849
        %v3851 = vrot.slane %v3837, %v3850
        %v3852 = vcombine.low %v3789, %v3797
        %v3853 = vcombine.high %v3789, %v3797
        %v3855 = vunpack.c.l.s4 1983009808
        %v3856 = vunpack.c.0.s8 %v3855
        %v3857 = vlaneseq
        %v3858 = vshrl.u32 %v3857, 7
        %v3859 = vsub.s32 %v3856, %v3858
        %v3860 = vrot.slane %v3852, %v3859
        %v3862 = vunpack.c.l.s4 1983009808
        %v3863 = vunpack.c.0.s8 %v3862
        %v3864 = vlaneseq
        %v3865 = vshrl.u32 %v3864, 7
        %v3866 = vsub.s32 %v3863, %v3865
        %v3867 = vrot.slane %v3853, %v3866
        %v3868 = vcombine.low %v3793, %v3801
        %v3869 = vcombine.high %v3793, %v3801
        %v3871 = vunpack.c.l.s4 1983009808
        %v3872 = vunpack.c.0.s8 %v3871
        %v3873 = vlaneseq
        %v3874 = vshrl.u32 %v3873, 7
        %v3875 = vsub.s32 %v3872, %v3874
        %v3876 = vrot.slane %v3868, %v3875
        %v3878 = vunpack.c.l.s4 1983009808
        %v3879 = vunpack.c.0.s8 %v3878
        %v3880 = vlaneseq
        %v3881 = vshrl.u32 %v3880, 7
        %v3882 = vsub.s32 %v3879, %v3881
        %v3883 = vrot.slane %v3869, %v3882
        %v3884 = vcombine.low %v3828, %v3844
        %v3885 = vcombine.high %v3828, %v3844
        %v3887 = vunpack.c.l.s4 1934713408
        %v3888 = vunpack.c.0.s8 %v3887
        %v3889 = vlaneseq
        %v3890 = vshrl.u32 %v3889, 7
        %v3891 = vsub.s32 %v3888, %v3890
        %v3892 = vrot.slane %v3884, %v3891
        %v3894 = vunpack.c.l.s4 1934713408
        %v3895 = vunpack.c.0.s8 %v3894
        %v3896 = vlaneseq
        %v3897 = vshrl.u32 %v3896, 7
        %v3898 = vsub.s32 %v3895, %v3897
        %v3899 = vrot.slane %v3885, %v3898
        %v3900 = vcombine.low %v3835, %v3851
        %v3901 = vcombine.high %v3835, %v3851
        %v3903 = vunpack.c.l.s4 1934713408
        %v3904 = vunpack.c.0.s8 %v3903
        %v3905 = vlaneseq
        %v3906 = vshrl.u32 %v3905, 7
        %v3907 = vsub.s32 %v3904, %v3906
        %v3908 = vrot.slane %v3900, %v3907
        %v3910 = vunpack.c.l.s4 1934713408
        %v3911 = vunpack.c.0.s8 %v3910
        %v3912 = vlaneseq
        %v3913 = vshrl.u32 %v3912, 7
        %v3914 = vsub.s32 %v3911, %v3913
        %v3915 = vrot.slane %v3901, %v3914
        %v3916 = vcombine.low %v3860, %v3876
        %v3917 = vcombine.high %v3860, %v3876
        %v3919 = vunpack.c.l.s4 1934713408
        %v3920 = vunpack.c.0.s8 %v3919
        %v3921 = vlaneseq
        %v3922 = vshrl.u32 %v3921, 7
        %v3923 = vsub.s32 %v3920, %v3922
        %v3924 = vrot.slane %v3916, %v3923
        %v3926 = vunpack.c.l.s4 1934713408
        %v3927 = vunpack.c.0.s8 %v3926
        %v3928 = vlaneseq
        %v3929 = vshrl.u32 %v3928, 7
        %v3930 = vsub.s32 %v3927, %v3929
        %v3931 = vrot.slane %v3917, %v3930
        %v3932 = vcombine.low %v3867, %v3883
        %v3933 = vcombine.high %v3867, %v3883
        %v3935 = vunpack.c.l.s4 1934713408
        %v3936 = vunpack.c.0.s8 %v3935
        %v3937 = vlaneseq
        %v3938 = vshrl.u32 %v3937, 7
        %v3939 = vsub.s32 %v3936, %v3938
        %v3940 = vrot.slane %v3932, %v3939
        %v3942 = vunpack.c.l.s4 1934713408
        %v3943 = vunpack.c.0.s8 %v3942
        %v3944 = vlaneseq
        %v3945 = vshrl.u32 %v3944, 7
        %v3946 = vsub.s32 %v3943, %v3945
        %v3947 = vrot.slane %v3933, %v3946
        %v3948 = vcombine.low %v3892, %v3924
        %v3949 = vcombine.high %v3892, %v3924
        %v3950 = vcombine.low %v3899, %v3931
        %v3951 = vcombine.high %v3899, %v3931
        %v3952 = vcombine.low %v3908, %v3940
        %v3953 = vcombine.high %v3908, %v3940
        %v3954 = vcombine.low %v3915, %v3947
        %v3955 = vcombine.high %v3915, %v3947
        %v3956 = vcombine.low %v3775, %v3783
        %v3957 = vcombine.high %v3775, %v3783
        %v3959 = vunpack.c.l.s4 1983009808
        %v3960 = vunpack.c.0.s8 %v3959
        %v3961 = vlaneseq
        %v3962 = vshrl.u32 %v3961, 7
        %v3963 = vsub.s32 %v3960, %v3962
        %v3964 = vrot.slane %v3956, %v3963
        %v3966 = vunpack.c.l.s4 1983009808
        %v3967 = vunpack.c.0.s8 %v3966
        %v3968 = vlaneseq
        %v3969 = vshrl.u32 %v3968, 7
        %v3970 = vsub.s32 %v3967, %v3969
        %v3971 = vrot.slane %v3957, %v3970
        %v3972 = vcombine.low %v3779, %v3787
        %v3973 = vcombine.high %v3779, %v3787
        %v3975 = vunpack.c.l.s4 1983009808
        %v3976 = vunpack.c.0.s8 %v3975
        %v3977 = vlaneseq
        %v3978 = vshrl.u32 %v3977, 7
        %v3979 = vsub.s32 %v3976, %v3978
        %v3980 = vrot.slane %v3972, %v3979
        %v3982 = vunpack.c.l.s4 1983009808
        %v3983 = vunpack.c.0.s8 %v3982
        %v3984 = vlaneseq
        %v3985 = vshrl.u32 %v3984, 7
        %v3986 = vsub.s32 %v3983, %v3985
        %v3987 = vrot.slane %v3973, %v3986
        %v3988 = vcombine.low %v3791, %v3799
        %v3989 = vcombine.high %v3791, %v3799
        %v3991 = vunpack.c.l.s4 1983009808
        %v3992 = vunpack.c.0.s8 %v3991
        %v3993 = vlaneseq
        %v3994 = vshrl.u32 %v3993, 7
        %v3995 = vsub.s32 %v3992, %v3994
        %v3996 = vrot.slane %v3988, %v3995
        %v3998 = vunpack.c.l.s4 1983009808
        %v3999 = vunpack.c.0.s8 %v3998
        %v4000 = vlaneseq
        %v4001 = vshrl.u32 %v4000, 7
        %v4002 = vsub.s32 %v3999, %v4001
        %v4003 = vrot.slane %v3989, %v4002
        %v4004 = vcombine.low %v3795, %v3803
        %v4005 = vcombine.high %v3795, %v3803
        %v4007 = vunpack.c.l.s4 1983009808
        %v4008 = vunpack.c.0.s8 %v4007
        %v4009 = vlaneseq
        %v4010 = vshrl.u32 %v4009, 7
        %v4011 = vsub.s32 %v4008, %v4010
        %v4012 = vrot.slane %v4004, %v4011
        %v4014 = vunpack.c.l.s4 1983009808
        %v4015 = vunpack.c.0.s8 %v4014
        %v4016 = vlaneseq
        %v4017 = vshrl.u32 %v4016, 7
        %v4018 = vsub.s32 %v4015, %v4017
        %v4019 = vrot.slane %v4005, %v4018
        %v4020 = vcombine.low %v3964, %v3980
        %v4021 = vcombine.high %v3964, %v3980
        %v4023 = vunpack.c.l.s4 1934713408
        %v4024 = vunpack.c.0.s8 %v4023
        %v4025 = vlaneseq
        %v4026 = vshrl.u32 %v4025, 7
        %v4027 = vsub.s32 %v4024, %v4026
        %v4028 = vrot.slane %v4020, %v4027
        %v4030 = vunpack.c.l.s4 1934713408
        %v4031 = vunpack.c.0.s8 %v4030
        %v4032 = vlaneseq
        %v4033 = vshrl.u32 %v4032, 7
        %v4034 = vsub.s32 %v4031, %v4033
        %v4035 = vrot.slane %v4021, %v4034
        %v4036 = vcombine.low %v3971, %v3987
        %v4037 = vcombine.high %v3971, %v3987
        %v4039 = vunpack.c.l.s4 1934713408
        %v4040 = vunpack.c.0.s8 %v4039
        %v4041 = vlaneseq
        %v4042 = vshrl.u32 %v4041, 7
        %v4043 = vsub.s32 %v4040, %v4042
        %v4044 = vrot.slane %v4036, %v4043
        %v4046 = vunpack.c.l.s4 1934713408
        %v4047 = vunpack.c.0.s8 %v4046
        %v4048 = vlaneseq
        %v4049 = vshrl.u32 %v4048, 7
        %v4050 = vsub.s32 %v4047, %v4049
        %v4051 = vrot.slane %v4037, %v4050
        %v4052 = vcombine.low %v3996, %v4012
        %v4053 = vcombine.high %v3996, %v4012
        %v4055 = vunpack.c.l.s4 1934713408
        %v4056 = vunpack.c.0.s8 %v4055
        %v4057 = vlaneseq
        %v4058 = vshrl.u32 %v4057, 7
        %v4059 = vsub.s32 %v4056, %v4058
        %v4060 = vrot.slane %v4052, %v4059
        %v4062 = vunpack.c.l.s4 1934713408
        %v4063 = vunpack.c.0.s8 %v4062
        %v4064 = vlaneseq
        %v4065 = vshrl.u32 %v4064, 7
        %v4066 = vsub.s32 %v4063, %v4065
        %v4067 = vrot.slane %v4053, %v4066
        %v4068 = vcombine.low %v4003, %v4019
        %v4069 = vcombine.high %v4003, %v4019
        %v4071 = vunpack.c.l.s4 1934713408
        %v4072 = vunpack.c.0.s8 %v4071
        %v4073 = vlaneseq
        %v4074 = vshrl.u32 %v4073, 7
        %v4075 = vsub.s32 %v4072, %v4074
        %v4076 = vrot.slane %v4068, %v4075
        %v4078 = vunpack.c.l.s4 1934713408
        %v4079 = vunpack.c.0.s8 %v4078
        %v4080 = vlaneseq
        %v4081 = vshrl.u32 %v4080, 7
        %v4082 = vsub.s32 %v4079, %v4081
        %v4083 = vrot.slane %v4069, %v4082
        %v4084 = vcombine.low %v4028, %v4060
        %v4085 = vcombine.high %v4028, %v4060
        %v4086 = vcombine.low %v4035, %v4067
        %v4087 = vcombine.high %v4035, %v4067
        %v4088 = vcombine.low %v4044, %v4076
        %v4089 = vcombine.high %v4044, %v4076
        %v4090 = vcombine.low %v4051, %v4083
        %v4091 = vcombine.high %v4051, %v4083
        %4093 = vrot.lane.b32.xlu0 %v3949, 16
        %v4094 = vpop.permute.xlu0 %4093
        %4097 = vrot.lane.b32.xlu0 %v3950, 32
        %v4098 = vpop.permute.xlu0 %4097
        %4101 = vrot.lane.b32.xlu0 %v3951, 48
        %v4102 = vpop.permute.xlu0 %4101
        %4105 = vrot.lane.b32.xlu0 %v3952, 64
        %v4106 = vpop.permute.xlu0 %4105
        %4109 = vrot.lane.b32.xlu0 %v3953, 80
        %v4110 = vpop.permute.xlu0 %4109
        %4113 = vrot.lane.b32.xlu0 %v3954, 96
        %v4114 = vpop.permute.xlu0 %4113
        %4117 = vrot.lane.b32.xlu0 %v3955, 112
        %v4118 = vpop.permute.xlu0 %4117
        %4121 = vrot.lane.b32.xlu0 %v4085, 16
        %v4122 = vpop.permute.xlu0 %4121
        %4125 = vrot.lane.b32.xlu0 %v4086, 32
        %v4126 = vpop.permute.xlu0 %4125
        %4129 = vrot.lane.b32.xlu0 %v4087, 48
        %v4130 = vpop.permute.xlu0 %4129
        %4133 = vrot.lane.b32.xlu0 %v4088, 64
        %v4134 = vpop.permute.xlu0 %4133
        %4137 = vrot.lane.b32.xlu0 %v4089, 80
        %v4138 = vpop.permute.xlu0 %4137
        %4141 = vrot.lane.b32.xlu0 %v4090, 96
        %v4142 = vpop.permute.xlu0 %4141
        %4145 = vrot.lane.b32.xlu0 %v4091, 112
        %v4146 = vpop.permute.xlu0 %4145
        %v4148 = vsel %vm564, %v3948, %v4094
        %v4149 = vsel %vm566, %v4148, %v4098
        %v4150 = vsel %vm568, %v4149, %v4102
        %v4151 = vsel %vm570, %v4150, %v4106
        %v4152 = vsel %vm572, %v4151, %v4110
        %v4153 = vsel %vm574, %v4152, %v4114
        %v4154 = vsel %vm576, %v4153, %v4118
        %v4155 = vsel %vm564, %v4084, %v4122
        %v4156 = vsel %vm566, %v4155, %v4126
        %v4157 = vsel %vm568, %v4156, %v4130
        %v4158 = vsel %vm570, %v4157, %v4134
        %v4159 = vsel %vm572, %v4158, %v4138
        %v4160 = vsel %vm574, %v4159, %v4142
        %v4161 = vsel %vm576, %v4160, %v4146
        %v4170 = vrot.slane %v3000, 1
        %v4171 = vrot.slane %v3001, 1
        %v4172 = vsel %vm1057, %v4170, %v4171
        %v4173 = vrot.slane %v3002, 1
        %v4174 = vsel %vm1057, %v4171, %v4173
        %v4175 = vrot.slane %v3003, 1
        %v4176 = vrot.slane %v3004, 1
        %v4177 = vsel %vm1057, %v4175, %v4176
        %v4178 = vrot.slane %v3005, 1
        %v4179 = vsel %vm1057, %v4176, %v4178
        %v4180 = vrot.slane %v3006, 1
        %v4181 = vrot.slane %v3007, 1
        %v4182 = vsel %vm1057, %v4180, %v4181
        %v4183 = vrot.slane %v3008, 1
        %v4184 = vsel %vm1057, %v4181, %v4183
        %v4185 = vrot.slane %v3009, 1
        %v4186 = vrot.slane %v3010, 1
        %v4187 = vsel %vm1057, %v4185, %v4186
        %v4188 = vrot.slane %v3011, 1
        %v4189 = vsel %vm1057, %v4186, %v4188
        %v4190 = vrot.slane %v3012, 1
        %v4191 = vrot.slane %v3013, 1
        %v4192 = vsel %vm1057, %v4190, %v4191
        %v4193 = vrot.slane %v3014, 1
        %v4194 = vsel %vm1057, %v4191, %v4193
        %v4195 = vrot.slane %v3015, 1
        %v4196 = vrot.slane %v3016, 1
        %v4197 = vsel %vm1057, %v4195, %v4196
        %v4198 = vrot.slane %v3017, 1
        %v4199 = vsel %vm1057, %v4196, %v4198
        %v4200 = vrot.slane %v3018, 1
        %v4201 = vrot.slane %v3019, 1
        %v4202 = vsel %vm1057, %v4200, %v4201
        %v4203 = vrot.slane %v3020, 1
        %v4204 = vsel %vm1057, %v4201, %v4203
        %v4205 = vrot.slane %v3021, 1
        %v4206 = vrot.slane %v3022, 1
        %v4207 = vsel %vm1057, %v4205, %v4206
        %v4208 = vrot.slane %v3023, 1
        %v4209 = vsel %vm1057, %v4206, %v4208
        %v4226 = vcombine.low %v4172, %v4182
        %v4227 = vcombine.high %v4172, %v4182
        %v4229 = vunpack.c.l.s4 1983009808
        %v4230 = vunpack.c.0.s8 %v4229
        %v4231 = vlaneseq
        %v4232 = vshrl.u32 %v4231, 7
        %v4233 = vsub.s32 %v4230, %v4232
        %v4234 = vrot.slane %v4226, %v4233
        %v4236 = vunpack.c.l.s4 1983009808
        %v4237 = vunpack.c.0.s8 %v4236
        %v4238 = vlaneseq
        %v4239 = vshrl.u32 %v4238, 7
        %v4240 = vsub.s32 %v4237, %v4239
        %v4241 = vrot.slane %v4227, %v4240
        %v4242 = vcombine.low %v4177, %v4187
        %v4243 = vcombine.high %v4177, %v4187
        %v4245 = vunpack.c.l.s4 1983009808
        %v4246 = vunpack.c.0.s8 %v4245
        %v4247 = vlaneseq
        %v4248 = vshrl.u32 %v4247, 7
        %v4249 = vsub.s32 %v4246, %v4248
        %v4250 = vrot.slane %v4242, %v4249
        %v4252 = vunpack.c.l.s4 1983009808
        %v4253 = vunpack.c.0.s8 %v4252
        %v4254 = vlaneseq
        %v4255 = vshrl.u32 %v4254, 7
        %v4256 = vsub.s32 %v4253, %v4255
        %v4257 = vrot.slane %v4243, %v4256
        %v4258 = vcombine.low %v4192, %v4202
        %v4259 = vcombine.high %v4192, %v4202
        %v4261 = vunpack.c.l.s4 1983009808
        %v4262 = vunpack.c.0.s8 %v4261
        %v4263 = vlaneseq
        %v4264 = vshrl.u32 %v4263, 7
        %v4265 = vsub.s32 %v4262, %v4264
        %v4266 = vrot.slane %v4258, %v4265
        %v4268 = vunpack.c.l.s4 1983009808
        %v4269 = vunpack.c.0.s8 %v4268
        %v4270 = vlaneseq
        %v4271 = vshrl.u32 %v4270, 7
        %v4272 = vsub.s32 %v4269, %v4271
        %v4273 = vrot.slane %v4259, %v4272
        %v4274 = vcombine.low %v4197, %v4207
        %v4275 = vcombine.high %v4197, %v4207
        %v4277 = vunpack.c.l.s4 1983009808
        %v4278 = vunpack.c.0.s8 %v4277
        %v4279 = vlaneseq
        %v4280 = vshrl.u32 %v4279, 7
        %v4281 = vsub.s32 %v4278, %v4280
        %v4282 = vrot.slane %v4274, %v4281
        %v4284 = vunpack.c.l.s4 1983009808
        %v4285 = vunpack.c.0.s8 %v4284
        %v4286 = vlaneseq
        %v4287 = vshrl.u32 %v4286, 7
        %v4288 = vsub.s32 %v4285, %v4287
        %v4289 = vrot.slane %v4275, %v4288
        %v4290 = vcombine.low %v4234, %v4250
        %v4291 = vcombine.high %v4234, %v4250
        %v4293 = vunpack.c.l.s4 1934713408
        %v4294 = vunpack.c.0.s8 %v4293
        %v4295 = vlaneseq
        %v4296 = vshrl.u32 %v4295, 7
        %v4297 = vsub.s32 %v4294, %v4296
        %v4298 = vrot.slane %v4290, %v4297
        %v4300 = vunpack.c.l.s4 1934713408
        %v4301 = vunpack.c.0.s8 %v4300
        %v4302 = vlaneseq
        %v4303 = vshrl.u32 %v4302, 7
        %v4304 = vsub.s32 %v4301, %v4303
        %v4305 = vrot.slane %v4291, %v4304
        %v4306 = vcombine.low %v4241, %v4257
        %v4307 = vcombine.high %v4241, %v4257
        %v4309 = vunpack.c.l.s4 1934713408
        %v4310 = vunpack.c.0.s8 %v4309
        %v4311 = vlaneseq
        %v4312 = vshrl.u32 %v4311, 7
        %v4313 = vsub.s32 %v4310, %v4312
        %v4314 = vrot.slane %v4306, %v4313
        %v4316 = vunpack.c.l.s4 1934713408
        %v4317 = vunpack.c.0.s8 %v4316
        %v4318 = vlaneseq
        %v4319 = vshrl.u32 %v4318, 7
        %v4320 = vsub.s32 %v4317, %v4319
        %v4321 = vrot.slane %v4307, %v4320
        %v4322 = vcombine.low %v4266, %v4282
        %v4323 = vcombine.high %v4266, %v4282
        %v4325 = vunpack.c.l.s4 1934713408
        %v4326 = vunpack.c.0.s8 %v4325
        %v4327 = vlaneseq
        %v4328 = vshrl.u32 %v4327, 7
        %v4329 = vsub.s32 %v4326, %v4328
        %v4330 = vrot.slane %v4322, %v4329
        %v4332 = vunpack.c.l.s4 1934713408
        %v4333 = vunpack.c.0.s8 %v4332
        %v4334 = vlaneseq
        %v4335 = vshrl.u32 %v4334, 7
        %v4336 = vsub.s32 %v4333, %v4335
        %v4337 = vrot.slane %v4323, %v4336
        %v4338 = vcombine.low %v4273, %v4289
        %v4339 = vcombine.high %v4273, %v4289
        %v4341 = vunpack.c.l.s4 1934713408
        %v4342 = vunpack.c.0.s8 %v4341
        %v4343 = vlaneseq
        %v4344 = vshrl.u32 %v4343, 7
        %v4345 = vsub.s32 %v4342, %v4344
        %v4346 = vrot.slane %v4338, %v4345
        %v4348 = vunpack.c.l.s4 1934713408
        %v4349 = vunpack.c.0.s8 %v4348
        %v4350 = vlaneseq
        %v4351 = vshrl.u32 %v4350, 7
        %v4352 = vsub.s32 %v4349, %v4351
        %v4353 = vrot.slane %v4339, %v4352
        %v4354 = vcombine.low %v4298, %v4330
        %v4355 = vcombine.high %v4298, %v4330
        %v4356 = vcombine.low %v4305, %v4337
        %v4357 = vcombine.high %v4305, %v4337
        %v4358 = vcombine.low %v4314, %v4346
        %v4359 = vcombine.high %v4314, %v4346
        %v4360 = vcombine.low %v4321, %v4353
        %v4361 = vcombine.high %v4321, %v4353
        %v4362 = vcombine.low %v4174, %v4184
        %v4363 = vcombine.high %v4174, %v4184
        %v4365 = vunpack.c.l.s4 1983009808
        %v4366 = vunpack.c.0.s8 %v4365
        %v4367 = vlaneseq
        %v4368 = vshrl.u32 %v4367, 7
        %v4369 = vsub.s32 %v4366, %v4368
        %v4370 = vrot.slane %v4362, %v4369
        %v4372 = vunpack.c.l.s4 1983009808
        %v4373 = vunpack.c.0.s8 %v4372
        %v4374 = vlaneseq
        %v4375 = vshrl.u32 %v4374, 7
        %v4376 = vsub.s32 %v4373, %v4375
        %v4377 = vrot.slane %v4363, %v4376
        %v4378 = vcombine.low %v4179, %v4189
        %v4379 = vcombine.high %v4179, %v4189
        %v4381 = vunpack.c.l.s4 1983009808
        %v4382 = vunpack.c.0.s8 %v4381
        %v4383 = vlaneseq
        %v4384 = vshrl.u32 %v4383, 7
        %v4385 = vsub.s32 %v4382, %v4384
        %v4386 = vrot.slane %v4378, %v4385
        %v4388 = vunpack.c.l.s4 1983009808
        %v4389 = vunpack.c.0.s8 %v4388
        %v4390 = vlaneseq
        %v4391 = vshrl.u32 %v4390, 7
        %v4392 = vsub.s32 %v4389, %v4391
        %v4393 = vrot.slane %v4379, %v4392
        %v4394 = vcombine.low %v4194, %v4204
        %v4395 = vcombine.high %v4194, %v4204
        %v4397 = vunpack.c.l.s4 1983009808
        %v4398 = vunpack.c.0.s8 %v4397
        %v4399 = vlaneseq
        %v4400 = vshrl.u32 %v4399, 7
        %v4401 = vsub.s32 %v4398, %v4400
        %v4402 = vrot.slane %v4394, %v4401
        %v4404 = vunpack.c.l.s4 1983009808
        %v4405 = vunpack.c.0.s8 %v4404
        %v4406 = vlaneseq
        %v4407 = vshrl.u32 %v4406, 7
        %v4408 = vsub.s32 %v4405, %v4407
        %v4409 = vrot.slane %v4395, %v4408
        %v4410 = vcombine.low %v4199, %v4209
        %v4411 = vcombine.high %v4199, %v4209
        %v4413 = vunpack.c.l.s4 1983009808
        %v4414 = vunpack.c.0.s8 %v4413
        %v4415 = vlaneseq
        %v4416 = vshrl.u32 %v4415, 7
        %v4417 = vsub.s32 %v4414, %v4416
        %v4418 = vrot.slane %v4410, %v4417
        %v4420 = vunpack.c.l.s4 1983009808
        %v4421 = vunpack.c.0.s8 %v4420
        %v4422 = vlaneseq
        %v4423 = vshrl.u32 %v4422, 7
        %v4424 = vsub.s32 %v4421, %v4423
        %v4425 = vrot.slane %v4411, %v4424
        %v4426 = vcombine.low %v4370, %v4386
        %v4427 = vcombine.high %v4370, %v4386
        %v4429 = vunpack.c.l.s4 1934713408
        %v4430 = vunpack.c.0.s8 %v4429
        %v4431 = vlaneseq
        %v4432 = vshrl.u32 %v4431, 7
        %v4433 = vsub.s32 %v4430, %v4432
        %v4434 = vrot.slane %v4426, %v4433
        %v4436 = vunpack.c.l.s4 1934713408
        %v4437 = vunpack.c.0.s8 %v4436
        %v4438 = vlaneseq
        %v4439 = vshrl.u32 %v4438, 7
        %v4440 = vsub.s32 %v4437, %v4439
        %v4441 = vrot.slane %v4427, %v4440
        %v4442 = vcombine.low %v4377, %v4393
        %v4443 = vcombine.high %v4377, %v4393
        %v4445 = vunpack.c.l.s4 1934713408
        %v4446 = vunpack.c.0.s8 %v4445
        %v4447 = vlaneseq
        %v4448 = vshrl.u32 %v4447, 7
        %v4449 = vsub.s32 %v4446, %v4448
        %v4450 = vrot.slane %v4442, %v4449
        %v4452 = vunpack.c.l.s4 1934713408
        %v4453 = vunpack.c.0.s8 %v4452
        %v4454 = vlaneseq
        %v4455 = vshrl.u32 %v4454, 7
        %v4456 = vsub.s32 %v4453, %v4455
        %v4457 = vrot.slane %v4443, %v4456
        %v4458 = vcombine.low %v4402, %v4418
        %v4459 = vcombine.high %v4402, %v4418
        %v4461 = vunpack.c.l.s4 1934713408
        %v4462 = vunpack.c.0.s8 %v4461
        %v4463 = vlaneseq
        %v4464 = vshrl.u32 %v4463, 7
        %v4465 = vsub.s32 %v4462, %v4464
        %v4466 = vrot.slane %v4458, %v4465
        %v4468 = vunpack.c.l.s4 1934713408
        %v4469 = vunpack.c.0.s8 %v4468
        %v4470 = vlaneseq
        %v4471 = vshrl.u32 %v4470, 7
        %v4472 = vsub.s32 %v4469, %v4471
        %v4473 = vrot.slane %v4459, %v4472
        %v4474 = vcombine.low %v4409, %v4425
        %v4475 = vcombine.high %v4409, %v4425
        %v4477 = vunpack.c.l.s4 1934713408
        %v4478 = vunpack.c.0.s8 %v4477
        %v4479 = vlaneseq
        %v4480 = vshrl.u32 %v4479, 7
        %v4481 = vsub.s32 %v4478, %v4480
        %v4482 = vrot.slane %v4474, %v4481
        %v4484 = vunpack.c.l.s4 1934713408
        %v4485 = vunpack.c.0.s8 %v4484
        %v4486 = vlaneseq
        %v4487 = vshrl.u32 %v4486, 7
        %v4488 = vsub.s32 %v4485, %v4487
        %v4489 = vrot.slane %v4475, %v4488
        %v4490 = vcombine.low %v4434, %v4466
        %v4491 = vcombine.high %v4434, %v4466
        %v4492 = vcombine.low %v4441, %v4473
        %v4493 = vcombine.high %v4441, %v4473
        %v4494 = vcombine.low %v4450, %v4482
        %v4495 = vcombine.high %v4450, %v4482
        %v4496 = vcombine.low %v4457, %v4489
        %v4497 = vcombine.high %v4457, %v4489
        %4499 = vrot.lane.b32.xlu0 %v4355, 16
        %v4500 = vpop.permute.xlu0 %4499
        %4503 = vrot.lane.b32.xlu0 %v4356, 32
        %v4504 = vpop.permute.xlu0 %4503
        %4507 = vrot.lane.b32.xlu0 %v4357, 48
        %v4508 = vpop.permute.xlu0 %4507
        %4511 = vrot.lane.b32.xlu0 %v4358, 64
        %v4512 = vpop.permute.xlu0 %4511
        %4515 = vrot.lane.b32.xlu0 %v4359, 80
        %v4516 = vpop.permute.xlu0 %4515
        %4519 = vrot.lane.b32.xlu0 %v4360, 96
        %v4520 = vpop.permute.xlu0 %4519
        %4523 = vrot.lane.b32.xlu0 %v4361, 112
        %v4524 = vpop.permute.xlu0 %4523
        %4527 = vrot.lane.b32.xlu0 %v4491, 16
        %v4528 = vpop.permute.xlu0 %4527
        %4531 = vrot.lane.b32.xlu0 %v4492, 32
        %v4532 = vpop.permute.xlu0 %4531
        %4535 = vrot.lane.b32.xlu0 %v4493, 48
        %v4536 = vpop.permute.xlu0 %4535
        %4539 = vrot.lane.b32.xlu0 %v4494, 64
        %v4540 = vpop.permute.xlu0 %4539
        %4543 = vrot.lane.b32.xlu0 %v4495, 80
        %v4544 = vpop.permute.xlu0 %4543
        %4547 = vrot.lane.b32.xlu0 %v4496, 96
        %v4548 = vpop.permute.xlu0 %4547
        %4551 = vrot.lane.b32.xlu0 %v4497, 112
        %v4552 = vpop.permute.xlu0 %4551
        %v4554 = vsel %vm564, %v4354, %v4500
        %v4555 = vsel %vm566, %v4554, %v4504
        %v4556 = vsel %vm568, %v4555, %v4508
        %v4557 = vsel %vm570, %v4556, %v4512
        %v4558 = vsel %vm572, %v4557, %v4516
        %v4559 = vsel %vm574, %v4558, %v4520
        %v4560 = vsel %vm576, %v4559, %v4524
        %v4561 = vsel %vm564, %v4490, %v4528
        %v4562 = vsel %vm566, %v4561, %v4532
        %v4563 = vsel %vm568, %v4562, %v4536
        %v4564 = vsel %vm570, %v4563, %v4540
        %v4565 = vsel %vm572, %v4564, %v4544
        %v4566 = vsel %vm574, %v4565, %v4548
        %v4567 = vsel %vm576, %v4566, %v4552
        %4568 = vrot.lane.b32.xlu0 %v4172, 127
        %v4569 = vpop.permute.xlu0 %4568
        %4570 = vrot.lane.b32.xlu0 %v4174, 127
        %v4571 = vpop.permute.xlu0 %4570
        %4572 = vrot.lane.b32.xlu0 %v4177, 127
        %v4573 = vpop.permute.xlu0 %4572
        %4574 = vrot.lane.b32.xlu0 %v4179, 127
        %v4575 = vpop.permute.xlu0 %4574
        %4576 = vrot.lane.b32.xlu0 %v4182, 127
        %v4577 = vpop.permute.xlu0 %4576
        %4578 = vrot.lane.b32.xlu0 %v4184, 127
        %v4579 = vpop.permute.xlu0 %4578
        %4580 = vrot.lane.b32.xlu0 %v4187, 127
        %v4581 = vpop.permute.xlu0 %4580
        %4582 = vrot.lane.b32.xlu0 %v4189, 127
        %v4583 = vpop.permute.xlu0 %4582
        %4584 = vrot.lane.b32.xlu0 %v4192, 127
        %v4585 = vpop.permute.xlu0 %4584
        %4586 = vrot.lane.b32.xlu0 %v4194, 127
        %v4587 = vpop.permute.xlu0 %4586
        %4588 = vrot.lane.b32.xlu0 %v4197, 127
        %v4589 = vpop.permute.xlu0 %4588
        %4590 = vrot.lane.b32.xlu0 %v4199, 127
        %v4591 = vpop.permute.xlu0 %4590
        %4592 = vrot.lane.b32.xlu0 %v4202, 127
        %v4593 = vpop.permute.xlu0 %4592
        %4594 = vrot.lane.b32.xlu0 %v4204, 127
        %v4595 = vpop.permute.xlu0 %4594
        %4596 = vrot.lane.b32.xlu0 %v4207, 127
        %v4597 = vpop.permute.xlu0 %4596
        %4598 = vrot.lane.b32.xlu0 %v4209, 127
        %v4599 = vpop.permute.xlu0 %4598
        %v4616 = vcombine.low %v4569, %v4577
        %v4617 = vcombine.high %v4569, %v4577
        %v4619 = vunpack.c.l.s4 1983009808
        %v4620 = vunpack.c.0.s8 %v4619
        %v4621 = vlaneseq
        %v4622 = vshrl.u32 %v4621, 7
        %v4623 = vsub.s32 %v4620, %v4622
        %v4624 = vrot.slane %v4616, %v4623
        %v4626 = vunpack.c.l.s4 1983009808
        %v4627 = vunpack.c.0.s8 %v4626
        %v4628 = vlaneseq
        %v4629 = vshrl.u32 %v4628, 7
        %v4630 = vsub.s32 %v4627, %v4629
        %v4631 = vrot.slane %v4617, %v4630
        %v4632 = vcombine.low %v4573, %v4581
        %v4633 = vcombine.high %v4573, %v4581
        %v4635 = vunpack.c.l.s4 1983009808
        %v4636 = vunpack.c.0.s8 %v4635
        %v4637 = vlaneseq
        %v4638 = vshrl.u32 %v4637, 7
        %v4639 = vsub.s32 %v4636, %v4638
        %v4640 = vrot.slane %v4632, %v4639
        %v4642 = vunpack.c.l.s4 1983009808
        %v4643 = vunpack.c.0.s8 %v4642
        %v4644 = vlaneseq
        %v4645 = vshrl.u32 %v4644, 7
        %v4646 = vsub.s32 %v4643, %v4645
        %v4647 = vrot.slane %v4633, %v4646
        %v4648 = vcombine.low %v4585, %v4593
        %v4649 = vcombine.high %v4585, %v4593
        %v4651 = vunpack.c.l.s4 1983009808
        %v4652 = vunpack.c.0.s8 %v4651
        %v4653 = vlaneseq
        %v4654 = vshrl.u32 %v4653, 7
        %v4655 = vsub.s32 %v4652, %v4654
        %v4656 = vrot.slane %v4648, %v4655
        %v4658 = vunpack.c.l.s4 1983009808
        %v4659 = vunpack.c.0.s8 %v4658
        %v4660 = vlaneseq
        %v4661 = vshrl.u32 %v4660, 7
        %v4662 = vsub.s32 %v4659, %v4661
        %v4663 = vrot.slane %v4649, %v4662
        %v4664 = vcombine.low %v4589, %v4597
        %v4665 = vcombine.high %v4589, %v4597
        %v4667 = vunpack.c.l.s4 1983009808
        %v4668 = vunpack.c.0.s8 %v4667
        %v4669 = vlaneseq
        %v4670 = vshrl.u32 %v4669, 7
        %v4671 = vsub.s32 %v4668, %v4670
        %v4672 = vrot.slane %v4664, %v4671
        %v4674 = vunpack.c.l.s4 1983009808
        %v4675 = vunpack.c.0.s8 %v4674
        %v4676 = vlaneseq
        %v4677 = vshrl.u32 %v4676, 7
        %v4678 = vsub.s32 %v4675, %v4677
        %v4679 = vrot.slane %v4665, %v4678
        %v4680 = vcombine.low %v4624, %v4640
        %v4681 = vcombine.high %v4624, %v4640
        %v4683 = vunpack.c.l.s4 1934713408
        %v4684 = vunpack.c.0.s8 %v4683
        %v4685 = vlaneseq
        %v4686 = vshrl.u32 %v4685, 7
        %v4687 = vsub.s32 %v4684, %v4686
        %v4688 = vrot.slane %v4680, %v4687
        %v4690 = vunpack.c.l.s4 1934713408
        %v4691 = vunpack.c.0.s8 %v4690
        %v4692 = vlaneseq
        %v4693 = vshrl.u32 %v4692, 7
        %v4694 = vsub.s32 %v4691, %v4693
        %v4695 = vrot.slane %v4681, %v4694
        %v4696 = vcombine.low %v4631, %v4647
        %v4697 = vcombine.high %v4631, %v4647
        %v4699 = vunpack.c.l.s4 1934713408
        %v4700 = vunpack.c.0.s8 %v4699
        %v4701 = vlaneseq
        %v4702 = vshrl.u32 %v4701, 7
        %v4703 = vsub.s32 %v4700, %v4702
        %v4704 = vrot.slane %v4696, %v4703
        %v4706 = vunpack.c.l.s4 1934713408
        %v4707 = vunpack.c.0.s8 %v4706
        %v4708 = vlaneseq
        %v4709 = vshrl.u32 %v4708, 7
        %v4710 = vsub.s32 %v4707, %v4709
        %v4711 = vrot.slane %v4697, %v4710
        %v4712 = vcombine.low %v4656, %v4672
        %v4713 = vcombine.high %v4656, %v4672
        %v4715 = vunpack.c.l.s4 1934713408
        %v4716 = vunpack.c.0.s8 %v4715
        %v4717 = vlaneseq
        %v4718 = vshrl.u32 %v4717, 7
        %v4719 = vsub.s32 %v4716, %v4718
        %v4720 = vrot.slane %v4712, %v4719
        %v4722 = vunpack.c.l.s4 1934713408
        %v4723 = vunpack.c.0.s8 %v4722
        %v4724 = vlaneseq
        %v4725 = vshrl.u32 %v4724, 7
        %v4726 = vsub.s32 %v4723, %v4725
        %v4727 = vrot.slane %v4713, %v4726
        %v4728 = vcombine.low %v4663, %v4679
        %v4729 = vcombine.high %v4663, %v4679
        %v4731 = vunpack.c.l.s4 1934713408
        %v4732 = vunpack.c.0.s8 %v4731
        %v4733 = vlaneseq
        %v4734 = vshrl.u32 %v4733, 7
        %v4735 = vsub.s32 %v4732, %v4734
        %v4736 = vrot.slane %v4728, %v4735
        %v4738 = vunpack.c.l.s4 1934713408
        %v4739 = vunpack.c.0.s8 %v4738
        %v4740 = vlaneseq
        %v4741 = vshrl.u32 %v4740, 7
        %v4742 = vsub.s32 %v4739, %v4741
        %v4743 = vrot.slane %v4729, %v4742
        %v4744 = vcombine.low %v4688, %v4720
        %v4745 = vcombine.high %v4688, %v4720
        %v4746 = vcombine.low %v4695, %v4727
        %v4747 = vcombine.high %v4695, %v4727
        %v4748 = vcombine.low %v4704, %v4736
        %v4749 = vcombine.high %v4704, %v4736
        %v4750 = vcombine.low %v4711, %v4743
        %v4751 = vcombine.high %v4711, %v4743
        %v4752 = vcombine.low %v4571, %v4579
        %v4753 = vcombine.high %v4571, %v4579
        %v4755 = vunpack.c.l.s4 1983009808
        %v4756 = vunpack.c.0.s8 %v4755
        %v4757 = vlaneseq
        %v4758 = vshrl.u32 %v4757, 7
        %v4759 = vsub.s32 %v4756, %v4758
        %v4760 = vrot.slane %v4752, %v4759
        %v4762 = vunpack.c.l.s4 1983009808
        %v4763 = vunpack.c.0.s8 %v4762
        %v4764 = vlaneseq
        %v4765 = vshrl.u32 %v4764, 7
        %v4766 = vsub.s32 %v4763, %v4765
        %v4767 = vrot.slane %v4753, %v4766
        %v4768 = vcombine.low %v4575, %v4583
        %v4769 = vcombine.high %v4575, %v4583
        %v4771 = vunpack.c.l.s4 1983009808
        %v4772 = vunpack.c.0.s8 %v4771
        %v4773 = vlaneseq
        %v4774 = vshrl.u32 %v4773, 7
        %v4775 = vsub.s32 %v4772, %v4774
        %v4776 = vrot.slane %v4768, %v4775
        %v4778 = vunpack.c.l.s4 1983009808
        %v4779 = vunpack.c.0.s8 %v4778
        %v4780 = vlaneseq
        %v4781 = vshrl.u32 %v4780, 7
        %v4782 = vsub.s32 %v4779, %v4781
        %v4783 = vrot.slane %v4769, %v4782
        %v4784 = vcombine.low %v4587, %v4595
        %v4785 = vcombine.high %v4587, %v4595
        %v4787 = vunpack.c.l.s4 1983009808
        %v4788 = vunpack.c.0.s8 %v4787
        %v4789 = vlaneseq
        %v4790 = vshrl.u32 %v4789, 7
        %v4791 = vsub.s32 %v4788, %v4790
        %v4792 = vrot.slane %v4784, %v4791
        %v4794 = vunpack.c.l.s4 1983009808
        %v4795 = vunpack.c.0.s8 %v4794
        %v4796 = vlaneseq
        %v4797 = vshrl.u32 %v4796, 7
        %v4798 = vsub.s32 %v4795, %v4797
        %v4799 = vrot.slane %v4785, %v4798
        %v4800 = vcombine.low %v4591, %v4599
        %v4801 = vcombine.high %v4591, %v4599
        %v4803 = vunpack.c.l.s4 1983009808
        %v4804 = vunpack.c.0.s8 %v4803
        %v4805 = vlaneseq
        %v4806 = vshrl.u32 %v4805, 7
        %v4807 = vsub.s32 %v4804, %v4806
        %v4808 = vrot.slane %v4800, %v4807
        %v4810 = vunpack.c.l.s4 1983009808
        %v4811 = vunpack.c.0.s8 %v4810
        %v4812 = vlaneseq
        %v4813 = vshrl.u32 %v4812, 7
        %v4814 = vsub.s32 %v4811, %v4813
        %v4815 = vrot.slane %v4801, %v4814
        %v4816 = vcombine.low %v4760, %v4776
        %v4817 = vcombine.high %v4760, %v4776
        %v4819 = vunpack.c.l.s4 1934713408
        %v4820 = vunpack.c.0.s8 %v4819
        %v4821 = vlaneseq
        %v4822 = vshrl.u32 %v4821, 7
        %v4823 = vsub.s32 %v4820, %v4822
        %v4824 = vrot.slane %v4816, %v4823
        %v4826 = vunpack.c.l.s4 1934713408
        %v4827 = vunpack.c.0.s8 %v4826
        %v4828 = vlaneseq
        %v4829 = vshrl.u32 %v4828, 7
        %v4830 = vsub.s32 %v4827, %v4829
        %v4831 = vrot.slane %v4817, %v4830
        %v4832 = vcombine.low %v4767, %v4783
        %v4833 = vcombine.high %v4767, %v4783
        %v4835 = vunpack.c.l.s4 1934713408
        %v4836 = vunpack.c.0.s8 %v4835
        %v4837 = vlaneseq
        %v4838 = vshrl.u32 %v4837, 7
        %v4839 = vsub.s32 %v4836, %v4838
        %v4840 = vrot.slane %v4832, %v4839
        %v4842 = vunpack.c.l.s4 1934713408
        %v4843 = vunpack.c.0.s8 %v4842
        %v4844 = vlaneseq
        %v4845 = vshrl.u32 %v4844, 7
        %v4846 = vsub.s32 %v4843, %v4845
        %v4847 = vrot.slane %v4833, %v4846
        %v4848 = vcombine.low %v4792, %v4808
        %v4849 = vcombine.high %v4792, %v4808
        %v4851 = vunpack.c.l.s4 1934713408
        %v4852 = vunpack.c.0.s8 %v4851
        %v4853 = vlaneseq
        %v4854 = vshrl.u32 %v4853, 7
        %v4855 = vsub.s32 %v4852, %v4854
        %v4856 = vrot.slane %v4848, %v4855
        %v4858 = vunpack.c.l.s4 1934713408
        %v4859 = vunpack.c.0.s8 %v4858
        %v4860 = vlaneseq
        %v4861 = vshrl.u32 %v4860, 7
        %v4862 = vsub.s32 %v4859, %v4861
        %v4863 = vrot.slane %v4849, %v4862
        %v4864 = vcombine.low %v4799, %v4815
        %v4865 = vcombine.high %v4799, %v4815
        %v4867 = vunpack.c.l.s4 1934713408
        %v4868 = vunpack.c.0.s8 %v4867
        %v4869 = vlaneseq
        %v4870 = vshrl.u32 %v4869, 7
        %v4871 = vsub.s32 %v4868, %v4870
        %v4872 = vrot.slane %v4864, %v4871
        %v4874 = vunpack.c.l.s4 1934713408
        %v4875 = vunpack.c.0.s8 %v4874
        %v4876 = vlaneseq
        %v4877 = vshrl.u32 %v4876, 7
        %v4878 = vsub.s32 %v4875, %v4877
        %v4879 = vrot.slane %v4865, %v4878
        %v4880 = vcombine.low %v4824, %v4856
        %v4881 = vcombine.high %v4824, %v4856
        %v4882 = vcombine.low %v4831, %v4863
        %v4883 = vcombine.high %v4831, %v4863
        %v4884 = vcombine.low %v4840, %v4872
        %v4885 = vcombine.high %v4840, %v4872
        %v4886 = vcombine.low %v4847, %v4879
        %v4887 = vcombine.high %v4847, %v4879
        %4889 = vrot.lane.b32.xlu0 %v4745, 16
        %v4890 = vpop.permute.xlu0 %4889
        %4893 = vrot.lane.b32.xlu0 %v4746, 32
        %v4894 = vpop.permute.xlu0 %4893
        %4897 = vrot.lane.b32.xlu0 %v4747, 48
        %v4898 = vpop.permute.xlu0 %4897
        %4901 = vrot.lane.b32.xlu0 %v4748, 64
        %v4902 = vpop.permute.xlu0 %4901
        %4905 = vrot.lane.b32.xlu0 %v4749, 80
        %v4906 = vpop.permute.xlu0 %4905
        %4909 = vrot.lane.b32.xlu0 %v4750, 96
        %v4910 = vpop.permute.xlu0 %4909
        %4913 = vrot.lane.b32.xlu0 %v4751, 112
        %v4914 = vpop.permute.xlu0 %4913
        %4917 = vrot.lane.b32.xlu0 %v4881, 16
        %v4918 = vpop.permute.xlu0 %4917
        %4921 = vrot.lane.b32.xlu0 %v4882, 32
        %v4922 = vpop.permute.xlu0 %4921
        %4925 = vrot.lane.b32.xlu0 %v4883, 48
        %v4926 = vpop.permute.xlu0 %4925
        %4929 = vrot.lane.b32.xlu0 %v4884, 64
        %v4930 = vpop.permute.xlu0 %4929
        %4933 = vrot.lane.b32.xlu0 %v4885, 80
        %v4934 = vpop.permute.xlu0 %4933
        %4937 = vrot.lane.b32.xlu0 %v4886, 96
        %v4938 = vpop.permute.xlu0 %4937
        %4941 = vrot.lane.b32.xlu0 %v4887, 112
        %v4942 = vpop.permute.xlu0 %4941
        %v4944 = vsel %vm564, %v4744, %v4890
        %v4945 = vsel %vm566, %v4944, %v4894
        %v4946 = vsel %vm568, %v4945, %v4898
        %v4947 = vsel %vm570, %v4946, %v4902
        %v4948 = vsel %vm572, %v4947, %v4906
        %v4949 = vsel %vm574, %v4948, %v4910
        %v4950 = vsel %vm576, %v4949, %v4914
        %v4951 = vsel %vm564, %v4880, %v4918
        %v4952 = vsel %vm566, %v4951, %v4922
        %v4953 = vsel %vm568, %v4952, %v4926
        %v4954 = vsel %vm570, %v4953, %v4930
        %v4955 = vsel %vm572, %v4954, %v4934
        %v4956 = vsel %vm574, %v4955, %v4938
        %v4957 = vsel %vm576, %v4956, %v4942
        %4958 = vrot.lane.b32.xlu0 %v4172, 126
        %v4959 = vpop.permute.xlu0 %4958
        %4960 = vrot.lane.b32.xlu0 %v4174, 126
        %v4961 = vpop.permute.xlu0 %4960
        %4962 = vrot.lane.b32.xlu0 %v4177, 126
        %v4963 = vpop.permute.xlu0 %4962
        %4964 = vrot.lane.b32.xlu0 %v4179, 126
        %v4965 = vpop.permute.xlu0 %4964
        %4966 = vrot.lane.b32.xlu0 %v4182, 126
        %v4967 = vpop.permute.xlu0 %4966
        %4968 = vrot.lane.b32.xlu0 %v4184, 126
        %v4969 = vpop.permute.xlu0 %4968
        %4970 = vrot.lane.b32.xlu0 %v4187, 126
        %v4971 = vpop.permute.xlu0 %4970
        %4972 = vrot.lane.b32.xlu0 %v4189, 126
        %v4973 = vpop.permute.xlu0 %4972
        %4974 = vrot.lane.b32.xlu0 %v4192, 126
        %v4975 = vpop.permute.xlu0 %4974
        %4976 = vrot.lane.b32.xlu0 %v4194, 126
        %v4977 = vpop.permute.xlu0 %4976
        %4978 = vrot.lane.b32.xlu0 %v4197, 126
        %v4979 = vpop.permute.xlu0 %4978
        %4980 = vrot.lane.b32.xlu0 %v4199, 126
        %v4981 = vpop.permute.xlu0 %4980
        %4982 = vrot.lane.b32.xlu0 %v4202, 126
        %v4983 = vpop.permute.xlu0 %4982
        %4984 = vrot.lane.b32.xlu0 %v4204, 126
        %v4985 = vpop.permute.xlu0 %4984
        %4986 = vrot.lane.b32.xlu0 %v4207, 126
        %v4987 = vpop.permute.xlu0 %4986
        %4988 = vrot.lane.b32.xlu0 %v4209, 126
        %v4989 = vpop.permute.xlu0 %4988
        %v5006 = vcombine.low %v4959, %v4967
        %v5007 = vcombine.high %v4959, %v4967
        %v5009 = vunpack.c.l.s4 1983009808
        %v5010 = vunpack.c.0.s8 %v5009
        %v5011 = vlaneseq
        %v5012 = vshrl.u32 %v5011, 7
        %v5013 = vsub.s32 %v5010, %v5012
        %v5014 = vrot.slane %v5006, %v5013
        %v5016 = vunpack.c.l.s4 1983009808
        %v5017 = vunpack.c.0.s8 %v5016
        %v5018 = vlaneseq
        %v5019 = vshrl.u32 %v5018, 7
        %v5020 = vsub.s32 %v5017, %v5019
        %v5021 = vrot.slane %v5007, %v5020
        %v5022 = vcombine.low %v4963, %v4971
        %v5023 = vcombine.high %v4963, %v4971
        %v5025 = vunpack.c.l.s4 1983009808
        %v5026 = vunpack.c.0.s8 %v5025
        %v5027 = vlaneseq
        %v5028 = vshrl.u32 %v5027, 7
        %v5029 = vsub.s32 %v5026, %v5028
        %v5030 = vrot.slane %v5022, %v5029
        %v5032 = vunpack.c.l.s4 1983009808
        %v5033 = vunpack.c.0.s8 %v5032
        %v5034 = vlaneseq
        %v5035 = vshrl.u32 %v5034, 7
        %v5036 = vsub.s32 %v5033, %v5035
        %v5037 = vrot.slane %v5023, %v5036
        %v5038 = vcombine.low %v4975, %v4983
        %v5039 = vcombine.high %v4975, %v4983
        %v5041 = vunpack.c.l.s4 1983009808
        %v5042 = vunpack.c.0.s8 %v5041
        %v5043 = vlaneseq
        %v5044 = vshrl.u32 %v5043, 7
        %v5045 = vsub.s32 %v5042, %v5044
        %v5046 = vrot.slane %v5038, %v5045
        %v5048 = vunpack.c.l.s4 1983009808
        %v5049 = vunpack.c.0.s8 %v5048
        %v5050 = vlaneseq
        %v5051 = vshrl.u32 %v5050, 7
        %v5052 = vsub.s32 %v5049, %v5051
        %v5053 = vrot.slane %v5039, %v5052
        %v5054 = vcombine.low %v4979, %v4987
        %v5055 = vcombine.high %v4979, %v4987
        %v5057 = vunpack.c.l.s4 1983009808
        %v5058 = vunpack.c.0.s8 %v5057
        %v5059 = vlaneseq
        %v5060 = vshrl.u32 %v5059, 7
        %v5061 = vsub.s32 %v5058, %v5060
        %v5062 = vrot.slane %v5054, %v5061
        %v5064 = vunpack.c.l.s4 1983009808
        %v5065 = vunpack.c.0.s8 %v5064
        %v5066 = vlaneseq
        %v5067 = vshrl.u32 %v5066, 7
        %v5068 = vsub.s32 %v5065, %v5067
        %v5069 = vrot.slane %v5055, %v5068
        %v5070 = vcombine.low %v5014, %v5030
        %v5071 = vcombine.high %v5014, %v5030
        %v5073 = vunpack.c.l.s4 1934713408
        %v5074 = vunpack.c.0.s8 %v5073
        %v5075 = vlaneseq
        %v5076 = vshrl.u32 %v5075, 7
        %v5077 = vsub.s32 %v5074, %v5076
        %v5078 = vrot.slane %v5070, %v5077
        %v5080 = vunpack.c.l.s4 1934713408
        %v5081 = vunpack.c.0.s8 %v5080
        %v5082 = vlaneseq
        %v5083 = vshrl.u32 %v5082, 7
        %v5084 = vsub.s32 %v5081, %v5083
        %v5085 = vrot.slane %v5071, %v5084
        %v5086 = vcombine.low %v5021, %v5037
        %v5087 = vcombine.high %v5021, %v5037
        %v5089 = vunpack.c.l.s4 1934713408
        %v5090 = vunpack.c.0.s8 %v5089
        %v5091 = vlaneseq
        %v5092 = vshrl.u32 %v5091, 7
        %v5093 = vsub.s32 %v5090, %v5092
        %v5094 = vrot.slane %v5086, %v5093
        %v5096 = vunpack.c.l.s4 1934713408
        %v5097 = vunpack.c.0.s8 %v5096
        %v5098 = vlaneseq
        %v5099 = vshrl.u32 %v5098, 7
        %v5100 = vsub.s32 %v5097, %v5099
        %v5101 = vrot.slane %v5087, %v5100
        %v5102 = vcombine.low %v5046, %v5062
        %v5103 = vcombine.high %v5046, %v5062
        %v5105 = vunpack.c.l.s4 1934713408
        %v5106 = vunpack.c.0.s8 %v5105
        %v5107 = vlaneseq
        %v5108 = vshrl.u32 %v5107, 7
        %v5109 = vsub.s32 %v5106, %v5108
        %v5110 = vrot.slane %v5102, %v5109
        %v5112 = vunpack.c.l.s4 1934713408
        %v5113 = vunpack.c.0.s8 %v5112
        %v5114 = vlaneseq
        %v5115 = vshrl.u32 %v5114, 7
        %v5116 = vsub.s32 %v5113, %v5115
        %v5117 = vrot.slane %v5103, %v5116
        %v5118 = vcombine.low %v5053, %v5069
        %v5119 = vcombine.high %v5053, %v5069
        %v5121 = vunpack.c.l.s4 1934713408
        %v5122 = vunpack.c.0.s8 %v5121
        %v5123 = vlaneseq
        %v5124 = vshrl.u32 %v5123, 7
        %v5125 = vsub.s32 %v5122, %v5124
        %v5126 = vrot.slane %v5118, %v5125
        %v5128 = vunpack.c.l.s4 1934713408
        %v5129 = vunpack.c.0.s8 %v5128
        %v5130 = vlaneseq
        %v5131 = vshrl.u32 %v5130, 7
        %v5132 = vsub.s32 %v5129, %v5131
        %v5133 = vrot.slane %v5119, %v5132
        %v5134 = vcombine.low %v5078, %v5110
        %v5135 = vcombine.high %v5078, %v5110
        %v5136 = vcombine.low %v5085, %v5117
        %v5137 = vcombine.high %v5085, %v5117
        %v5138 = vcombine.low %v5094, %v5126
        %v5139 = vcombine.high %v5094, %v5126
        %v5140 = vcombine.low %v5101, %v5133
        %v5141 = vcombine.high %v5101, %v5133
        %v5142 = vcombine.low %v4961, %v4969
        %v5143 = vcombine.high %v4961, %v4969
        %v5145 = vunpack.c.l.s4 1983009808
        %v5146 = vunpack.c.0.s8 %v5145
        %v5147 = vlaneseq
        %v5148 = vshrl.u32 %v5147, 7
        %v5149 = vsub.s32 %v5146, %v5148
        %v5150 = vrot.slane %v5142, %v5149
        %v5152 = vunpack.c.l.s4 1983009808
        %v5153 = vunpack.c.0.s8 %v5152
        %v5154 = vlaneseq
        %v5155 = vshrl.u32 %v5154, 7
        %v5156 = vsub.s32 %v5153, %v5155
        %v5157 = vrot.slane %v5143, %v5156
        %v5158 = vcombine.low %v4965, %v4973
        %v5159 = vcombine.high %v4965, %v4973
        %v5161 = vunpack.c.l.s4 1983009808
        %v5162 = vunpack.c.0.s8 %v5161
        %v5163 = vlaneseq
        %v5164 = vshrl.u32 %v5163, 7
        %v5165 = vsub.s32 %v5162, %v5164
        %v5166 = vrot.slane %v5158, %v5165
        %v5168 = vunpack.c.l.s4 1983009808
        %v5169 = vunpack.c.0.s8 %v5168
        %v5170 = vlaneseq
        %v5171 = vshrl.u32 %v5170, 7
        %v5172 = vsub.s32 %v5169, %v5171
        %v5173 = vrot.slane %v5159, %v5172
        %v5174 = vcombine.low %v4977, %v4985
        %v5175 = vcombine.high %v4977, %v4985
        %v5177 = vunpack.c.l.s4 1983009808
        %v5178 = vunpack.c.0.s8 %v5177
        %v5179 = vlaneseq
        %v5180 = vshrl.u32 %v5179, 7
        %v5181 = vsub.s32 %v5178, %v5180
        %v5182 = vrot.slane %v5174, %v5181
        %v5184 = vunpack.c.l.s4 1983009808
        %v5185 = vunpack.c.0.s8 %v5184
        %v5186 = vlaneseq
        %v5187 = vshrl.u32 %v5186, 7
        %v5188 = vsub.s32 %v5185, %v5187
        %v5189 = vrot.slane %v5175, %v5188
        %v5190 = vcombine.low %v4981, %v4989
        %v5191 = vcombine.high %v4981, %v4989
        %v5193 = vunpack.c.l.s4 1983009808
        %v5194 = vunpack.c.0.s8 %v5193
        %v5195 = vlaneseq
        %v5196 = vshrl.u32 %v5195, 7
        %v5197 = vsub.s32 %v5194, %v5196
        %v5198 = vrot.slane %v5190, %v5197
        %v5200 = vunpack.c.l.s4 1983009808
        %v5201 = vunpack.c.0.s8 %v5200
        %v5202 = vlaneseq
        %v5203 = vshrl.u32 %v5202, 7
        %v5204 = vsub.s32 %v5201, %v5203
        %v5205 = vrot.slane %v5191, %v5204
        %v5206 = vcombine.low %v5150, %v5166
        %v5207 = vcombine.high %v5150, %v5166
        %v5209 = vunpack.c.l.s4 1934713408
        %v5210 = vunpack.c.0.s8 %v5209
        %v5211 = vlaneseq
        %v5212 = vshrl.u32 %v5211, 7
        %v5213 = vsub.s32 %v5210, %v5212
        %v5214 = vrot.slane %v5206, %v5213
        %v5216 = vunpack.c.l.s4 1934713408
        %v5217 = vunpack.c.0.s8 %v5216
        %v5218 = vlaneseq
        %v5219 = vshrl.u32 %v5218, 7
        %v5220 = vsub.s32 %v5217, %v5219
        %v5221 = vrot.slane %v5207, %v5220
        %v5222 = vcombine.low %v5157, %v5173
        %v5223 = vcombine.high %v5157, %v5173
        %v5225 = vunpack.c.l.s4 1934713408
        %v5226 = vunpack.c.0.s8 %v5225
        %v5227 = vlaneseq
        %v5228 = vshrl.u32 %v5227, 7
        %v5229 = vsub.s32 %v5226, %v5228
        %v5230 = vrot.slane %v5222, %v5229
        %v5232 = vunpack.c.l.s4 1934713408
        %v5233 = vunpack.c.0.s8 %v5232
        %v5234 = vlaneseq
        %v5235 = vshrl.u32 %v5234, 7
        %v5236 = vsub.s32 %v5233, %v5235
        %v5237 = vrot.slane %v5223, %v5236
        %v5238 = vcombine.low %v5182, %v5198
        %v5239 = vcombine.high %v5182, %v5198
        %v5241 = vunpack.c.l.s4 1934713408
        %v5242 = vunpack.c.0.s8 %v5241
        %v5243 = vlaneseq
        %v5244 = vshrl.u32 %v5243, 7
        %v5245 = vsub.s32 %v5242, %v5244
        %v5246 = vrot.slane %v5238, %v5245
        %v5248 = vunpack.c.l.s4 1934713408
        %v5249 = vunpack.c.0.s8 %v5248
        %v5250 = vlaneseq
        %v5251 = vshrl.u32 %v5250, 7
        %v5252 = vsub.s32 %v5249, %v5251
        %v5253 = vrot.slane %v5239, %v5252
        %v5254 = vcombine.low %v5189, %v5205
        %v5255 = vcombine.high %v5189, %v5205
        %v5257 = vunpack.c.l.s4 1934713408
        %v5258 = vunpack.c.0.s8 %v5257
        %v5259 = vlaneseq
        %v5260 = vshrl.u32 %v5259, 7
        %v5261 = vsub.s32 %v5258, %v5260
        %v5262 = vrot.slane %v5254, %v5261
        %v5264 = vunpack.c.l.s4 1934713408
        %v5265 = vunpack.c.0.s8 %v5264
        %v5266 = vlaneseq
        %v5267 = vshrl.u32 %v5266, 7
        %v5268 = vsub.s32 %v5265, %v5267
        %v5269 = vrot.slane %v5255, %v5268
        %v5270 = vcombine.low %v5214, %v5246
        %v5271 = vcombine.high %v5214, %v5246
        %v5272 = vcombine.low %v5221, %v5253
        %v5273 = vcombine.high %v5221, %v5253
        %v5274 = vcombine.low %v5230, %v5262
        %v5275 = vcombine.high %v5230, %v5262
        %v5276 = vcombine.low %v5237, %v5269
        %v5277 = vcombine.high %v5237, %v5269
        %5279 = vrot.lane.b32.xlu0 %v5135, 16
        %v5280 = vpop.permute.xlu0 %5279
        %5283 = vrot.lane.b32.xlu0 %v5136, 32
        %v5284 = vpop.permute.xlu0 %5283
        %5287 = vrot.lane.b32.xlu0 %v5137, 48
        %v5288 = vpop.permute.xlu0 %5287
        %5291 = vrot.lane.b32.xlu0 %v5138, 64
        %v5292 = vpop.permute.xlu0 %5291
        %5295 = vrot.lane.b32.xlu0 %v5139, 80
        %v5296 = vpop.permute.xlu0 %5295
        %5299 = vrot.lane.b32.xlu0 %v5140, 96
        %v5300 = vpop.permute.xlu0 %5299
        %5303 = vrot.lane.b32.xlu0 %v5141, 112
        %v5304 = vpop.permute.xlu0 %5303
        %5307 = vrot.lane.b32.xlu0 %v5271, 16
        %v5308 = vpop.permute.xlu0 %5307
        %5311 = vrot.lane.b32.xlu0 %v5272, 32
        %v5312 = vpop.permute.xlu0 %5311
        %5315 = vrot.lane.b32.xlu0 %v5273, 48
        %v5316 = vpop.permute.xlu0 %5315
        %5319 = vrot.lane.b32.xlu0 %v5274, 64
        %v5320 = vpop.permute.xlu0 %5319
        %5323 = vrot.lane.b32.xlu0 %v5275, 80
        %v5324 = vpop.permute.xlu0 %5323
        %5327 = vrot.lane.b32.xlu0 %v5276, 96
        %v5328 = vpop.permute.xlu0 %5327
        %5331 = vrot.lane.b32.xlu0 %v5277, 112
        %v5332 = vpop.permute.xlu0 %5331
        %v5334 = vsel %vm564, %v5134, %v5280
        %v5335 = vsel %vm566, %v5334, %v5284
        %v5336 = vsel %vm568, %v5335, %v5288
        %v5337 = vsel %vm570, %v5336, %v5292
        %v5338 = vsel %vm572, %v5337, %v5296
        %v5339 = vsel %vm574, %v5338, %v5300
        %v5340 = vsel %vm576, %v5339, %v5304
        %v5341 = vsel %vm564, %v5270, %v5308
        %v5342 = vsel %vm566, %v5341, %v5312
        %v5343 = vsel %vm568, %v5342, %v5316
        %v5344 = vsel %vm570, %v5343, %v5320
        %v5345 = vsel %vm572, %v5344, %v5324
        %v5346 = vsel %vm574, %v5345, %v5328
        %v5347 = vsel %vm576, %v5346, %v5332
        %v5348 = vrot.slane %v3000, 2
        %v5349 = vrot.slane %v3001, 2
        %v5350 = vsel %vm1752, %v5348, %v5349
        %v5351 = vrot.slane %v3002, 2
        %v5352 = vsel %vm1752, %v5349, %v5351
        %v5353 = vrot.slane %v3003, 2
        %v5354 = vrot.slane %v3004, 2
        %v5355 = vsel %vm1752, %v5353, %v5354
        %v5356 = vrot.slane %v3005, 2
        %v5357 = vsel %vm1752, %v5354, %v5356
        %v5358 = vrot.slane %v3006, 2
        %v5359 = vrot.slane %v3007, 2
        %v5360 = vsel %vm1752, %v5358, %v5359
        %v5361 = vrot.slane %v3008, 2
        %v5362 = vsel %vm1752, %v5359, %v5361
        %v5363 = vrot.slane %v3009, 2
        %v5364 = vrot.slane %v3010, 2
        %v5365 = vsel %vm1752, %v5363, %v5364
        %v5366 = vrot.slane %v3011, 2
        %v5367 = vsel %vm1752, %v5364, %v5366
        %v5368 = vrot.slane %v3012, 2
        %v5369 = vrot.slane %v3013, 2
        %v5370 = vsel %vm1752, %v5368, %v5369
        %v5371 = vrot.slane %v3014, 2
        %v5372 = vsel %vm1752, %v5369, %v5371
        %v5373 = vrot.slane %v3015, 2
        %v5374 = vrot.slane %v3016, 2
        %v5375 = vsel %vm1752, %v5373, %v5374
        %v5376 = vrot.slane %v3017, 2
        %v5377 = vsel %vm1752, %v5374, %v5376
        %v5378 = vrot.slane %v3018, 2
        %v5379 = vrot.slane %v3019, 2
        %v5380 = vsel %vm1752, %v5378, %v5379
        %v5381 = vrot.slane %v3020, 2
        %v5382 = vsel %vm1752, %v5379, %v5381
        %v5383 = vrot.slane %v3021, 2
        %v5384 = vrot.slane %v3022, 2
        %v5385 = vsel %vm1752, %v5383, %v5384
        %v5386 = vrot.slane %v3023, 2
        %v5387 = vsel %vm1752, %v5384, %v5386
        %v5404 = vcombine.low %v5350, %v5360
        %v5405 = vcombine.high %v5350, %v5360
        %v5407 = vunpack.c.l.s4 1983009808
        %v5408 = vunpack.c.0.s8 %v5407
        %v5409 = vlaneseq
        %v5410 = vshrl.u32 %v5409, 7
        %v5411 = vsub.s32 %v5408, %v5410
        %v5412 = vrot.slane %v5404, %v5411
        %v5414 = vunpack.c.l.s4 1983009808
        %v5415 = vunpack.c.0.s8 %v5414
        %v5416 = vlaneseq
        %v5417 = vshrl.u32 %v5416, 7
        %v5418 = vsub.s32 %v5415, %v5417
        %v5419 = vrot.slane %v5405, %v5418
        %v5420 = vcombine.low %v5355, %v5365
        %v5421 = vcombine.high %v5355, %v5365
        %v5423 = vunpack.c.l.s4 1983009808
        %v5424 = vunpack.c.0.s8 %v5423
        %v5425 = vlaneseq
        %v5426 = vshrl.u32 %v5425, 7
        %v5427 = vsub.s32 %v5424, %v5426
        %v5428 = vrot.slane %v5420, %v5427
        %v5430 = vunpack.c.l.s4 1983009808
        %v5431 = vunpack.c.0.s8 %v5430
        %v5432 = vlaneseq
        %v5433 = vshrl.u32 %v5432, 7
        %v5434 = vsub.s32 %v5431, %v5433
        %v5435 = vrot.slane %v5421, %v5434
        %v5436 = vcombine.low %v5370, %v5380
        %v5437 = vcombine.high %v5370, %v5380
        %v5439 = vunpack.c.l.s4 1983009808
        %v5440 = vunpack.c.0.s8 %v5439
        %v5441 = vlaneseq
        %v5442 = vshrl.u32 %v5441, 7
        %v5443 = vsub.s32 %v5440, %v5442
        %v5444 = vrot.slane %v5436, %v5443
        %v5446 = vunpack.c.l.s4 1983009808
        %v5447 = vunpack.c.0.s8 %v5446
        %v5448 = vlaneseq
        %v5449 = vshrl.u32 %v5448, 7
        %v5450 = vsub.s32 %v5447, %v5449
        %v5451 = vrot.slane %v5437, %v5450
        %v5452 = vcombine.low %v5375, %v5385
        %v5453 = vcombine.high %v5375, %v5385
        %v5455 = vunpack.c.l.s4 1983009808
        %v5456 = vunpack.c.0.s8 %v5455
        %v5457 = vlaneseq
        %v5458 = vshrl.u32 %v5457, 7
        %v5459 = vsub.s32 %v5456, %v5458
        %v5460 = vrot.slane %v5452, %v5459
        %v5462 = vunpack.c.l.s4 1983009808
        %v5463 = vunpack.c.0.s8 %v5462
        %v5464 = vlaneseq
        %v5465 = vshrl.u32 %v5464, 7
        %v5466 = vsub.s32 %v5463, %v5465
        %v5467 = vrot.slane %v5453, %v5466
        %v5468 = vcombine.low %v5412, %v5428
        %v5469 = vcombine.high %v5412, %v5428
        %v5471 = vunpack.c.l.s4 1934713408
        %v5472 = vunpack.c.0.s8 %v5471
        %v5473 = vlaneseq
        %v5474 = vshrl.u32 %v5473, 7
        %v5475 = vsub.s32 %v5472, %v5474
        %v5476 = vrot.slane %v5468, %v5475
        %v5478 = vunpack.c.l.s4 1934713408
        %v5479 = vunpack.c.0.s8 %v5478
        %v5480 = vlaneseq
        %v5481 = vshrl.u32 %v5480, 7
        %v5482 = vsub.s32 %v5479, %v5481
        %v5483 = vrot.slane %v5469, %v5482
        %v5484 = vcombine.low %v5419, %v5435
        %v5485 = vcombine.high %v5419, %v5435
        %v5487 = vunpack.c.l.s4 1934713408
        %v5488 = vunpack.c.0.s8 %v5487
        %v5489 = vlaneseq
        %v5490 = vshrl.u32 %v5489, 7
        %v5491 = vsub.s32 %v5488, %v5490
        %v5492 = vrot.slane %v5484, %v5491
        %v5494 = vunpack.c.l.s4 1934713408
        %v5495 = vunpack.c.0.s8 %v5494
        %v5496 = vlaneseq
        %v5497 = vshrl.u32 %v5496, 7
        %v5498 = vsub.s32 %v5495, %v5497
        %v5499 = vrot.slane %v5485, %v5498
        %v5500 = vcombine.low %v5444, %v5460
        %v5501 = vcombine.high %v5444, %v5460
        %v5503 = vunpack.c.l.s4 1934713408
        %v5504 = vunpack.c.0.s8 %v5503
        %v5505 = vlaneseq
        %v5506 = vshrl.u32 %v5505, 7
        %v5507 = vsub.s32 %v5504, %v5506
        %v5508 = vrot.slane %v5500, %v5507
        %v5510 = vunpack.c.l.s4 1934713408
        %v5511 = vunpack.c.0.s8 %v5510
        %v5512 = vlaneseq
        %v5513 = vshrl.u32 %v5512, 7
        %v5514 = vsub.s32 %v5511, %v5513
        %v5515 = vrot.slane %v5501, %v5514
        %v5516 = vcombine.low %v5451, %v5467
        %v5517 = vcombine.high %v5451, %v5467
        %v5519 = vunpack.c.l.s4 1934713408
        %v5520 = vunpack.c.0.s8 %v5519
        %v5521 = vlaneseq
        %v5522 = vshrl.u32 %v5521, 7
        %v5523 = vsub.s32 %v5520, %v5522
        %v5524 = vrot.slane %v5516, %v5523
        %v5526 = vunpack.c.l.s4 1934713408
        %v5527 = vunpack.c.0.s8 %v5526
        %v5528 = vlaneseq
        %v5529 = vshrl.u32 %v5528, 7
        %v5530 = vsub.s32 %v5527, %v5529
        %v5531 = vrot.slane %v5517, %v5530
        %v5532 = vcombine.low %v5476, %v5508
        %v5533 = vcombine.high %v5476, %v5508
        %v5534 = vcombine.low %v5483, %v5515
        %v5535 = vcombine.high %v5483, %v5515
        %v5536 = vcombine.low %v5492, %v5524
        %v5537 = vcombine.high %v5492, %v5524
        %v5538 = vcombine.low %v5499, %v5531
        %v5539 = vcombine.high %v5499, %v5531
        %v5540 = vcombine.low %v5352, %v5362
        %v5541 = vcombine.high %v5352, %v5362
        %v5543 = vunpack.c.l.s4 1983009808
        %v5544 = vunpack.c.0.s8 %v5543
        %v5545 = vlaneseq
        %v5546 = vshrl.u32 %v5545, 7
        %v5547 = vsub.s32 %v5544, %v5546
        %v5548 = vrot.slane %v5540, %v5547
        %v5550 = vunpack.c.l.s4 1983009808
        %v5551 = vunpack.c.0.s8 %v5550
        %v5552 = vlaneseq
        %v5553 = vshrl.u32 %v5552, 7
        %v5554 = vsub.s32 %v5551, %v5553
        %v5555 = vrot.slane %v5541, %v5554
        %v5556 = vcombine.low %v5357, %v5367
        %v5557 = vcombine.high %v5357, %v5367
        %v5559 = vunpack.c.l.s4 1983009808
        %v5560 = vunpack.c.0.s8 %v5559
        %v5561 = vlaneseq
        %v5562 = vshrl.u32 %v5561, 7
        %v5563 = vsub.s32 %v5560, %v5562
        %v5564 = vrot.slane %v5556, %v5563
        %v5566 = vunpack.c.l.s4 1983009808
        %v5567 = vunpack.c.0.s8 %v5566
        %v5568 = vlaneseq
        %v5569 = vshrl.u32 %v5568, 7
        %v5570 = vsub.s32 %v5567, %v5569
        %v5571 = vrot.slane %v5557, %v5570
        %v5572 = vcombine.low %v5372, %v5382
        %v5573 = vcombine.high %v5372, %v5382
        %v5575 = vunpack.c.l.s4 1983009808
        %v5576 = vunpack.c.0.s8 %v5575
        %v5577 = vlaneseq
        %v5578 = vshrl.u32 %v5577, 7
        %v5579 = vsub.s32 %v5576, %v5578
        %v5580 = vrot.slane %v5572, %v5579
        %v5582 = vunpack.c.l.s4 1983009808
        %v5583 = vunpack.c.0.s8 %v5582
        %v5584 = vlaneseq
        %v5585 = vshrl.u32 %v5584, 7
        %v5586 = vsub.s32 %v5583, %v5585
        %v5587 = vrot.slane %v5573, %v5586
        %v5588 = vcombine.low %v5377, %v5387
        %v5589 = vcombine.high %v5377, %v5387
        %v5591 = vunpack.c.l.s4 1983009808
        %v5592 = vunpack.c.0.s8 %v5591
        %v5593 = vlaneseq
        %v5594 = vshrl.u32 %v5593, 7
        %v5595 = vsub.s32 %v5592, %v5594
        %v5596 = vrot.slane %v5588, %v5595
        %v5598 = vunpack.c.l.s4 1983009808
        %v5599 = vunpack.c.0.s8 %v5598
        %v5600 = vlaneseq
        %v5601 = vshrl.u32 %v5600, 7
        %v5602 = vsub.s32 %v5599, %v5601
        %v5603 = vrot.slane %v5589, %v5602
        %v5604 = vcombine.low %v5548, %v5564
        %v5605 = vcombine.high %v5548, %v5564
        %v5607 = vunpack.c.l.s4 1934713408
        %v5608 = vunpack.c.0.s8 %v5607
        %v5609 = vlaneseq
        %v5610 = vshrl.u32 %v5609, 7
        %v5611 = vsub.s32 %v5608, %v5610
        %v5612 = vrot.slane %v5604, %v5611
        %v5614 = vunpack.c.l.s4 1934713408
        %v5615 = vunpack.c.0.s8 %v5614
        %v5616 = vlaneseq
        %v5617 = vshrl.u32 %v5616, 7
        %v5618 = vsub.s32 %v5615, %v5617
        %v5619 = vrot.slane %v5605, %v5618
        %v5620 = vcombine.low %v5555, %v5571
        %v5621 = vcombine.high %v5555, %v5571
        %v5623 = vunpack.c.l.s4 1934713408
        %v5624 = vunpack.c.0.s8 %v5623
        %v5625 = vlaneseq
        %v5626 = vshrl.u32 %v5625, 7
        %v5627 = vsub.s32 %v5624, %v5626
        %v5628 = vrot.slane %v5620, %v5627
        %v5630 = vunpack.c.l.s4 1934713408
        %v5631 = vunpack.c.0.s8 %v5630
        %v5632 = vlaneseq
        %v5633 = vshrl.u32 %v5632, 7
        %v5634 = vsub.s32 %v5631, %v5633
        %v5635 = vrot.slane %v5621, %v5634
        %v5636 = vcombine.low %v5580, %v5596
        %v5637 = vcombine.high %v5580, %v5596
        %v5639 = vunpack.c.l.s4 1934713408
        %v5640 = vunpack.c.0.s8 %v5639
        %v5641 = vlaneseq
        %v5642 = vshrl.u32 %v5641, 7
        %v5643 = vsub.s32 %v5640, %v5642
        %v5644 = vrot.slane %v5636, %v5643
        %v5646 = vunpack.c.l.s4 1934713408
        %v5647 = vunpack.c.0.s8 %v5646
        %v5648 = vlaneseq
        %v5649 = vshrl.u32 %v5648, 7
        %v5650 = vsub.s32 %v5647, %v5649
        %v5651 = vrot.slane %v5637, %v5650
        %v5652 = vcombine.low %v5587, %v5603
        %v5653 = vcombine.high %v5587, %v5603
        %v5655 = vunpack.c.l.s4 1934713408
        %v5656 = vunpack.c.0.s8 %v5655
        %v5657 = vlaneseq
        %v5658 = vshrl.u32 %v5657, 7
        %v5659 = vsub.s32 %v5656, %v5658
        %v5660 = vrot.slane %v5652, %v5659
        %v5662 = vunpack.c.l.s4 1934713408
        %v5663 = vunpack.c.0.s8 %v5662
        %v5664 = vlaneseq
        %v5665 = vshrl.u32 %v5664, 7
        %v5666 = vsub.s32 %v5663, %v5665
        %v5667 = vrot.slane %v5653, %v5666
        %v5668 = vcombine.low %v5612, %v5644
        %v5669 = vcombine.high %v5612, %v5644
        %v5670 = vcombine.low %v5619, %v5651
        %v5671 = vcombine.high %v5619, %v5651
        %v5672 = vcombine.low %v5628, %v5660
        %v5673 = vcombine.high %v5628, %v5660
        %v5674 = vcombine.low %v5635, %v5667
        %v5675 = vcombine.high %v5635, %v5667
        %5677 = vrot.lane.b32.xlu0 %v5533, 16
        %v5678 = vpop.permute.xlu0 %5677
        %5681 = vrot.lane.b32.xlu0 %v5534, 32
        %v5682 = vpop.permute.xlu0 %5681
        %5685 = vrot.lane.b32.xlu0 %v5535, 48
        %v5686 = vpop.permute.xlu0 %5685
        %5689 = vrot.lane.b32.xlu0 %v5536, 64
        %v5690 = vpop.permute.xlu0 %5689
        %5693 = vrot.lane.b32.xlu0 %v5537, 80
        %v5694 = vpop.permute.xlu0 %5693
        %5697 = vrot.lane.b32.xlu0 %v5538, 96
        %v5698 = vpop.permute.xlu0 %5697
        %5701 = vrot.lane.b32.xlu0 %v5539, 112
        %v5702 = vpop.permute.xlu0 %5701
        %5705 = vrot.lane.b32.xlu0 %v5669, 16
        %v5706 = vpop.permute.xlu0 %5705
        %5709 = vrot.lane.b32.xlu0 %v5670, 32
        %v5710 = vpop.permute.xlu0 %5709
        %5713 = vrot.lane.b32.xlu0 %v5671, 48
        %v5714 = vpop.permute.xlu0 %5713
        %5717 = vrot.lane.b32.xlu0 %v5672, 64
        %v5718 = vpop.permute.xlu0 %5717
        %5721 = vrot.lane.b32.xlu0 %v5673, 80
        %v5722 = vpop.permute.xlu0 %5721
        %5725 = vrot.lane.b32.xlu0 %v5674, 96
        %v5726 = vpop.permute.xlu0 %5725
        %5729 = vrot.lane.b32.xlu0 %v5675, 112
        %v5730 = vpop.permute.xlu0 %5729
        %v5732 = vsel %vm564, %v5532, %v5678
        %v5733 = vsel %vm566, %v5732, %v5682
        %v5734 = vsel %vm568, %v5733, %v5686
        %v5735 = vsel %vm570, %v5734, %v5690
        %v5736 = vsel %vm572, %v5735, %v5694
        %v5737 = vsel %vm574, %v5736, %v5698
        %v5738 = vsel %vm576, %v5737, %v5702
        %v5739 = vsel %vm564, %v5668, %v5706
        %v5740 = vsel %vm566, %v5739, %v5710
        %v5741 = vsel %vm568, %v5740, %v5714
        %v5742 = vsel %vm570, %v5741, %v5718
        %v5743 = vsel %vm572, %v5742, %v5722
        %v5744 = vsel %vm574, %v5743, %v5726
        %v5745 = vsel %vm576, %v5744, %v5730
        %5746 = vrot.lane.b32.xlu0 %v5350, 127
        %v5747 = vpop.permute.xlu0 %5746
        %5748 = vrot.lane.b32.xlu0 %v5352, 127
        %v5749 = vpop.permute.xlu0 %5748
        %5750 = vrot.lane.b32.xlu0 %v5355, 127
        %v5751 = vpop.permute.xlu0 %5750
        %5752 = vrot.lane.b32.xlu0 %v5357, 127
        %v5753 = vpop.permute.xlu0 %5752
        %5754 = vrot.lane.b32.xlu0 %v5360, 127
        %v5755 = vpop.permute.xlu0 %5754
        %5756 = vrot.lane.b32.xlu0 %v5362, 127
        %v5757 = vpop.permute.xlu0 %5756
        %5758 = vrot.lane.b32.xlu0 %v5365, 127
        %v5759 = vpop.permute.xlu0 %5758
        %5760 = vrot.lane.b32.xlu0 %v5367, 127
        %v5761 = vpop.permute.xlu0 %5760
        %5762 = vrot.lane.b32.xlu0 %v5370, 127
        %v5763 = vpop.permute.xlu0 %5762
        %5764 = vrot.lane.b32.xlu0 %v5372, 127
        %v5765 = vpop.permute.xlu0 %5764
        %5766 = vrot.lane.b32.xlu0 %v5375, 127
        %v5767 = vpop.permute.xlu0 %5766
        %5768 = vrot.lane.b32.xlu0 %v5377, 127
        %v5769 = vpop.permute.xlu0 %5768
        %5770 = vrot.lane.b32.xlu0 %v5380, 127
        %v5771 = vpop.permute.xlu0 %5770
        %5772 = vrot.lane.b32.xlu0 %v5382, 127
        %v5773 = vpop.permute.xlu0 %5772
        %5774 = vrot.lane.b32.xlu0 %v5385, 127
        %v5775 = vpop.permute.xlu0 %5774
        %5776 = vrot.lane.b32.xlu0 %v5387, 127
        %v5777 = vpop.permute.xlu0 %5776
        %v5794 = vcombine.low %v5747, %v5755
        %v5795 = vcombine.high %v5747, %v5755
        %v5797 = vunpack.c.l.s4 1983009808
        %v5798 = vunpack.c.0.s8 %v5797
        %v5799 = vlaneseq
        %v5800 = vshrl.u32 %v5799, 7
        %v5801 = vsub.s32 %v5798, %v5800
        %v5802 = vrot.slane %v5794, %v5801
        %v5804 = vunpack.c.l.s4 1983009808
        %v5805 = vunpack.c.0.s8 %v5804
        %v5806 = vlaneseq
        %v5807 = vshrl.u32 %v5806, 7
        %v5808 = vsub.s32 %v5805, %v5807
        %v5809 = vrot.slane %v5795, %v5808
        %v5810 = vcombine.low %v5751, %v5759
        %v5811 = vcombine.high %v5751, %v5759
        %v5813 = vunpack.c.l.s4 1983009808
        %v5814 = vunpack.c.0.s8 %v5813
        %v5815 = vlaneseq
        %v5816 = vshrl.u32 %v5815, 7
        %v5817 = vsub.s32 %v5814, %v5816
        %v5818 = vrot.slane %v5810, %v5817
        %v5820 = vunpack.c.l.s4 1983009808
        %v5821 = vunpack.c.0.s8 %v5820
        %v5822 = vlaneseq
        %v5823 = vshrl.u32 %v5822, 7
        %v5824 = vsub.s32 %v5821, %v5823
        %v5825 = vrot.slane %v5811, %v5824
        %v5826 = vcombine.low %v5763, %v5771
        %v5827 = vcombine.high %v5763, %v5771
        %v5829 = vunpack.c.l.s4 1983009808
        %v5830 = vunpack.c.0.s8 %v5829
        %v5831 = vlaneseq
        %v5832 = vshrl.u32 %v5831, 7
        %v5833 = vsub.s32 %v5830, %v5832
        %v5834 = vrot.slane %v5826, %v5833
        %v5836 = vunpack.c.l.s4 1983009808
        %v5837 = vunpack.c.0.s8 %v5836
        %v5838 = vlaneseq
        %v5839 = vshrl.u32 %v5838, 7
        %v5840 = vsub.s32 %v5837, %v5839
        %v5841 = vrot.slane %v5827, %v5840
        %v5842 = vcombine.low %v5767, %v5775
        %v5843 = vcombine.high %v5767, %v5775
        %v5845 = vunpack.c.l.s4 1983009808
        %v5846 = vunpack.c.0.s8 %v5845
        %v5847 = vlaneseq
        %v5848 = vshrl.u32 %v5847, 7
        %v5849 = vsub.s32 %v5846, %v5848
        %v5850 = vrot.slane %v5842, %v5849
        %v5852 = vunpack.c.l.s4 1983009808
        %v5853 = vunpack.c.0.s8 %v5852
        %v5854 = vlaneseq
        %v5855 = vshrl.u32 %v5854, 7
        %v5856 = vsub.s32 %v5853, %v5855
        %v5857 = vrot.slane %v5843, %v5856
        %v5858 = vcombine.low %v5802, %v5818
        %v5859 = vcombine.high %v5802, %v5818
        %v5861 = vunpack.c.l.s4 1934713408
        %v5862 = vunpack.c.0.s8 %v5861
        %v5863 = vlaneseq
        %v5864 = vshrl.u32 %v5863, 7
        %v5865 = vsub.s32 %v5862, %v5864
        %v5866 = vrot.slane %v5858, %v5865
        %v5868 = vunpack.c.l.s4 1934713408
        %v5869 = vunpack.c.0.s8 %v5868
        %v5870 = vlaneseq
        %v5871 = vshrl.u32 %v5870, 7
        %v5872 = vsub.s32 %v5869, %v5871
        %v5873 = vrot.slane %v5859, %v5872
        %v5874 = vcombine.low %v5809, %v5825
        %v5875 = vcombine.high %v5809, %v5825
        %v5877 = vunpack.c.l.s4 1934713408
        %v5878 = vunpack.c.0.s8 %v5877
        %v5879 = vlaneseq
        %v5880 = vshrl.u32 %v5879, 7
        %v5881 = vsub.s32 %v5878, %v5880
        %v5882 = vrot.slane %v5874, %v5881
        %v5884 = vunpack.c.l.s4 1934713408
        %v5885 = vunpack.c.0.s8 %v5884
        %v5886 = vlaneseq
        %v5887 = vshrl.u32 %v5886, 7
        %v5888 = vsub.s32 %v5885, %v5887
        %v5889 = vrot.slane %v5875, %v5888
        %v5890 = vcombine.low %v5834, %v5850
        %v5891 = vcombine.high %v5834, %v5850
        %v5893 = vunpack.c.l.s4 1934713408
        %v5894 = vunpack.c.0.s8 %v5893
        %v5895 = vlaneseq
        %v5896 = vshrl.u32 %v5895, 7
        %v5897 = vsub.s32 %v5894, %v5896
        %v5898 = vrot.slane %v5890, %v5897
        %v5900 = vunpack.c.l.s4 1934713408
        %v5901 = vunpack.c.0.s8 %v5900
        %v5902 = vlaneseq
        %v5903 = vshrl.u32 %v5902, 7
        %v5904 = vsub.s32 %v5901, %v5903
        %v5905 = vrot.slane %v5891, %v5904
        %v5906 = vcombine.low %v5841, %v5857
        %v5907 = vcombine.high %v5841, %v5857
        %v5909 = vunpack.c.l.s4 1934713408
        %v5910 = vunpack.c.0.s8 %v5909
        %v5911 = vlaneseq
        %v5912 = vshrl.u32 %v5911, 7
        %v5913 = vsub.s32 %v5910, %v5912
        %v5914 = vrot.slane %v5906, %v5913
        %v5916 = vunpack.c.l.s4 1934713408
        %v5917 = vunpack.c.0.s8 %v5916
        %v5918 = vlaneseq
        %v5919 = vshrl.u32 %v5918, 7
        %v5920 = vsub.s32 %v5917, %v5919
        %v5921 = vrot.slane %v5907, %v5920
        %v5922 = vcombine.low %v5866, %v5898
        %v5923 = vcombine.high %v5866, %v5898
        %v5924 = vcombine.low %v5873, %v5905
        %v5925 = vcombine.high %v5873, %v5905
        %v5926 = vcombine.low %v5882, %v5914
        %v5927 = vcombine.high %v5882, %v5914
        %v5928 = vcombine.low %v5889, %v5921
        %v5929 = vcombine.high %v5889, %v5921
        %v5930 = vcombine.low %v5749, %v5757
        %v5931 = vcombine.high %v5749, %v5757
        %v5933 = vunpack.c.l.s4 1983009808
        %v5934 = vunpack.c.0.s8 %v5933
        %v5935 = vlaneseq
        %v5936 = vshrl.u32 %v5935, 7
        %v5937 = vsub.s32 %v5934, %v5936
        %v5938 = vrot.slane %v5930, %v5937
        %v5940 = vunpack.c.l.s4 1983009808
        %v5941 = vunpack.c.0.s8 %v5940
        %v5942 = vlaneseq
        %v5943 = vshrl.u32 %v5942, 7
        %v5944 = vsub.s32 %v5941, %v5943
        %v5945 = vrot.slane %v5931, %v5944
        %v5946 = vcombine.low %v5753, %v5761
        %v5947 = vcombine.high %v5753, %v5761
        %v5949 = vunpack.c.l.s4 1983009808
        %v5950 = vunpack.c.0.s8 %v5949
        %v5951 = vlaneseq
        %v5952 = vshrl.u32 %v5951, 7
        %v5953 = vsub.s32 %v5950, %v5952
        %v5954 = vrot.slane %v5946, %v5953
        %v5956 = vunpack.c.l.s4 1983009808
        %v5957 = vunpack.c.0.s8 %v5956
        %v5958 = vlaneseq
        %v5959 = vshrl.u32 %v5958, 7
        %v5960 = vsub.s32 %v5957, %v5959
        %v5961 = vrot.slane %v5947, %v5960
        %v5962 = vcombine.low %v5765, %v5773
        %v5963 = vcombine.high %v5765, %v5773
        %v5965 = vunpack.c.l.s4 1983009808
        %v5966 = vunpack.c.0.s8 %v5965
        %v5967 = vlaneseq
        %v5968 = vshrl.u32 %v5967, 7
        %v5969 = vsub.s32 %v5966, %v5968
        %v5970 = vrot.slane %v5962, %v5969
        %v5972 = vunpack.c.l.s4 1983009808
        %v5973 = vunpack.c.0.s8 %v5972
        %v5974 = vlaneseq
        %v5975 = vshrl.u32 %v5974, 7
        %v5976 = vsub.s32 %v5973, %v5975
        %v5977 = vrot.slane %v5963, %v5976
        %v5978 = vcombine.low %v5769, %v5777
        %v5979 = vcombine.high %v5769, %v5777
        %v5981 = vunpack.c.l.s4 1983009808
        %v5982 = vunpack.c.0.s8 %v5981
        %v5983 = vlaneseq
        %v5984 = vshrl.u32 %v5983, 7
        %v5985 = vsub.s32 %v5982, %v5984
        %v5986 = vrot.slane %v5978, %v5985
        %v5988 = vunpack.c.l.s4 1983009808
        %v5989 = vunpack.c.0.s8 %v5988
        %v5990 = vlaneseq
        %v5991 = vshrl.u32 %v5990, 7
        %v5992 = vsub.s32 %v5989, %v5991
        %v5993 = vrot.slane %v5979, %v5992
        %v5994 = vcombine.low %v5938, %v5954
        %v5995 = vcombine.high %v5938, %v5954
        %v5997 = vunpack.c.l.s4 1934713408
        %v5998 = vunpack.c.0.s8 %v5997
        %v5999 = vlaneseq
        %v6000 = vshrl.u32 %v5999, 7
        %v6001 = vsub.s32 %v5998, %v6000
        %v6002 = vrot.slane %v5994, %v6001
        %v6004 = vunpack.c.l.s4 1934713408
        %v6005 = vunpack.c.0.s8 %v6004
        %v6006 = vlaneseq
        %v6007 = vshrl.u32 %v6006, 7
        %v6008 = vsub.s32 %v6005, %v6007
        %v6009 = vrot.slane %v5995, %v6008
        %v6010 = vcombine.low %v5945, %v5961
        %v6011 = vcombine.high %v5945, %v5961
        %v6013 = vunpack.c.l.s4 1934713408
        %v6014 = vunpack.c.0.s8 %v6013
        %v6015 = vlaneseq
        %v6016 = vshrl.u32 %v6015, 7
        %v6017 = vsub.s32 %v6014, %v6016
        %v6018 = vrot.slane %v6010, %v6017
        %v6020 = vunpack.c.l.s4 1934713408
        %v6021 = vunpack.c.0.s8 %v6020
        %v6022 = vlaneseq
        %v6023 = vshrl.u32 %v6022, 7
        %v6024 = vsub.s32 %v6021, %v6023
        %v6025 = vrot.slane %v6011, %v6024
        %v6026 = vcombine.low %v5970, %v5986
        %v6027 = vcombine.high %v5970, %v5986
        %v6029 = vunpack.c.l.s4 1934713408
        %v6030 = vunpack.c.0.s8 %v6029
        %v6031 = vlaneseq
        %v6032 = vshrl.u32 %v6031, 7
        %v6033 = vsub.s32 %v6030, %v6032
        %v6034 = vrot.slane %v6026, %v6033
        %v6036 = vunpack.c.l.s4 1934713408
        %v6037 = vunpack.c.0.s8 %v6036
        %v6038 = vlaneseq
        %v6039 = vshrl.u32 %v6038, 7
        %v6040 = vsub.s32 %v6037, %v6039
        %v6041 = vrot.slane %v6027, %v6040
        %v6042 = vcombine.low %v5977, %v5993
        %v6043 = vcombine.high %v5977, %v5993
        %v6045 = vunpack.c.l.s4 1934713408
        %v6046 = vunpack.c.0.s8 %v6045
        %v6047 = vlaneseq
        %v6048 = vshrl.u32 %v6047, 7
        %v6049 = vsub.s32 %v6046, %v6048
        %v6050 = vrot.slane %v6042, %v6049
        %v6052 = vunpack.c.l.s4 1934713408
        %v6053 = vunpack.c.0.s8 %v6052
        %v6054 = vlaneseq
        %v6055 = vshrl.u32 %v6054, 7
        %v6056 = vsub.s32 %v6053, %v6055
        %v6057 = vrot.slane %v6043, %v6056
        %v6058 = vcombine.low %v6002, %v6034
        %v6059 = vcombine.high %v6002, %v6034
        %v6060 = vcombine.low %v6009, %v6041
        %v6061 = vcombine.high %v6009, %v6041
        %v6062 = vcombine.low %v6018, %v6050
        %v6063 = vcombine.high %v6018, %v6050
        %v6064 = vcombine.low %v6025, %v6057
        %v6065 = vcombine.high %v6025, %v6057
        %6067 = vrot.lane.b32.xlu0 %v5923, 16
        %v6068 = vpop.permute.xlu0 %6067
        %6071 = vrot.lane.b32.xlu0 %v5924, 32
        %v6072 = vpop.permute.xlu0 %6071
        %6075 = vrot.lane.b32.xlu0 %v5925, 48
        %v6076 = vpop.permute.xlu0 %6075
        %6079 = vrot.lane.b32.xlu0 %v5926, 64
        %v6080 = vpop.permute.xlu0 %6079
        %6083 = vrot.lane.b32.xlu0 %v5927, 80
        %v6084 = vpop.permute.xlu0 %6083
        %6087 = vrot.lane.b32.xlu0 %v5928, 96
        %v6088 = vpop.permute.xlu0 %6087
        %6091 = vrot.lane.b32.xlu0 %v5929, 112
        %v6092 = vpop.permute.xlu0 %6091
        %6095 = vrot.lane.b32.xlu0 %v6059, 16
        %v6096 = vpop.permute.xlu0 %6095
        %6099 = vrot.lane.b32.xlu0 %v6060, 32
        %v6100 = vpop.permute.xlu0 %6099
        %6103 = vrot.lane.b32.xlu0 %v6061, 48
        %v6104 = vpop.permute.xlu0 %6103
        %6107 = vrot.lane.b32.xlu0 %v6062, 64
        %v6108 = vpop.permute.xlu0 %6107
        %6111 = vrot.lane.b32.xlu0 %v6063, 80
        %v6112 = vpop.permute.xlu0 %6111
        %6115 = vrot.lane.b32.xlu0 %v6064, 96
        %v6116 = vpop.permute.xlu0 %6115
        %6119 = vrot.lane.b32.xlu0 %v6065, 112
        %v6120 = vpop.permute.xlu0 %6119
        %v6122 = vsel %vm564, %v5922, %v6068
        %v6123 = vsel %vm566, %v6122, %v6072
        %v6124 = vsel %vm568, %v6123, %v6076
        %v6125 = vsel %vm570, %v6124, %v6080
        %v6126 = vsel %vm572, %v6125, %v6084
        %v6127 = vsel %vm574, %v6126, %v6088
        %v6128 = vsel %vm576, %v6127, %v6092
        %v6129 = vsel %vm564, %v6058, %v6096
        %v6130 = vsel %vm566, %v6129, %v6100
        %v6131 = vsel %vm568, %v6130, %v6104
        %v6132 = vsel %vm570, %v6131, %v6108
        %v6133 = vsel %vm572, %v6132, %v6112
        %v6134 = vsel %vm574, %v6133, %v6116
        %v6135 = vsel %vm576, %v6134, %v6120
        %6136 = vrot.lane.b32.xlu0 %v5350, 126
        %v6137 = vpop.permute.xlu0 %6136
        %6138 = vrot.lane.b32.xlu0 %v5352, 126
        %v6139 = vpop.permute.xlu0 %6138
        %6140 = vrot.lane.b32.xlu0 %v5355, 126
        %v6141 = vpop.permute.xlu0 %6140
        %6142 = vrot.lane.b32.xlu0 %v5357, 126
        %v6143 = vpop.permute.xlu0 %6142
        %6144 = vrot.lane.b32.xlu0 %v5360, 126
        %v6145 = vpop.permute.xlu0 %6144
        %6146 = vrot.lane.b32.xlu0 %v5362, 126
        %v6147 = vpop.permute.xlu0 %6146
        %6148 = vrot.lane.b32.xlu0 %v5365, 126
        %v6149 = vpop.permute.xlu0 %6148
        %6150 = vrot.lane.b32.xlu0 %v5367, 126
        %v6151 = vpop.permute.xlu0 %6150
        %6152 = vrot.lane.b32.xlu0 %v5370, 126
        %v6153 = vpop.permute.xlu0 %6152
        %6154 = vrot.lane.b32.xlu0 %v5372, 126
        %v6155 = vpop.permute.xlu0 %6154
        %6156 = vrot.lane.b32.xlu0 %v5375, 126
        %v6157 = vpop.permute.xlu0 %6156
        %6158 = vrot.lane.b32.xlu0 %v5377, 126
        %v6159 = vpop.permute.xlu0 %6158
        %6160 = vrot.lane.b32.xlu0 %v5380, 126
        %v6161 = vpop.permute.xlu0 %6160
        %6162 = vrot.lane.b32.xlu0 %v5382, 126
        %v6163 = vpop.permute.xlu0 %6162
        %6164 = vrot.lane.b32.xlu0 %v5385, 126
        %v6165 = vpop.permute.xlu0 %6164
        %6166 = vrot.lane.b32.xlu0 %v5387, 126
        %v6167 = vpop.permute.xlu0 %6166
        %v6184 = vcombine.low %v6137, %v6145
        %v6185 = vcombine.high %v6137, %v6145
        %v6187 = vunpack.c.l.s4 1983009808
        %v6188 = vunpack.c.0.s8 %v6187
        %v6189 = vlaneseq
        %v6190 = vshrl.u32 %v6189, 7
        %v6191 = vsub.s32 %v6188, %v6190
        %v6192 = vrot.slane %v6184, %v6191
        %v6194 = vunpack.c.l.s4 1983009808
        %v6195 = vunpack.c.0.s8 %v6194
        %v6196 = vlaneseq
        %v6197 = vshrl.u32 %v6196, 7
        %v6198 = vsub.s32 %v6195, %v6197
        %v6199 = vrot.slane %v6185, %v6198
        %v6200 = vcombine.low %v6141, %v6149
        %v6201 = vcombine.high %v6141, %v6149
        %v6203 = vunpack.c.l.s4 1983009808
        %v6204 = vunpack.c.0.s8 %v6203
        %v6205 = vlaneseq
        %v6206 = vshrl.u32 %v6205, 7
        %v6207 = vsub.s32 %v6204, %v6206
        %v6208 = vrot.slane %v6200, %v6207
        %v6210 = vunpack.c.l.s4 1983009808
        %v6211 = vunpack.c.0.s8 %v6210
        %v6212 = vlaneseq
        %v6213 = vshrl.u32 %v6212, 7
        %v6214 = vsub.s32 %v6211, %v6213
        %v6215 = vrot.slane %v6201, %v6214
        %v6216 = vcombine.low %v6153, %v6161
        %v6217 = vcombine.high %v6153, %v6161
        %v6219 = vunpack.c.l.s4 1983009808
        %v6220 = vunpack.c.0.s8 %v6219
        %v6221 = vlaneseq
        %v6222 = vshrl.u32 %v6221, 7
        %v6223 = vsub.s32 %v6220, %v6222
        %v6224 = vrot.slane %v6216, %v6223
        %v6226 = vunpack.c.l.s4 1983009808
        %v6227 = vunpack.c.0.s8 %v6226
        %v6228 = vlaneseq
        %v6229 = vshrl.u32 %v6228, 7
        %v6230 = vsub.s32 %v6227, %v6229
        %v6231 = vrot.slane %v6217, %v6230
        %v6232 = vcombine.low %v6157, %v6165
        %v6233 = vcombine.high %v6157, %v6165
        %v6235 = vunpack.c.l.s4 1983009808
        %v6236 = vunpack.c.0.s8 %v6235
        %v6237 = vlaneseq
        %v6238 = vshrl.u32 %v6237, 7
        %v6239 = vsub.s32 %v6236, %v6238
        %v6240 = vrot.slane %v6232, %v6239
        %v6242 = vunpack.c.l.s4 1983009808
        %v6243 = vunpack.c.0.s8 %v6242
        %v6244 = vlaneseq
        %v6245 = vshrl.u32 %v6244, 7
        %v6246 = vsub.s32 %v6243, %v6245
        %v6247 = vrot.slane %v6233, %v6246
        %v6248 = vcombine.low %v6192, %v6208
        %v6249 = vcombine.high %v6192, %v6208
        %v6251 = vunpack.c.l.s4 1934713408
        %v6252 = vunpack.c.0.s8 %v6251
        %v6253 = vlaneseq
        %v6254 = vshrl.u32 %v6253, 7
        %v6255 = vsub.s32 %v6252, %v6254
        %v6256 = vrot.slane %v6248, %v6255
        %v6258 = vunpack.c.l.s4 1934713408
        %v6259 = vunpack.c.0.s8 %v6258
        %v6260 = vlaneseq
        %v6261 = vshrl.u32 %v6260, 7
        %v6262 = vsub.s32 %v6259, %v6261
        %v6263 = vrot.slane %v6249, %v6262
        %v6264 = vcombine.low %v6199, %v6215
        %v6265 = vcombine.high %v6199, %v6215
        %v6267 = vunpack.c.l.s4 1934713408
        %v6268 = vunpack.c.0.s8 %v6267
        %v6269 = vlaneseq
        %v6270 = vshrl.u32 %v6269, 7
        %v6271 = vsub.s32 %v6268, %v6270
        %v6272 = vrot.slane %v6264, %v6271
        %v6274 = vunpack.c.l.s4 1934713408
        %v6275 = vunpack.c.0.s8 %v6274
        %v6276 = vlaneseq
        %v6277 = vshrl.u32 %v6276, 7
        %v6278 = vsub.s32 %v6275, %v6277
        %v6279 = vrot.slane %v6265, %v6278
        %v6280 = vcombine.low %v6224, %v6240
        %v6281 = vcombine.high %v6224, %v6240
        %v6283 = vunpack.c.l.s4 1934713408
        %v6284 = vunpack.c.0.s8 %v6283
        %v6285 = vlaneseq
        %v6286 = vshrl.u32 %v6285, 7
        %v6287 = vsub.s32 %v6284, %v6286
        %v6288 = vrot.slane %v6280, %v6287
        %v6290 = vunpack.c.l.s4 1934713408
        %v6291 = vunpack.c.0.s8 %v6290
        %v6292 = vlaneseq
        %v6293 = vshrl.u32 %v6292, 7
        %v6294 = vsub.s32 %v6291, %v6293
        %v6295 = vrot.slane %v6281, %v6294
        %v6296 = vcombine.low %v6231, %v6247
        %v6297 = vcombine.high %v6231, %v6247
        %v6299 = vunpack.c.l.s4 1934713408
        %v6300 = vunpack.c.0.s8 %v6299
        %v6301 = vlaneseq
        %v6302 = vshrl.u32 %v6301, 7
        %v6303 = vsub.s32 %v6300, %v6302
        %v6304 = vrot.slane %v6296, %v6303
        %v6306 = vunpack.c.l.s4 1934713408
        %v6307 = vunpack.c.0.s8 %v6306
        %v6308 = vlaneseq
        %v6309 = vshrl.u32 %v6308, 7
        %v6310 = vsub.s32 %v6307, %v6309
        %v6311 = vrot.slane %v6297, %v6310
        %v6312 = vcombine.low %v6256, %v6288
        %v6313 = vcombine.high %v6256, %v6288
        %v6314 = vcombine.low %v6263, %v6295
        %v6315 = vcombine.high %v6263, %v6295
        %v6316 = vcombine.low %v6272, %v6304
        %v6317 = vcombine.high %v6272, %v6304
        %v6318 = vcombine.low %v6279, %v6311
        %v6319 = vcombine.high %v6279, %v6311
        %v6320 = vcombine.low %v6139, %v6147
        %v6321 = vcombine.high %v6139, %v6147
        %v6323 = vunpack.c.l.s4 1983009808
        %v6324 = vunpack.c.0.s8 %v6323
        %v6325 = vlaneseq
        %v6326 = vshrl.u32 %v6325, 7
        %v6327 = vsub.s32 %v6324, %v6326
        %v6328 = vrot.slane %v6320, %v6327
        %v6330 = vunpack.c.l.s4 1983009808
        %v6331 = vunpack.c.0.s8 %v6330
        %v6332 = vlaneseq
        %v6333 = vshrl.u32 %v6332, 7
        %v6334 = vsub.s32 %v6331, %v6333
        %v6335 = vrot.slane %v6321, %v6334
        %v6336 = vcombine.low %v6143, %v6151
        %v6337 = vcombine.high %v6143, %v6151
        %v6339 = vunpack.c.l.s4 1983009808
        %v6340 = vunpack.c.0.s8 %v6339
        %v6341 = vlaneseq
        %v6342 = vshrl.u32 %v6341, 7
        %v6343 = vsub.s32 %v6340, %v6342
        %v6344 = vrot.slane %v6336, %v6343
        %v6346 = vunpack.c.l.s4 1983009808
        %v6347 = vunpack.c.0.s8 %v6346
        %v6348 = vlaneseq
        %v6349 = vshrl.u32 %v6348, 7
        %v6350 = vsub.s32 %v6347, %v6349
        %v6351 = vrot.slane %v6337, %v6350
        %v6352 = vcombine.low %v6155, %v6163
        %v6353 = vcombine.high %v6155, %v6163
        %v6355 = vunpack.c.l.s4 1983009808
        %v6356 = vunpack.c.0.s8 %v6355
        %v6357 = vlaneseq
        %v6358 = vshrl.u32 %v6357, 7
        %v6359 = vsub.s32 %v6356, %v6358
        %v6360 = vrot.slane %v6352, %v6359
        %v6362 = vunpack.c.l.s4 1983009808
        %v6363 = vunpack.c.0.s8 %v6362
        %v6364 = vlaneseq
        %v6365 = vshrl.u32 %v6364, 7
        %v6366 = vsub.s32 %v6363, %v6365
        %v6367 = vrot.slane %v6353, %v6366
        %v6368 = vcombine.low %v6159, %v6167
        %v6369 = vcombine.high %v6159, %v6167
        %v6371 = vunpack.c.l.s4 1983009808
        %v6372 = vunpack.c.0.s8 %v6371
        %v6373 = vlaneseq
        %v6374 = vshrl.u32 %v6373, 7
        %v6375 = vsub.s32 %v6372, %v6374
        %v6376 = vrot.slane %v6368, %v6375
        %v6378 = vunpack.c.l.s4 1983009808
        %v6379 = vunpack.c.0.s8 %v6378
        %v6380 = vlaneseq
        %v6381 = vshrl.u32 %v6380, 7
        %v6382 = vsub.s32 %v6379, %v6381
        %v6383 = vrot.slane %v6369, %v6382
        %v6384 = vcombine.low %v6328, %v6344
        %v6385 = vcombine.high %v6328, %v6344
        %v6387 = vunpack.c.l.s4 1934713408
        %v6388 = vunpack.c.0.s8 %v6387
        %v6389 = vlaneseq
        %v6390 = vshrl.u32 %v6389, 7
        %v6391 = vsub.s32 %v6388, %v6390
        %v6392 = vrot.slane %v6384, %v6391
        %v6394 = vunpack.c.l.s4 1934713408
        %v6395 = vunpack.c.0.s8 %v6394
        %v6396 = vlaneseq
        %v6397 = vshrl.u32 %v6396, 7
        %v6398 = vsub.s32 %v6395, %v6397
        %v6399 = vrot.slane %v6385, %v6398
        %v6400 = vcombine.low %v6335, %v6351
        %v6401 = vcombine.high %v6335, %v6351
        %v6403 = vunpack.c.l.s4 1934713408
        %v6404 = vunpack.c.0.s8 %v6403
        %v6405 = vlaneseq
        %v6406 = vshrl.u32 %v6405, 7
        %v6407 = vsub.s32 %v6404, %v6406
        %v6408 = vrot.slane %v6400, %v6407
        %v6410 = vunpack.c.l.s4 1934713408
        %v6411 = vunpack.c.0.s8 %v6410
        %v6412 = vlaneseq
        %v6413 = vshrl.u32 %v6412, 7
        %v6414 = vsub.s32 %v6411, %v6413
        %v6415 = vrot.slane %v6401, %v6414
        %v6416 = vcombine.low %v6360, %v6376
        %v6417 = vcombine.high %v6360, %v6376
        %v6419 = vunpack.c.l.s4 1934713408
        %v6420 = vunpack.c.0.s8 %v6419
        %v6421 = vlaneseq
        %v6422 = vshrl.u32 %v6421, 7
        %v6423 = vsub.s32 %v6420, %v6422
        %v6424 = vrot.slane %v6416, %v6423
        %v6426 = vunpack.c.l.s4 1934713408
        %v6427 = vunpack.c.0.s8 %v6426
        %v6428 = vlaneseq
        %v6429 = vshrl.u32 %v6428, 7
        %v6430 = vsub.s32 %v6427, %v6429
        %v6431 = vrot.slane %v6417, %v6430
        %v6432 = vcombine.low %v6367, %v6383
        %v6433 = vcombine.high %v6367, %v6383
        %v6435 = vunpack.c.l.s4 1934713408
        %v6436 = vunpack.c.0.s8 %v6435
        %v6437 = vlaneseq
        %v6438 = vshrl.u32 %v6437, 7
        %v6439 = vsub.s32 %v6436, %v6438
        %v6440 = vrot.slane %v6432, %v6439
        %v6442 = vunpack.c.l.s4 1934713408
        %v6443 = vunpack.c.0.s8 %v6442
        %v6444 = vlaneseq
        %v6445 = vshrl.u32 %v6444, 7
        %v6446 = vsub.s32 %v6443, %v6445
        %v6447 = vrot.slane %v6433, %v6446
        %v6448 = vcombine.low %v6392, %v6424
        %v6449 = vcombine.high %v6392, %v6424
        %v6450 = vcombine.low %v6399, %v6431
        %v6451 = vcombine.high %v6399, %v6431
        %v6452 = vcombine.low %v6408, %v6440
        %v6453 = vcombine.high %v6408, %v6440
        %v6454 = vcombine.low %v6415, %v6447
        %v6455 = vcombine.high %v6415, %v6447
        %6457 = vrot.lane.b32.xlu0 %v6313, 16
        %v6458 = vpop.permute.xlu0 %6457
        %6461 = vrot.lane.b32.xlu0 %v6314, 32
        %v6462 = vpop.permute.xlu0 %6461
        %6465 = vrot.lane.b32.xlu0 %v6315, 48
        %v6466 = vpop.permute.xlu0 %6465
        %6469 = vrot.lane.b32.xlu0 %v6316, 64
        %v6470 = vpop.permute.xlu0 %6469
        %6473 = vrot.lane.b32.xlu0 %v6317, 80
        %v6474 = vpop.permute.xlu0 %6473
        %6477 = vrot.lane.b32.xlu0 %v6318, 96
        %v6478 = vpop.permute.xlu0 %6477
        %6481 = vrot.lane.b32.xlu0 %v6319, 112
        %v6482 = vpop.permute.xlu0 %6481
        %6485 = vrot.lane.b32.xlu0 %v6449, 16
        %v6486 = vpop.permute.xlu0 %6485
        %6489 = vrot.lane.b32.xlu0 %v6450, 32
        %v6490 = vpop.permute.xlu0 %6489
        %6493 = vrot.lane.b32.xlu0 %v6451, 48
        %v6494 = vpop.permute.xlu0 %6493
        %6497 = vrot.lane.b32.xlu0 %v6452, 64
        %v6498 = vpop.permute.xlu0 %6497
        %6501 = vrot.lane.b32.xlu0 %v6453, 80
        %v6502 = vpop.permute.xlu0 %6501
        %6505 = vrot.lane.b32.xlu0 %v6454, 96
        %v6506 = vpop.permute.xlu0 %6505
        %6509 = vrot.lane.b32.xlu0 %v6455, 112
        %v6510 = vpop.permute.xlu0 %6509
        %v6512 = vsel %vm564, %v6312, %v6458
        %v6513 = vsel %vm566, %v6512, %v6462
        %v6514 = vsel %vm568, %v6513, %v6466
        %v6515 = vsel %vm570, %v6514, %v6470
        %v6516 = vsel %vm572, %v6515, %v6474
        %v6517 = vsel %vm574, %v6516, %v6478
        %v6518 = vsel %vm576, %v6517, %v6482
        %v6519 = vsel %vm564, %v6448, %v6486
        %v6520 = vsel %vm566, %v6519, %v6490
        %v6521 = vsel %vm568, %v6520, %v6494
        %v6522 = vsel %vm570, %v6521, %v6498
        %v6523 = vsel %vm572, %v6522, %v6502
        %v6524 = vsel %vm574, %v6523, %v6506
        %v6525 = vsel %vm576, %v6524, %v6510
        %v6526 = vld [vmem:[%s2] sm:$0xff]
        %vm6527 = vcmask 588800
        %v6529 = vsel %vm6527, %v6526, 0
        %6531 = vmatprep.subr.mxu0 %v3365
        %6532 = vmatpush1.msra.mxu0 %v3358
        %6533 = vmatprep.subr.mxu0 %v3771
        %6534 = vmatpush1.msra.mxu0 %v3764
        %6535 = vmatprep.subr.mxu0 %v4161
        %6536 = vmatpush1.msra.mxu0 %v4154
        %6537 = vmatprep.subr.mxu0 %v4567
        %6538 = vmatpush1.msra.mxu0 %v4560
        %6539 = vmatprep.subr.mxu0 %v4957
        %6540 = vmatpush1.msra.mxu0 %v4950
        %6541 = vmatprep.subr.mxu0 %v5347
        %6542 = vmatpush1.msra.mxu0 %v5340
        %6543 = vmatprep.subr.mxu0 %v5745
        %6544 = vmatpush1.msra.mxu0 %v5738
        %6545 = vmatprep.subr.mxu0 %v6135
        %6546 = vmatpush1.msra.mxu0 %v6128
        %6547 = vmatprep.subr.mxu0 %v6525
        %6548 = vmatpush1.msra.mxu0 %v6518
        %6549 = vmatprep.subr.mxu0 0.0
        %6550 = vmatpush1.msra.mxu0 0.0
        %6551 = vmatprep.subr.mxu0 0.0
        %6552 = vmatpush1.msra.mxu0 0.0
        %6553 = vmatprep.subr.mxu0 0.0
        %6554 = vmatpush1.msra.mxu0 0.0
        %6555 = vmatprep.subr.mxu0 0.0
        %6556 = vmatpush1.msra.mxu0 0.0
        %6557 = vmatprep.subr.mxu0 0.0
        %6558 = vmatpush1.msra.mxu0 0.0
        %6559 = vmatprep.subr.mxu0 0.0
        %6560 = vmatpush1.msra.mxu0 0.0
        %6561 = vmatprep.subr.mxu0 0.0
        %6562 = vmatpush1.msra.mxu0 0.0
        %6563 = vmatprep.subr.mxu0 0.0
        %6564 = vmatpush1.msra.mxu0 0.0
        %6565 = vmatprep.subr.mxu0 0.0
        %6566 = vmatpush1.msra.mxu0 0.0
        %6567 = vmatprep.subr.mxu0 0.0
        %6568 = vmatpush1.msra.mxu0 0.0
        %6569 = vmatprep.subr.mxu0 0.0
        %6570 = vmatpush1.msra.mxu0 0.0
        %6571 = vmatprep.subr.mxu0 0.0
        %6572 = vmatpush1.msra.mxu0 0.0
        %6573 = vmatprep.subr.mxu0 0.0
        %6574 = vmatpush1.msra.mxu0 0.0
        %6575 = vmatprep.subr.mxu0 0.0
        %6576 = vmatpush1.msra.mxu0 0.0
        %6577 = vmatprep.subr.mxu0 0.0
        %6578 = vmatpush1.msra.mxu0 0.0
        %6579 = vmatprep.subr.mxu0 0.0
        %6580 = vmatpush1.msra.mxu0 0.0
        %6581 = vmatprep.subr.mxu0 0.0
        %6582 = vmatpush1.msra.mxu0 0.0
        %6583 = vmatprep.subr.mxu0 0.0
        %6584 = vmatpush1.msra.mxu0 0.0
        %6585 = vmatprep.subr.mxu0 0.0
        %6586 = vmatpush1.msra.mxu0 0.0
        %6587 = vmatprep.subr.mxu0 0.0
        %6588 = vmatpush1.msra.mxu0 0.0
        %6589 = vmatprep.subr.mxu0 0.0
        %6590 = vmatpush1.msra.mxu0 0.0
        %6591 = vmatprep.subr.mxu0 0.0
        %6592 = vmatpush1.msra.mxu0 0.0
        %6593 = vmatprep.subr.mxu0 0.0
        %6594 = vmatpush1.msra.mxu0 0.0
        %6595 = vmatprep.mubr.f32.mxu0 0.0
        %6596 = vmatmul.mubr.f32.gmra.mrb[0].mxu0 %v6529
        %v6597 = vpop.f32.mrb[0].mxu0
        %v6598 = vadd.f32 0.0, %v6597
        %v6599 = vpop.f32.mrb[0].mxu0
        %v6600 = vadd.f32 0.0, %v6599
        %6601 = vdwg.mxu0
        %v6602 = vld [vmem:[%s5] sm:$0xff]
        %6604 = vset.pattern.permute.xlu0 0
        %6605 = vperm.xlu0 %6604, %v6602
        %v6606 = vpop.permute.xlu0 %6605
        %v6608 = vmul.f32 %v6598, %v6606
        %v6609 = vmul.f32 %v6600, %v6606
        %v6610 = vld [vmem:[%s6] sm:$0xff]
        %6612 = vset.pattern.permute.xlu0 0
        %6613 = vperm.xlu0 %6612, %v6610
        %v6614 = vpop.permute.xlu0 %6613
        %v6616 = vadd.f32 %v6608, %v6614
        %v6617 = vadd.f32 %v6609, %v6614
        %6618 = vst [vmem:[%s296] sm:$0xff] %v6616
        %6619 = vst [vmem:[%s296 + $0x8] sm:$0xff] %v6617
        %s6620 = sand.u32 %s184, 1
        %s6621 = scalar_lea.sflag [#allocation6], %s6620
        %s6622 = sand.u32 %s184, 1
        %s6623 = smul.addr %s6622, 16
        %s6624 = scalar_lea.vmem [#allocation7], %s6623
        // Predicated region
        $region53: #{tpu_custom_call.1} parent=47 // pred_check
          %p6625 = pneg %p194
        $region54: #{tpu_custom_call.1} parent=47 // pred_check_branch
          %6627 = sbr.rel (%p6625) target = $region56
        $region55: #{tpu_custom_call.1} parent=47 // pred_region
          %s6629 = ssub.s32 256, 256
          %6630 = vsyncadd %s6621, %s6629
          %s6631 = smul.addr %s24, 2
          %s6632 = smul.addr %s6631, 128
          %s6633 = scalar_lea.hbm %s7, %s6632
          %s6635 = sshll.u32 %s6624, 4
          %s6636 = int_to_ptr.vmem [resolvable:$true] %s6635
          %6638 = dma.vmem_to_hbm [thread:$0]  %s6636, 256, %s6633, %s6621
        $region56: #{tpu_custom_call.1} parent=47 // pred_fallthru
          _
      $region48: #{tpu_custom_call.1} parent=5 // pred_fallthru
        _
      %p6639 = scmp.le.s32.totalorder 2, %s19
      // Predicated region
      $region57: #{tpu_custom_call.1} parent=5 // pred_check
        %p6640 = pneg %p6639
      $region58: #{tpu_custom_call.1} parent=5 // pred_check_branch
        %6642 = sbr.rel (%p6640) target = $region60
      $region59: #{tpu_custom_call.1} parent=5 // pred_region
        %s6643 = ssub.s32 %s19, 2
        // Predicated region
        $region61: #{tpu_custom_call.1} parent=59 // pred_check
          %p6644 = pneg %p200
        $region62: #{tpu_custom_call.1} parent=59 // pred_check_branch
          %6646 = sbr.rel (%p6644) target = $region64
        $region63: #{tpu_custom_call.1} parent=59 // pred_region
          %s6647 = sand.u32 %s185, 1
          %s6648 = scalar_lea.sflag [#allocation6], %s6647
          %s6649 = sand.u32 %s185, 1
          %s6650 = smul.addr %s6649, 16
          %s6651 = scalar_lea.vmem [#allocation7], %s6650
          %6652 = dma.done %s6648, 256
        $region64: #{tpu_custom_call.1} parent=59 // pred_fallthru
          _
      $region60: #{tpu_custom_call.1} parent=5 // pred_fallthru
        _
    $region6: #{tpu_custom_call.1} parent=1 // loop_footer
      %s23 = sadd.s32 1, %s19
    $region7: #{tpu_custom_call.1} parent=1 // loop_footer_branch
      %18 = sbr.rel target = $region3
    $region8: #{tpu_custom_call.1} parent=1 // loop_exit
      _
    %6653 = vsyncpa [#allocation5], 1
    %s6654 = scalar_lea.sflag [#allocation5], 1
    %6655 = vsyncpa %s6654, 1
    %6656 = vsyncpa [#allocation6], 1
    %s6657 = scalar_lea.sflag [#allocation6], 1
    %6658 = vsyncpa %s6657, 1

</llo_original>
